<compile_context>
chip_gen: v5e
topology: v5e:2x2
jax: 0.10.0
libtpu: 0.0.40
codegen_flags: <defaults>
</compile_context>

<pallas_src>
import functools

import jax
import jax.numpy as jnp
from jax import lax
from jax.experimental import pallas as pl
from jax.experimental.pallas import tpu as pltpu

_EPS = 1e-5
_NEG_SLOPE = 0.2


def _leaky(x):
    return jnp.where(x >= 0.0, x, _NEG_SLOPE * x)


def _pre_bn(x, w1_ref, b1_ref, w2_ref):
    """x: (2, TM) f32 -> h2 (pre-BN): (128, TM) f32."""
    w1 = w1_ref[...]                                        # (64, 2) f32
    # Conv1d(2, 64, k=1) + bias: K=2 -> two VPU broadcast FMAs (skip the MXU).
    h1 = (w1[:, 0:1] * x[0:1, :]
          + w1[:, 1:2] * x[1:2, :]
          + b1_ref[...])                                    # (64, TM) f32
    h1 = _leaky(h1)
    # Conv1d(64, 128, k=1, bias=False): bf16 operands, f32 accumulate (MXU).
    return jnp.dot(w2_ref[...], h1.astype(jnp.bfloat16),
                   preferred_element_type=jnp.float32)      # (128, TM) f32


def _fused_kernel(x_ref, w1_ref, b1_ref, w2_ref, gamma_ref, beta_ref, w3_ref,
                  o_ref, stats_ref, bn_ref, *, tm, m_valid, num_tiles, has_pad):
    p = pl.program_id(0)         # 0: stats pass, 1: output pass
    i = pl.program_id(1)         # tile index along flattened N*L axis

    # Shared by both passes (recompute in pass 1 instead of spilling h2 to HBM).
    h2 = _pre_bn(x_ref[...], w1_ref, b1_ref, w2_ref)        # (128, TM) f32

    is_stats = p == 0
    is_out = p == 1

    # ---------------- pass 0: accumulate per-channel sum / sum-of-squares ----
    @pl.when(jnp.logical_and(is_stats, i == 0))
    def _init_stats():
        stats_ref[...] = jnp.zeros_like(stats_ref)

    def _accum(h):
        stats_ref[:, 0:1] += jnp.sum(h, axis=1, keepdims=True)
        stats_ref[:, 1:2] += jnp.sum(h * h, axis=1, keepdims=True)

    if has_pad:
        is_last = i == num_tiles - 1

        @pl.when(jnp.logical_and(is_stats, jnp.logical_not(is_last)))
        def _accum_full():
            _accum(h2)

        @pl.when(jnp.logical_and(is_stats, is_last))
        def _accum_masked():
            # Mask padded columns (beyond true M = N*L) so BN stats stay exact.
            col = i * tm + lax.broadcasted_iota(jnp.int32, h2.shape, 1)
            _accum(jnp.where(col < m_valid, h2, 0.0))
    else:
        @pl.when(is_stats)
        def _accum_all():
            _accum(h2)

    # ---------------- pass 1: fold BN once, then normalize + final conv ------
    @pl.when(jnp.logical_and(is_out, i == 0))
    def _fold_bn():
        inv_m = 1.0 / m_valid                               # compile-time const
        mean = stats_ref[:, 0:1] * inv_m
        var = jnp.maximum(stats_ref[:, 1:2] * inv_m - mean * mean, 0.0)
        scale = gamma_ref[...] * lax.rsqrt(var + _EPS)
        bn_ref[:, 0:1] = scale
        bn_ref[:, 1:2] = beta_ref[...] - mean * scale

    @pl.when(is_out)
    def _emit_output():
        h3 = _leaky(h2 * bn_ref[:, 0:1] + bn_ref[:, 1:2])   # folded BN + LReLU
        # Conv1d(128, 1, k=1, bias=False): (1,128)@(128,TM) -> lane-dense (1,TM).
        o_ref[...] = jnp.dot(w3_ref[...], h3.astype(jnp.bfloat16),
                             preferred_element_type=jnp.float32)


def _round_up(x, m):
    return (x + m - 1) // m * m


def pixel_discriminator(x_ncl, params, *, tm_max=2048):
    """x_ncl: (N, 2, L) float32. Returns (N, 1, L) float32."""
    n, c_in, length = x_ncl.shape
    assert c_in == 2
    w1, b1, w2, gamma, beta, w3 = params
    ndf2 = w2.shape[0]                                      # 128

    m = n * length
    tm = min(tm_max, _round_up(m, 128))                     # lane-axis tile
    m_pad = _round_up(m, tm)
    num_tiles = m_pad // tm
    has_pad = m_pad != m

    # NCL -> channels-on-sublanes (2, M); zero-pad M up to a multiple of TM.
    x_t = jnp.transpose(x_ncl, (1, 0, 2)).reshape(c_in, m)
    if has_pad:
        x_t = jnp.pad(x_t, ((0, 0), (0, m_pad - m)))

    # Pre-cast MXU weights once (halves their VMEM footprint, no per-step cast).
    w2_bf = w2.astype(jnp.bfloat16)                         # (128, 64)
    w3_bf = w3.astype(jnp.bfloat16)                         # (1, 128)
    gamma_c = gamma.reshape(ndf2, 1).astype(jnp.float32)
    beta_c = beta.reshape(ndf2, 1).astype(jnp.float32)

    def full(a):  # small array, resident every grid step (block index constant)
        return pl.BlockSpec(a.shape, lambda p, i: (0,) * a.ndim)

    kernel = functools.partial(_fused_kernel, tm=tm, m_valid=m,
                               num_tiles=num_tiles, has_pad=has_pad)

    out_t = pl.pallas_call(
        kernel,
        out_shape=jax.ShapeDtypeStruct((1, m_pad), jnp.float32),
        grid=(2, num_tiles),
        in_specs=[pl.BlockSpec((c_in, tm), lambda p, i: (0, i)),
                  full(w1), full(b1), full(w2_bf), full(gamma_c),
                  full(beta_c), full(w3_bf)],
        # i*p keeps each output block's visits consecutive and skips write-backs
        # during the stats pass (pass 0 maps every step to block (0, 0)).
        out_specs=pl.BlockSpec((1, tm), lambda p, i: (0, i * p)),
        scratch_shapes=[pltpu.VMEM((ndf2, 2), jnp.float32),   # [sum | sumsq]
                        pltpu.VMEM((ndf2, 2), jnp.float32)],  # [scale | shift]
        compiler_params=pltpu.CompilerParams(
            dimension_semantics=("arbitrary", "arbitrary"),
            vmem_limit_bytes=32 * 1024 * 1024),
    )(x_t, w1, b1, w2_bf, gamma_c, beta_c, w3_bf)

    # (1, M_pad) -> (N, 1, L)
    return out_t[0, :m].reshape(n, length)[:, None, :]


def init_params(key, ndf=64):
    # PyTorch Conv1d weights are (Cout, Cin, 1); stored squeezed as (Cout, Cin)
    # for the transposed channels-on-sublanes layout.
    k1, k2, k3, k4 = jax.random.split(key, 4)
    w1 = jax.random.normal(k1, (ndf, 2), jnp.float32) * 0.1        # (64, 2)
    b1 = jax.random.normal(k2, (ndf, 1), jnp.float32) * 0.1        # (64, 1)
    w2 = jax.random.normal(k3, (2 * ndf, ndf), jnp.float32) * 0.1  # (128, 64)
    gamma = jnp.ones((2 * ndf,), jnp.float32)   # BatchNorm1d weight init
    beta = jnp.zeros((2 * ndf,), jnp.float32)   # BatchNorm1d bias init
    w3 = jax.random.normal(k4, (1, 2 * ndf), jnp.float32) * 0.1    # (1, 128)
    return (w1, b1, w2, gamma, beta, w3)


def _reference_jax(x_ncl, params):
    # Pure-JAX f32 reference of the same forward pass (sanity check).
    w1, b1, w2, gamma, beta, w3 = params
    n, c_in, length = x_ncl.shape
    x_t = jnp.transpose(x_ncl, (1, 0, 2)).reshape(c_in, n * length)  # (2, M)
    h1 = w1 @ x_t + b1
    h1 = jnp.where(h1 >= 0, h1, 0.2 * h1)
    h2 = w2 @ h1
    mean = jnp.mean(h2, axis=1, keepdims=True)
    var = jnp.mean((h2 - mean) ** 2, axis=1, keepdims=True)
    h2n = (h2 - mean) / jnp.sqrt(var + _EPS) * gamma[:, None] + beta[:, None]
    h3 = jnp.where(h2n >= 0, h2n, 0.2 * h2n)
    out = w3 @ h3                                   # (1, M)
    return out.reshape(n, length)[:, None, :]


if __name__ == "__main__":
    key = jax.random.PRNGKey(0)
    kx1, kx2, kp = jax.random.split(key, 3)
    params = init_params(kp)

    # Case 1: single tile per pass, no padding (N*L multiple of the tile).
    N, C, L = 2, 2, 1024
    x = jax.random.normal(kx1, (N, C, L), jnp.float32)
    out = jax.block_until_ready(pixel_discriminator(x, params))
    assert out.shape == (N, 1, L), out.shape
    ref = _reference_jax(x, params)
    # bf16 MXU operands vs pure-f32 reference -> loosened tolerance.
    assert jnp.allclose(out, ref, atol=5e-2, rtol=5e-2), \
        float(jnp.max(jnp.abs(out - ref)))

    # Case 2: multi-tile grid with padded final tile (exercises masked stats).
    N2, L2 = 2, 1000
    x2 = jax.random.normal(kx2, (N2, C, L2), jnp.float32)
    out2 = jax.block_until_ready(pixel_discriminator(x2, params, tm_max=512))
    assert out2.shape == (N2, 1, L2), out2.shape
    ref2 = _reference_jax(x2, params)
    assert jnp.allclose(out2, ref2, atol=5e-2, rtol=5e-2), \
        float(jnp.max(jnp.abs(out2 - ref2)))

    print("KERNEL_OK")
</pallas_src>

<mosaic_0001>
module attributes {stable_mosaic.version = 11 : i64} {
  func.func @_fused_kernel(%arg0: i32, %arg1: i32, %arg2: memref<2x2048xf32, #tpu.memory_space<vmem>>, %arg3: memref<64x2xf32, #tpu.memory_space<vmem>>, %arg4: memref<64x1xf32, #tpu.memory_space<vmem>>, %arg5: memref<128x64xbf16, #tpu.memory_space<vmem>>, %arg6: memref<128x1xf32, #tpu.memory_space<vmem>>, %arg7: memref<128x1xf32, #tpu.memory_space<vmem>>, %arg8: memref<1x128xbf16, #tpu.memory_space<vmem>>, %arg9: memref<1x2048xf32, #tpu.memory_space<vmem>>, %arg10: memref<128x2xf32, #tpu.memory_space<vmem>>, %arg11: memref<128x2xf32, #tpu.memory_space<vmem>>) attributes {dimension_semantics = [#tpu.dimension_semantics<arbitrary>, #tpu.dimension_semantics<arbitrary>], iteration_bounds = array<i64: 2, 1>, scalar_prefetch = 0 : i64, scratch_operands = 2 : i64, tpu.core_type = #tpu.core_type<tc>, window_params = [{transform_indices = @transform_0, window_bounds = array<i64: 2, 2048>}, {pipeline_mode = #tpu.pipeline_mode<synchronous>, transform_indices = @transform_1, window_bounds = array<i64: 64, 2>}, {pipeline_mode = #tpu.pipeline_mode<synchronous>, transform_indices = @transform_2, window_bounds = array<i64: 64, 1>}, {pipeline_mode = #tpu.pipeline_mode<synchronous>, transform_indices = @transform_3, window_bounds = array<i64: 128, 64>}, {pipeline_mode = #tpu.pipeline_mode<synchronous>, transform_indices = @transform_4, window_bounds = array<i64: 128, 1>}, {pipeline_mode = #tpu.pipeline_mode<synchronous>, transform_indices = @transform_5, window_bounds = array<i64: 128, 1>}, {pipeline_mode = #tpu.pipeline_mode<synchronous>, transform_indices = @transform_6, window_bounds = array<i64: 1, 128>}, {transform_indices = @transform_7, window_bounds = array<i64: 1, 2048>}]} {
    %c0 = arith.constant 0 : index
    %c0_0 = arith.constant 0 : index
    %0 = vector.load %arg2[%c0, %c0_0] : memref<2x2048xf32, #tpu.memory_space<vmem>>, vector<2x2048xf32>
    %c0_1 = arith.constant 0 : index
    %c0_2 = arith.constant 0 : index
    %1 = vector.load %arg3[%c0_1, %c0_2] : memref<64x2xf32, #tpu.memory_space<vmem>>, vector<64x2xf32>
    %2 = vector.extract_strided_slice %1 {offsets = [0, 0], sizes = [64, 1], strides = [1, 1]} : vector<64x2xf32> to vector<64x1xf32>
    %3 = vector.extract_strided_slice %0 {offsets = [0, 0], sizes = [1, 2048], strides = [1, 1]} : vector<2x2048xf32> to vector<1x2048xf32>
    %4 = vector.broadcast %2 : vector<64x1xf32> to vector<64x2048xf32>
    %5 = vector.broadcast %3 : vector<1x2048xf32> to vector<64x2048xf32>
    %6 = arith.mulf %4, %5 : vector<64x2048xf32>
    %7 = vector.extract_strided_slice %1 {offsets = [0, 1], sizes = [64, 1], strides = [1, 1]} : vector<64x2xf32> to vector<64x1xf32>
    %8 = vector.extract_strided_slice %0 {offsets = [1, 0], sizes = [1, 2048], strides = [1, 1]} : vector<2x2048xf32> to vector<1x2048xf32>
    %9 = vector.broadcast %7 : vector<64x1xf32> to vector<64x2048xf32>
    %10 = vector.broadcast %8 : vector<1x2048xf32> to vector<64x2048xf32>
    %11 = arith.mulf %9, %10 : vector<64x2048xf32>
    %12 = arith.addf %6, %11 : vector<64x2048xf32>
    %c0_3 = arith.constant 0 : index
    %c0_4 = arith.constant 0 : index
    %13 = vector.load %arg4[%c0_3, %c0_4] : memref<64x1xf32, #tpu.memory_space<vmem>>, vector<64x1xf32>
    %14 = vector.broadcast %13 : vector<64x1xf32> to vector<64x2048xf32>
    %15 = arith.addf %12, %14 : vector<64x2048xf32>
    %cst = arith.constant 0.000000e+00 : f32
    %16 = vector.broadcast %cst : f32 to vector<64x2048xf32>
    %17 = arith.cmpf oge, %15, %16 : vector<64x2048xf32>
    %cst_5 = arith.constant 2.000000e-01 : f32
    %18 = vector.broadcast %cst_5 : f32 to vector<64x2048xf32>
    %19 = arith.mulf %18, %15 : vector<64x2048xf32>
    %20 = arith.select %17, %15, %19 : vector<64x2048xi1>, vector<64x2048xf32>
    %c0_6 = arith.constant 0 : index
    %c0_7 = arith.constant 0 : index
    %21 = vector.load %arg5[%c0_6, %c0_7] : memref<128x64xbf16, #tpu.memory_space<vmem>>, vector<128x64xbf16>
    %22 = arith.truncf %20 : vector<64x2048xf32> to vector<64x2048xbf16>
    %cst_8 = arith.constant dense<0.000000e+00> : vector<128x2048xf32>
    %23 = tpu.matmul %21, %22, %cst_8 {dimension_numbers = #tpu.dot_dimension_numbers<[1], [0], [0], [1], [0, 0, 1, 1], [], []>} : vector<128x64xbf16>, vector<64x2048xbf16>, vector<128x2048xf32> -> vector<128x2048xf32>
    %c0_i32 = arith.constant 0 : i32
    %24 = arith.cmpi eq, %arg0, %c0_i32 : i32
    %c1_i32 = arith.constant 1 : i32
    %25 = arith.cmpi eq, %arg0, %c1_i32 : i32
    %c0_i32_9 = arith.constant 0 : i32
    %26 = arith.cmpi eq, %arg1, %c0_i32_9 : i32
    %27 = arith.andi %24, %26 : i1
    %28 = arith.extui %27 : i1 to i32
    %c0_i32_10 = arith.constant 0 : i32
    %29 = arith.cmpi ne, %28, %c0_i32_10 : i32
    scf.if %29 {
      %cst_15 = arith.constant 0.000000e+00 : f32
      %38 = vector.broadcast %cst_15 : f32 to vector<128x2xf32>
      %c0_16 = arith.constant 0 : index
      %c0_17 = arith.constant 0 : index
      %39 = vector.load %arg10[%c0_16, %c0_17] : memref<128x2xf32, #tpu.memory_space<vmem>>, vector<128x2xf32>
      tpu.vector_store %arg10[%c0_16, %c0_17], %38 {strides = array<i32>} : memref<128x2xf32, #tpu.memory_space<vmem>>, vector<128x2xf32>,
    } else {
    }
    %30 = arith.extui %24 : i1 to i32
    %c0_i32_11 = arith.constant 0 : i32
    %31 = arith.cmpi ne, %30, %c0_i32_11 : i32
    scf.if %31 {
      %c0_15 = arith.constant 0 : index
      %c0_16 = arith.constant 0 : index
      %38 = vector.load %arg10[%c0_15, %c0_16] : memref<128x2xf32, #tpu.memory_space<vmem>>, vector<128x1xf32>
      %cst_17 = arith.constant dense<0.000000e+00> : vector<128xf32>
      %39 = vector.multi_reduction <add>, %23, %cst_17 [1] : vector<128x2048xf32> to vector<128xf32>
      %40 = vector.shape_cast %39 : vector<128xf32> to vector<128x1xf32>
      %41 = arith.addf %38, %40 : vector<128x1xf32>
      %c0_18 = arith.constant 0 : index
      %c0_19 = arith.constant 0 : index
      %42 = vector.load %arg10[%c0_18, %c0_19] : memref<128x2xf32, #tpu.memory_space<vmem>>, vector<128x1xf32>
      tpu.vector_store %arg10[%c0_18, %c0_19], %41 {strides = array<i32>} : memref<128x2xf32, #tpu.memory_space<vmem>>, vector<128x1xf32>,
      %c0_20 = arith.constant 0 : index
      %c1 = arith.constant 1 : index
      %43 = vector.load %arg10[%c0_20, %c1] : memref<128x2xf32, #tpu.memory_space<vmem>>, vector<128x1xf32>
      %44 = arith.mulf %23, %23 : vector<128x2048xf32>
      %cst_21 = arith.constant dense<0.000000e+00> : vector<128xf32>
      %45 = vector.multi_reduction <add>, %44, %cst_21 [1] : vector<128x2048xf32> to vector<128xf32>
      %46 = vector.shape_cast %45 : vector<128xf32> to vector<128x1xf32>
      %47 = arith.addf %43, %46 : vector<128x1xf32>
      %c0_22 = arith.constant 0 : index
      %c1_23 = arith.constant 1 : index
      %48 = vector.load %arg10[%c0_22, %c1_23] : memref<128x2xf32, #tpu.memory_space<vmem>>, vector<128x1xf32>
      tpu.vector_store %arg10[%c0_22, %c1_23], %47 {strides = array<i32>} : memref<128x2xf32, #tpu.memory_space<vmem>>, vector<128x1xf32>,
    } else {
    }
    %c0_i32_12 = arith.constant 0 : i32
    %32 = arith.cmpi eq, %arg1, %c0_i32_12 : i32
    %33 = arith.andi %25, %32 : i1
    %34 = arith.extui %33 : i1 to i32
    %c0_i32_13 = arith.constant 0 : i32
    %35 = arith.cmpi ne, %34, %c0_i32_13 : i32
    scf.if %35 {
      %c0_15 = arith.constant 0 : index
      %c0_16 = arith.constant 0 : index
      %38 = vector.load %arg10[%c0_15, %c0_16] : memref<128x2xf32, #tpu.memory_space<vmem>>, vector<128x1xf32>
      %cst_17 = arith.constant 4.8828125E-4 : f32
      %39 = vector.broadcast %cst_17 : f32 to vector<128x1xf32>
      %40 = arith.mulf %38, %39 : vector<128x1xf32>
      %c0_18 = arith.constant 0 : index
      %c1 = arith.constant 1 : index
      %41 = vector.load %arg10[%c0_18, %c1] : memref<128x2xf32, #tpu.memory_space<vmem>>, vector<128x1xf32>
      %cst_19 = arith.constant 4.8828125E-4 : f32
      %42 = vector.broadcast %cst_19 : f32 to vector<128x1xf32>
      %43 = arith.mulf %41, %42 : vector<128x1xf32>
      %44 = arith.mulf %40, %40 : vector<128x1xf32>
      %45 = arith.subf %43, %44 : vector<128x1xf32>
      %cst_20 = arith.constant 0.000000e+00 : f32
      %46 = vector.broadcast %cst_20 : f32 to vector<128x1xf32>
      %47 = arith.maximumf %45, %46 : vector<128x1xf32>
      %c0_21 = arith.constant 0 : index
      %c0_22 = arith.constant 0 : index
      %48 = vector.load %arg6[%c0_21, %c0_22] : memref<128x1xf32, #tpu.memory_space<vmem>>, vector<128x1xf32>
      %cst_23 = arith.constant 9.99999974E-6 : f32
      %49 = vector.broadcast %cst_23 : f32 to vector<128x1xf32>
      %50 = arith.addf %47, %49 : vector<128x1xf32>
      %51 = math.rsqrt %50 : vector<128x1xf32>
      %52 = arith.mulf %48, %51 : vector<128x1xf32>
      %c0_24 = arith.constant 0 : index
      %c0_25 = arith.constant 0 : index
      %53 = vector.load %arg11[%c0_24, %c0_25] : memref<128x2xf32, #tpu.memory_space<vmem>>, vector<128x1xf32>
      tpu.vector_store %arg11[%c0_24, %c0_25], %52 {strides = array<i32>} : memref<128x2xf32, #tpu.memory_space<vmem>>, vector<128x1xf32>,
      %c0_26 = arith.constant 0 : index
      %c0_27 = arith.constant 0 : index
      %54 = vector.load %arg7[%c0_26, %c0_27] : memref<128x1xf32, #tpu.memory_space<vmem>>, vector<128x1xf32>
      %55 = arith.mulf %40, %52 : vector<128x1xf32>
      %56 = arith.subf %54, %55 : vector<128x1xf32>
      %c0_28 = arith.constant 0 : index
      %c1_29 = arith.constant 1 : index
      %57 = vector.load %arg11[%c0_28, %c1_29] : memref<128x2xf32, #tpu.memory_space<vmem>>, vector<128x1xf32>
      tpu.vector_store %arg11[%c0_28, %c1_29], %56 {strides = array<i32>} : memref<128x2xf32, #tpu.memory_space<vmem>>, vector<128x1xf32>,
    } else {
    }
    %36 = arith.extui %25 : i1 to i32
    %c0_i32_14 = arith.constant 0 : i32
    %37 = arith.cmpi ne, %36, %c0_i32_14 : i32
    scf.if %37 {
      %c0_15 = arith.constant 0 : index
      %c0_16 = arith.constant 0 : index
      %38 = vector.load %arg11[%c0_15, %c0_16] : memref<128x2xf32, #tpu.memory_space<vmem>>, vector<128x1xf32>
      %39 = vector.broadcast %38 : vector<128x1xf32> to vector<128x2048xf32>
      %40 = arith.mulf %23, %39 : vector<128x2048xf32>
      %c0_17 = arith.constant 0 : index
      %c1 = arith.constant 1 : index
      %41 = vector.load %arg11[%c0_17, %c1] : memref<128x2xf32, #tpu.memory_space<vmem>>, vector<128x1xf32>
      %42 = vector.broadcast %41 : vector<128x1xf32> to vector<128x2048xf32>
      %43 = arith.addf %40, %42 : vector<128x2048xf32>
      %cst_18 = arith.constant 0.000000e+00 : f32
      %44 = vector.broadcast %cst_18 : f32 to vector<128x2048xf32>
      %45 = arith.cmpf oge, %43, %44 : vector<128x2048xf32>
      %cst_19 = arith.constant 2.000000e-01 : f32
      %46 = vector.broadcast %cst_19 : f32 to vector<128x2048xf32>
      %47 = arith.mulf %46, %43 : vector<128x2048xf32>
      %48 = arith.select %45, %43, %47 : vector<128x2048xi1>, vector<128x2048xf32>
      %c0_20 = arith.constant 0 : index
      %c0_21 = arith.constant 0 : index
      %49 = vector.load %arg8[%c0_20, %c0_21] : memref<1x128xbf16, #tpu.memory_space<vmem>>, vector<1x128xbf16>
      %50 = arith.truncf %48 : vector<128x2048xf32> to vector<128x2048xbf16>
      %cst_22 = arith.constant dense<0.000000e+00> : vector<1x2048xf32>
      %51 = tpu.matmul %49, %50, %cst_22 {dimension_numbers = #tpu.dot_dimension_numbers<[1], [0], [0], [1], [0, 0, 1, 1], [], []>} : vector<1x128xbf16>, vector<128x2048xbf16>, vector<1x2048xf32> -> vector<1x2048xf32>
      %c0_23 = arith.constant 0 : index
      %c0_24 = arith.constant 0 : index
      %52 = vector.load %arg9[%c0_23, %c0_24] : memref<1x2048xf32, #tpu.memory_space<vmem>>, vector<1x2048xf32>
      tpu.vector_store %arg9[%c0_23, %c0_24], %51 {strides = array<i32>} : memref<1x2048xf32, #tpu.memory_space<vmem>>, vector<1x2048xf32>,
    } else {
    }
    return
  }
  func.func @transform_0(%arg0: i32, %arg1: i32) -> (i32, i32) {
    %c0_i32 = arith.constant 0 : i32
    %c0_i32_0 = arith.constant 0 : i32
    return %c0_i32, %arg1 : i32, i32
  }
  func.func @transform_1(%arg0: i32, %arg1: i32) -> (i32, i32) {
    %c0_i32 = arith.constant 0 : i32
    %c0_i32_0 = arith.constant 0 : i32
    %c0_i32_1 = arith.constant 0 : i32
    return %c0_i32, %c0_i32_0 : i32, i32
  }
  func.func @transform_2(%arg0: i32, %arg1: i32) -> (i32, i32) {
    %c0_i32 = arith.constant 0 : i32
    %c0_i32_0 = arith.constant 0 : i32
    %c0_i32_1 = arith.constant 0 : i32
    return %c0_i32, %c0_i32_0 : i32, i32
  }
  func.func @transform_3(%arg0: i32, %arg1: i32) -> (i32, i32) {
    %c0_i32 = arith.constant 0 : i32
    %c0_i32_0 = arith.constant 0 : i32
    %c0_i32_1 = arith.constant 0 : i32
    return %c0_i32, %c0_i32_0 : i32, i32
  }
  func.func @transform_4(%arg0: i32, %arg1: i32) -> (i32, i32) {
    %c0_i32 = arith.constant 0 : i32
    %c0_i32_0 = arith.constant 0 : i32
    %c0_i32_1 = arith.constant 0 : i32
    return %c0_i32, %c0_i32_0 : i32, i32
  }
  func.func @transform_5(%arg0: i32, %arg1: i32) -> (i32, i32) {
    %c0_i32 = arith.constant 0 : i32
    %c0_i32_0 = arith.constant 0 : i32
    %c0_i32_1 = arith.constant 0 : i32
    return %c0_i32, %c0_i32_0 : i32, i32
  }
  func.func @transform_6(%arg0: i32, %arg1: i32) -> (i32, i32) {
    %c0_i32 = arith.constant 0 : i32
    %c0_i32_0 = arith.constant 0 : i32
    %c0_i32_1 = arith.constant 0 : i32
    return %c0_i32, %c0_i32_0 : i32, i32
  }
  func.func @transform_7(%arg0: i32, %arg1: i32) -> (i32, i32) {
    %0 = arith.muli %arg1, %arg0 : i32
    %c0_i32 = arith.constant 0 : i32
    %c0_i32_0 = arith.constant 0 : i32
    return %c0_i32, %0 : i32, i32
  }
}

</mosaic_0001>

<llo_original>
// kernel: tpu_custom_call.1
$region0: #{tpu_custom_call.1}
  #allocation0 [shape = 'u32[]', space=smem, size = 0x4, offset = 0x4, fixed_abs, tag = 'smem constant byte address 0x4 - core index']
  #allocation1 [shape = 'u32[72,128]{1,0:T(1,128)}', space=vmem, size = 0x9000, scoped, tag = 'internal scratch']
  #allocation2 [shape = 'f32[128,2]{1,0:T(8,128)}', space=vmem, size = 0x10000, scoped, tag = 'scratch operand']
  #allocation3 [shape = 'f32[128,2]{1,0:T(8,128)}', space=vmem, size = 0x10000, scoped, tag = 'scratch operand']
  %s0 = inlined_call_operand.vmem [shape: f32[2,2048], index: 0, kind: input, shape index: {}]
  %s1 = inlined_call_operand.vmem [shape: f32[64,2], index: 1, kind: input, shape index: {}]
  %s2 = inlined_call_operand.vmem [shape: f32[64,1], index: 2, kind: input, shape index: {}]
  %s3 = inlined_call_operand.vmem [shape: bf16[128,64], index: 3, kind: input, shape index: {}]
  %s4 = inlined_call_operand.vmem [shape: f32[128,1], index: 4, kind: input, shape index: {}]
  %s5 = inlined_call_operand.vmem [shape: f32[128,1], index: 5, kind: input, shape index: {}]
  %s6 = inlined_call_operand.vmem [shape: bf16[1,128], index: 6, kind: input, shape index: {}]
  %s7 = inlined_call_operand.hbm [shape: f32[1,2048], index: 7, kind: output, shape index: {}]
  %s8 = sld [smem:[#allocation0]]
  $region77: #{tpu_custom_call.1} parent=0
    _
  %s10 = ssub.s32 1, %s8
  %s11 = scalar_select 0, %s10, %s8
  $region1: #{tpu_custom_call.1} parent=0
    #allocation4 [shape = 'u8[16384]{0}', space=vmem, size = 0x4000, scoped, tag = 'output window, operand 0']
    #allocation5 [shape = 's32[2]{0}', space=sflag, size = 0x8, scoped, tag = 'scoped memory for tpu_custom_call.1']
    %12 = vsyncpa [#allocation5], 0
    %s13 = scalar_lea.sflag [#allocation5], 1
    %14 = vsyncpa %s13, 0
    loop: start=0, step=1, limit=4
    $region2: #{tpu_custom_call.1} parent=1 // loop_pre_header
      _
    $region3: #{tpu_custom_call.1} parent=1 // loop_header
      %s16 = sphi 0, %s20
      %p17 = scmp.ge.s32.totalorder %s16, 4
      %s23 = sphi 0, %s35
      %s24 = sphi 0, %s31
      %s25 = sphi 0, %s23
      %s26 = sphi 0, %s24
      %s27 = sphi 0, %s25
      %s28 = sphi 0, %s26
      %s38 = sphi 0, %s40
      %s41 = sphi 0, %s38
      %s42 = sphi 0, %s41
      %s58 = sphi 0, %s42
      %s62 = sphi 0, %s62
      %s64 = sphi 0, %s62
      %s65 = sphi 0, %s64
      %s79 = sphi 0, %s65
      %s83 = sphi 0, %s83
      %s85 = sphi 0, %s83
      %s86 = sphi 0, %s85
      %s100 = sphi 0, %s86
      %s104 = sphi 0, %s104
      %s106 = sphi 0, %s104
      %s107 = sphi 0, %s106
      %s121 = sphi 0, %s107
      %s125 = sphi 0, %s125
      %s127 = sphi 0, %s125
      %s128 = sphi 0, %s127
      %s142 = sphi 0, %s128
      %s146 = sphi 0, %s146
      %s148 = sphi 0, %s146
      %s149 = sphi 0, %s148
      %s163 = sphi 0, %s149
      %s167 = sphi 0, %s167
      %s169 = sphi 0, %s167
      %s170 = sphi 0, %s169
      %s184 = sphi 0, %s170
      %s192 = sphi 0, %s194
      %s195 = sphi 0, %s192
      %s196 = sphi 0, %s195
      %s212 = sphi 0, %s196
    $region4: #{tpu_custom_call.1} parent=1 // loop_header_branch
      %19 = sbr.rel (%p17) target = $region8
    $region5: #{tpu_custom_call.1} parent=1 // loop_body
      %s21 = ssub.s32 %s16, 1
      %s22 = ssub.s32 %s16, 2
      %s29 = sadd.s32 1, %s24
      %p30 = scmp.ge.s32.totalorder %s29, 1
      %s31 = scalar_select %p30, 0, %s29
      %s32 = sadd.s32 1, %s23
      %s33 = scalar_select %p30, %s32, %s23
      %p34 = scmp.ge.s32.totalorder %s33, 2
      %s35 = scalar_select %p34, 0, %s33
      %s36 = ssub.s32 %s24, %s31
      %p37 = scmp.eq.s32.totalorder %s36, 0
      %s39 = sadd.s32 %s38, 1
      %s40 = scalar_select %p37, %s38, %s39
      %p43 = pneg %p37
      %p44 = scmp.eq.s32.totalorder %s16, 1
      %p45 = por %p43, %p44
      %p46 = scmp.ne.s32.totalorder %s38, %s41
      %p47 = scmp.eq.s32.totalorder %s16, 0
      %p48 = por %p46, %p47
      %p49 = scmp.ne.s32.totalorder %s38, %s41
      %p50 = scmp.eq.s32.totalorder %s21, 1
      %p51 = por %p49, %p50
      %p52 = scmp.ne.s32.totalorder %s41, %s42
      %p53 = scmp.eq.s32.totalorder %s21, 0
      %p54 = por %p52, %p53
      %p55 = scmp.ne.s32.totalorder %s41, %s42
      %p56 = scmp.eq.s32.totalorder %s22, 1
      %p57 = por %p55, %p56
      %p59 = scmp.ne.s32.totalorder %s42, %s58
      %p60 = scmp.eq.s32.totalorder %s22, 0
      %p61 = por %p59, %p60
      %s63 = sadd.s32 %s62, 1
      %p66 = scmp.eq.s32.totalorder %s16, 1
      %p67 = scmp.ne.s32.totalorder %s62, %s64
      %p68 = scmp.eq.s32.totalorder %s16, 0
      %p69 = por %p67, %p68
      %p70 = scmp.ne.s32.totalorder %s62, %s64
      %p71 = scmp.eq.s32.totalorder %s21, 1
      %p72 = por %p70, %p71
      %p73 = scmp.ne.s32.totalorder %s64, %s65
      %p74 = scmp.eq.s32.totalorder %s21, 0
      %p75 = por %p73, %p74
      %p76 = scmp.ne.s32.totalorder %s64, %s65
      %p77 = scmp.eq.s32.totalorder %s22, 1
      %p78 = por %p76, %p77
      %p80 = scmp.ne.s32.totalorder %s65, %s79
      %p81 = scmp.eq.s32.totalorder %s22, 0
      %p82 = por %p80, %p81
      %s84 = sadd.s32 %s83, 1
      %p87 = scmp.eq.s32.totalorder %s16, 1
      %p88 = scmp.ne.s32.totalorder %s83, %s85
      %p89 = scmp.eq.s32.totalorder %s16, 0
      %p90 = por %p88, %p89
      %p91 = scmp.ne.s32.totalorder %s83, %s85
      %p92 = scmp.eq.s32.totalorder %s21, 1
      %p93 = por %p91, %p92
      %p94 = scmp.ne.s32.totalorder %s85, %s86
      %p95 = scmp.eq.s32.totalorder %s21, 0
      %p96 = por %p94, %p95
      %p97 = scmp.ne.s32.totalorder %s85, %s86
      %p98 = scmp.eq.s32.totalorder %s22, 1
      %p99 = por %p97, %p98
      %p101 = scmp.ne.s32.totalorder %s86, %s100
      %p102 = scmp.eq.s32.totalorder %s22, 0
      %p103 = por %p101, %p102
      %s105 = sadd.s32 %s104, 1
      %p108 = scmp.eq.s32.totalorder %s16, 1
      %p109 = scmp.ne.s32.totalorder %s104, %s106
      %p110 = scmp.eq.s32.totalorder %s16, 0
      %p111 = por %p109, %p110
      %p112 = scmp.ne.s32.totalorder %s104, %s106
      %p113 = scmp.eq.s32.totalorder %s21, 1
      %p114 = por %p112, %p113
      %p115 = scmp.ne.s32.totalorder %s106, %s107
      %p116 = scmp.eq.s32.totalorder %s21, 0
      %p117 = por %p115, %p116
      %p118 = scmp.ne.s32.totalorder %s106, %s107
      %p119 = scmp.eq.s32.totalorder %s22, 1
      %p120 = por %p118, %p119
      %p122 = scmp.ne.s32.totalorder %s107, %s121
      %p123 = scmp.eq.s32.totalorder %s22, 0
      %p124 = por %p122, %p123
      %s126 = sadd.s32 %s125, 1
      %p129 = scmp.eq.s32.totalorder %s16, 1
      %p130 = scmp.ne.s32.totalorder %s125, %s127
      %p131 = scmp.eq.s32.totalorder %s16, 0
      %p132 = por %p130, %p131
      %p133 = scmp.ne.s32.totalorder %s125, %s127
      %p134 = scmp.eq.s32.totalorder %s21, 1
      %p135 = por %p133, %p134
      %p136 = scmp.ne.s32.totalorder %s127, %s128
      %p137 = scmp.eq.s32.totalorder %s21, 0
      %p138 = por %p136, %p137
      %p139 = scmp.ne.s32.totalorder %s127, %s128
      %p140 = scmp.eq.s32.totalorder %s22, 1
      %p141 = por %p139, %p140
      %p143 = scmp.ne.s32.totalorder %s128, %s142
      %p144 = scmp.eq.s32.totalorder %s22, 0
      %p145 = por %p143, %p144
      %s147 = sadd.s32 %s146, 1
      %p150 = scmp.eq.s32.totalorder %s16, 1
      %p151 = scmp.ne.s32.totalorder %s146, %s148
      %p152 = scmp.eq.s32.totalorder %s16, 0
      %p153 = por %p151, %p152
      %p154 = scmp.ne.s32.totalorder %s146, %s148
      %p155 = scmp.eq.s32.totalorder %s21, 1
      %p156 = por %p154, %p155
      %p157 = scmp.ne.s32.totalorder %s148, %s149
      %p158 = scmp.eq.s32.totalorder %s21, 0
      %p159 = por %p157, %p158
      %p160 = scmp.ne.s32.totalorder %s148, %s149
      %p161 = scmp.eq.s32.totalorder %s22, 1
      %p162 = por %p160, %p161
      %p164 = scmp.ne.s32.totalorder %s149, %s163
      %p165 = scmp.eq.s32.totalorder %s22, 0
      %p166 = por %p164, %p165
      %s168 = sadd.s32 %s167, 1
      %p171 = scmp.eq.s32.totalorder %s16, 1
      %p172 = scmp.ne.s32.totalorder %s167, %s169
      %p173 = scmp.eq.s32.totalorder %s16, 0
      %p174 = por %p172, %p173
      %p175 = scmp.ne.s32.totalorder %s167, %s169
      %p176 = scmp.eq.s32.totalorder %s21, 1
      %p177 = por %p175, %p176
      %p178 = scmp.ne.s32.totalorder %s169, %s170
      %p179 = scmp.eq.s32.totalorder %s21, 0
      %p180 = por %p178, %p179
      %p181 = scmp.ne.s32.totalorder %s169, %s170
      %p182 = scmp.eq.s32.totalorder %s22, 1
      %p183 = por %p181, %p182
      %p185 = scmp.ne.s32.totalorder %s170, %s184
      %p186 = scmp.eq.s32.totalorder %s22, 0
      %p187 = por %p185, %p186
      %s188 = smul.u32 %s24, %s23
      %s189 = smul.u32 %s31, %s35
      %s190 = ssub.s32 %s188, %s189
      %p191 = scmp.eq.s32.totalorder %s190, 0
      %s193 = sadd.s32 %s192, 1
      %s194 = scalar_select %p191, %s192, %s193
      %p197 = pneg %p191
      %p198 = scmp.eq.s32.totalorder %s16, 1
      %p199 = por %p197, %p198
      %p200 = scmp.ne.s32.totalorder %s192, %s195
      %p201 = scmp.eq.s32.totalorder %s16, 0
      %p202 = por %p200, %p201
      %p203 = scmp.ne.s32.totalorder %s192, %s195
      %p204 = scmp.eq.s32.totalorder %s21, 1
      %p205 = por %p203, %p204
      %p206 = scmp.ne.s32.totalorder %s195, %s196
      %p207 = scmp.eq.s32.totalorder %s21, 0
      %p208 = por %p206, %p207
      %p209 = scmp.ne.s32.totalorder %s195, %s196
      %p210 = scmp.eq.s32.totalorder %s22, 1
      %p211 = por %p209, %p210
      %p213 = scmp.ne.s32.totalorder %s196, %s212
      %p214 = scmp.eq.s32.totalorder %s22, 0
      %p215 = por %p213, %p214
      %p216 = scmp.le.s32.totalorder 1, %s16
      %p217 = scmp.lt.s32.totalorder %s16, 3
      %p218 = pnand %p216, %p217
      %p219 = pneg %p218
      // Predicated region
      $region9: #{tpu_custom_call.1} parent=5 // pred_check
        _
      $region10: #{tpu_custom_call.1} parent=5 // pred_check_branch
        %221 = sbr.rel (%p218) target = $region12
      $region11: #{tpu_custom_call.1} parent=5 // pred_region
        %s222 = ssub.s32 %s16, 1
        // Predicated region
        $region13: #{tpu_custom_call.1} parent=11 // pred_check
          %p223 = pneg %p54
        $region14: #{tpu_custom_call.1} parent=11 // pred_check_branch
          %225 = sbr.rel (%p223) target = $region16
        $region15: #{tpu_custom_call.1} parent=11 // pred_region
          %s226 = smul.u32 16, %s26
          %p227 = scmp.lt.s32.totalorder %s226, 15
          %s228 = scalar_select %p227, %s226, 15
          %s229 = smul.addr %s228, 2
          %s230 = scalar_lea.vmem %s0, %s229
          %s231 = smul.u32 16, %s26
        $region16: #{tpu_custom_call.1} parent=11 // pred_fallthru
          _
        // Predicated region
        $region17: #{tpu_custom_call.1} parent=11 // pred_check
          %p232 = pneg %p75
        $region18: #{tpu_custom_call.1} parent=11 // pred_check_branch
          %234 = sbr.rel (%p232) target = $region20
        $region19: #{tpu_custom_call.1} parent=11 // pred_region
          _
        $region20: #{tpu_custom_call.1} parent=11 // pred_fallthru
          _
        // Predicated region
        $region21: #{tpu_custom_call.1} parent=11 // pred_check
          %p235 = pneg %p96
        $region22: #{tpu_custom_call.1} parent=11 // pred_check_branch
          %237 = sbr.rel (%p235) target = $region24
        $region23: #{tpu_custom_call.1} parent=11 // pred_region
          _
        $region24: #{tpu_custom_call.1} parent=11 // pred_fallthru
          _
        // Predicated region
        $region25: #{tpu_custom_call.1} parent=11 // pred_check
          %p238 = pneg %p117
        $region26: #{tpu_custom_call.1} parent=11 // pred_check_branch
          %240 = sbr.rel (%p238) target = $region28
        $region27: #{tpu_custom_call.1} parent=11 // pred_region
          _
        $region28: #{tpu_custom_call.1} parent=11 // pred_fallthru
          _
        // Predicated region
        $region29: #{tpu_custom_call.1} parent=11 // pred_check
          %p241 = pneg %p138
        $region30: #{tpu_custom_call.1} parent=11 // pred_check_branch
          %243 = sbr.rel (%p241) target = $region32
        $region31: #{tpu_custom_call.1} parent=11 // pred_region
          _
        $region32: #{tpu_custom_call.1} parent=11 // pred_fallthru
          _
        // Predicated region
        $region33: #{tpu_custom_call.1} parent=11 // pred_check
          %p244 = pneg %p159
        $region34: #{tpu_custom_call.1} parent=11 // pred_check_branch
          %246 = sbr.rel (%p244) target = $region36
        $region35: #{tpu_custom_call.1} parent=11 // pred_region
          _
        $region36: #{tpu_custom_call.1} parent=11 // pred_fallthru
          _
        // Predicated region
        $region37: #{tpu_custom_call.1} parent=11 // pred_check
          %p247 = pneg %p180
        $region38: #{tpu_custom_call.1} parent=11 // pred_check_branch
          %249 = sbr.rel (%p247) target = $region40
        $region39: #{tpu_custom_call.1} parent=11 // pred_region
          _
        $region40: #{tpu_custom_call.1} parent=11 // pred_fallthru
          _
      $region12: #{tpu_custom_call.1} parent=5 // pred_fallthru
        _
      %p250 = scmp.lt.s32.totalorder %s16, 2
      // Predicated region
      $region41: #{tpu_custom_call.1} parent=5 // pred_check
        %p251 = pneg %p250
      $region42: #{tpu_custom_call.1} parent=5 // pred_check_branch
        %253 = sbr.rel (%p251) target = $region44
      $region43: #{tpu_custom_call.1} parent=5 // pred_region
        _
      $region44: #{tpu_custom_call.1} parent=5 // pred_fallthru
        _
      %p254 = scmp.le.s32.totalorder 1, %s16
      %p255 = scmp.lt.s32.totalorder %s16, 3
      %p256 = pnand %p254, %p255
      %p257 = pneg %p256
      // Predicated region
      $region45: #{tpu_custom_call.1} parent=5 // pred_check
        _
      $region46: #{tpu_custom_call.1} parent=5 // pred_check_branch
        %259 = sbr.rel (%p256) target = $region48
      $region47: #{tpu_custom_call.1} parent=5 // pred_region
        %s260 = ssub.s32 %s16, 1
        %s261 = smul.u32 16, %s26
        %p262 = scmp.lt.s32.totalorder %s261, 15
        %s263 = scalar_select %p262, %s261, 15
        %s264 = smul.addr %s263, 2
        %s265 = scalar_lea.vmem %s0, %s264
        %p266 = pneg %p54
        %p267 = pneg %p51
        %p268 = pneg %p75
        %p269 = pneg %p72
        %p270 = pneg %p96
        %p271 = pneg %p93
        %p272 = pneg %p117
        %p273 = pneg %p114
        %p274 = pneg %p138
        %p275 = pneg %p135
        %p276 = pneg %p159
        %p277 = pneg %p156
        %p278 = pneg %p180
        %p279 = pneg %p177
        %p280 = pneg %p208
        %p281 = pneg %p205
        %s282 = sand.u32 %s195, 1
        %s283 = scalar_lea.sflag [#allocation5], %s282
        %s284 = sand.u32 %s195, 1
        %s285 = smul.addr %s284, 16
        %s286 = scalar_lea.vmem [#allocation4], %s285
        %s287 = smul.u32 16, %s26
        %p288 = scmp.lt.s32.totalorder %s287, 15
        %s289 = scalar_select %p288, %s287, 15
        %s290 = smul.addr %s289, 2
        %s291 = scalar_lea.vmem %s0, %s290
        %s292 = smul.u32 16, %s26
        %s293 = smul.u32 %s26, %s25
        %s294 = smul.u32 16, %s293
        %v296 = vld [vmem:[%s291] sm:$0xff]
        %v297 = vld [vmem:[%s291 + $0x8] sm:$0xff]
        %v298 = vld [vmem:[%s291 + $0x10] sm:$0xff]
        %v299 = vld [vmem:[%s291 + $0x18] sm:$0xff]
        %v300 = vld [vmem:[%s1] sm:$0xff]
        %v301 = vld [vmem:[%s1 + $0x8] sm:$0xff]
        %v302 = vld [vmem:[%s1 + $0x10] sm:$0xff]
        %v303 = vld [vmem:[%s1 + $0x18] sm:$0xff]
        %v304 = vld [vmem:[%s1 + $0x20] sm:$0xff]
        %v305 = vld [vmem:[%s1 + $0x28] sm:$0xff]
        %v306 = vld [vmem:[%s1 + $0x30] sm:$0xff]
        %v307 = vld [vmem:[%s1 + $0x38] sm:$0xff]
        %309 = vset.pattern.permute.xlu0 0
        %310 = vperm.xlu0 %309, %v300
        %v311 = vpop.permute.xlu0 %310
        %314 = vset.pattern.permute.xlu0 0
        %315 = vperm.xlu0 %314, %v301
        %v316 = vpop.permute.xlu0 %315
        %319 = vset.pattern.permute.xlu0 0
        %320 = vperm.xlu0 %319, %v302
        %v321 = vpop.permute.xlu0 %320
        %324 = vset.pattern.permute.xlu0 0
        %325 = vperm.xlu0 %324, %v303
        %v326 = vpop.permute.xlu0 %325
        %329 = vset.pattern.permute.xlu0 0
        %330 = vperm.xlu0 %329, %v304
        %v331 = vpop.permute.xlu0 %330
        %334 = vset.pattern.permute.xlu0 0
        %335 = vperm.xlu0 %334, %v305
        %v336 = vpop.permute.xlu0 %335
        %339 = vset.pattern.permute.xlu0 0
        %340 = vperm.xlu0 %339, %v306
        %v341 = vpop.permute.xlu0 %340
        %344 = vset.pattern.permute.xlu0 0
        %345 = vperm.xlu0 %344, %v307
        %v346 = vpop.permute.xlu0 %345
        %v352 = vperm.slane %v296, 0
        %v353 = vperm.slane %v296, 2
        %v354 = vperm.slane %v296, 4
        %v355 = vperm.slane %v296, 6
        %v356 = vperm.slane %v297, 0
        %v357 = vperm.slane %v297, 2
        %v358 = vperm.slane %v297, 4
        %v359 = vperm.slane %v297, 6
        %v360 = vperm.slane %v298, 0
        %v361 = vperm.slane %v298, 2
        %v362 = vperm.slane %v298, 4
        %v363 = vperm.slane %v298, 6
        %v364 = vperm.slane %v299, 0
        %v365 = vperm.slane %v299, 2
        %v366 = vperm.slane %v299, 4
        %v367 = vperm.slane %v299, 6
        %v384 = vperm.slane %v352, 0
        %v385 = vperm.slane %v353, 0
        %v386 = vperm.slane %v354, 0
        %v387 = vperm.slane %v355, 0
        %v388 = vperm.slane %v356, 0
        %v389 = vperm.slane %v357, 0
        %v390 = vperm.slane %v358, 0
        %v391 = vperm.slane %v359, 0
        %v392 = vperm.slane %v360, 0
        %v393 = vperm.slane %v361, 0
        %v394 = vperm.slane %v362, 0
        %v395 = vperm.slane %v363, 0
        %v396 = vperm.slane %v364, 0
        %v397 = vperm.slane %v365, 0
        %v398 = vperm.slane %v366, 0
        %v399 = vperm.slane %v367, 0
        %v400 = vmul.f32 %v311, %v384
        %v401 = vmul.f32 %v311, %v385
        %v402 = vmul.f32 %v311, %v386
        %v403 = vmul.f32 %v311, %v387
        %v404 = vmul.f32 %v311, %v388
        %v405 = vmul.f32 %v311, %v389
        %v406 = vmul.f32 %v311, %v390
        %v407 = vmul.f32 %v311, %v391
        %v408 = vmul.f32 %v311, %v392
        %v409 = vmul.f32 %v311, %v393
        %v410 = vmul.f32 %v311, %v394
        %v411 = vmul.f32 %v311, %v395
        %v412 = vmul.f32 %v311, %v396
        %v413 = vmul.f32 %v311, %v397
        %v414 = vmul.f32 %v311, %v398
        %v415 = vmul.f32 %v311, %v399
        %v416 = vmul.f32 %v316, %v384
        %v417 = vmul.f32 %v316, %v385
        %v418 = vmul.f32 %v316, %v386
        %v419 = vmul.f32 %v316, %v387
        %v420 = vmul.f32 %v316, %v388
        %v421 = vmul.f32 %v316, %v389
        %v422 = vmul.f32 %v316, %v390
        %v423 = vmul.f32 %v316, %v391
        %v424 = vmul.f32 %v316, %v392
        %v425 = vmul.f32 %v316, %v393
        %v426 = vmul.f32 %v316, %v394
        %v427 = vmul.f32 %v316, %v395
        %v428 = vmul.f32 %v316, %v396
        %v429 = vmul.f32 %v316, %v397
        %v430 = vmul.f32 %v316, %v398
        %v431 = vmul.f32 %v316, %v399
        %v432 = vmul.f32 %v321, %v384
        %v433 = vmul.f32 %v321, %v385
        %v434 = vmul.f32 %v321, %v386
        %v435 = vmul.f32 %v321, %v387
        %v436 = vmul.f32 %v321, %v388
        %v437 = vmul.f32 %v321, %v389
        %v438 = vmul.f32 %v321, %v390
        %v439 = vmul.f32 %v321, %v391
        %v440 = vmul.f32 %v321, %v392
        %v441 = vmul.f32 %v321, %v393
        %v442 = vmul.f32 %v321, %v394
        %v443 = vmul.f32 %v321, %v395
        %v444 = vmul.f32 %v321, %v396
        %v445 = vmul.f32 %v321, %v397
        %v446 = vmul.f32 %v321, %v398
        %v447 = vmul.f32 %v321, %v399
        %v448 = vmul.f32 %v326, %v384
        %v449 = vmul.f32 %v326, %v385
        %v450 = vmul.f32 %v326, %v386
        %v451 = vmul.f32 %v326, %v387
        %v452 = vmul.f32 %v326, %v388
        %v453 = vmul.f32 %v326, %v389
        %v454 = vmul.f32 %v326, %v390
        %v455 = vmul.f32 %v326, %v391
        %v456 = vmul.f32 %v326, %v392
        %v457 = vmul.f32 %v326, %v393
        %v458 = vmul.f32 %v326, %v394
        %v459 = vmul.f32 %v326, %v395
        %v460 = vmul.f32 %v326, %v396
        %v461 = vmul.f32 %v326, %v397
        %v462 = vmul.f32 %v326, %v398
        %v463 = vmul.f32 %v326, %v399
        %v464 = vmul.f32 %v331, %v384
        %v465 = vmul.f32 %v331, %v385
        %v466 = vmul.f32 %v331, %v386
        %v467 = vmul.f32 %v331, %v387
        %v468 = vmul.f32 %v331, %v388
        %v469 = vmul.f32 %v331, %v389
        %v470 = vmul.f32 %v331, %v390
        %v471 = vmul.f32 %v331, %v391
        %v472 = vmul.f32 %v331, %v392
        %v473 = vmul.f32 %v331, %v393
        %v474 = vmul.f32 %v331, %v394
        %v475 = vmul.f32 %v331, %v395
        %v476 = vmul.f32 %v331, %v396
        %v477 = vmul.f32 %v331, %v397
        %v478 = vmul.f32 %v331, %v398
        %v479 = vmul.f32 %v331, %v399
        %v480 = vmul.f32 %v336, %v384
        %v481 = vmul.f32 %v336, %v385
        %v482 = vmul.f32 %v336, %v386
        %v483 = vmul.f32 %v336, %v387
        %v484 = vmul.f32 %v336, %v388
        %v485 = vmul.f32 %v336, %v389
        %v486 = vmul.f32 %v336, %v390
        %v487 = vmul.f32 %v336, %v391
        %v488 = vmul.f32 %v336, %v392
        %v489 = vmul.f32 %v336, %v393
        %v490 = vmul.f32 %v336, %v394
        %v491 = vmul.f32 %v336, %v395
        %v492 = vmul.f32 %v336, %v396
        %v493 = vmul.f32 %v336, %v397
        %v494 = vmul.f32 %v336, %v398
        %v495 = vmul.f32 %v336, %v399
        %v496 = vmul.f32 %v341, %v384
        %v497 = vmul.f32 %v341, %v385
        %v498 = vmul.f32 %v341, %v386
        %v499 = vmul.f32 %v341, %v387
        %v500 = vmul.f32 %v341, %v388
        %v501 = vmul.f32 %v341, %v389
        %v502 = vmul.f32 %v341, %v390
        %v503 = vmul.f32 %v341, %v391
        %v504 = vmul.f32 %v341, %v392
        %v505 = vmul.f32 %v341, %v393
        %v506 = vmul.f32 %v341, %v394
        %v507 = vmul.f32 %v341, %v395
        %v508 = vmul.f32 %v341, %v396
        %v509 = vmul.f32 %v341, %v397
        %v510 = vmul.f32 %v341, %v398
        %v511 = vmul.f32 %v341, %v399
        %v512 = vmul.f32 %v346, %v384
        %v513 = vmul.f32 %v346, %v385
        %v514 = vmul.f32 %v346, %v386
        %v515 = vmul.f32 %v346, %v387
        %v516 = vmul.f32 %v346, %v388
        %v517 = vmul.f32 %v346, %v389
        %v518 = vmul.f32 %v346, %v390
        %v519 = vmul.f32 %v346, %v391
        %v520 = vmul.f32 %v346, %v392
        %v521 = vmul.f32 %v346, %v393
        %v522 = vmul.f32 %v346, %v394
        %v523 = vmul.f32 %v346, %v395
        %v524 = vmul.f32 %v346, %v396
        %v525 = vmul.f32 %v346, %v397
        %v526 = vmul.f32 %v346, %v398
        %v527 = vmul.f32 %v346, %v399
        %528 = vset.pattern.permute.xlu0 1
        %529 = vperm.xlu0 %528, %v300
        %v530 = vpop.permute.xlu0 %529
        %532 = vset.pattern.permute.xlu0 1
        %533 = vperm.xlu0 %532, %v301
        %v534 = vpop.permute.xlu0 %533
        %536 = vset.pattern.permute.xlu0 1
        %537 = vperm.xlu0 %536, %v302
        %v538 = vpop.permute.xlu0 %537
        %540 = vset.pattern.permute.xlu0 1
        %541 = vperm.xlu0 %540, %v303
        %v542 = vpop.permute.xlu0 %541
        %544 = vset.pattern.permute.xlu0 1
        %545 = vperm.xlu0 %544, %v304
        %v546 = vpop.permute.xlu0 %545
        %548 = vset.pattern.permute.xlu0 1
        %549 = vperm.xlu0 %548, %v305
        %v550 = vpop.permute.xlu0 %549
        %552 = vset.pattern.permute.xlu0 1
        %553 = vperm.xlu0 %552, %v306
        %v554 = vpop.permute.xlu0 %553
        %556 = vset.pattern.permute.xlu0 1
        %557 = vperm.xlu0 %556, %v307
        %v558 = vpop.permute.xlu0 %557
        %v560 = vperm.slane %v296, 1
        %v561 = vperm.slane %v296, 3
        %v562 = vperm.slane %v296, 5
        %v563 = vperm.slane %v296, 7
        %v564 = vperm.slane %v297, 1
        %v565 = vperm.slane %v297, 3
        %v566 = vperm.slane %v297, 5
        %v567 = vperm.slane %v297, 7
        %v568 = vperm.slane %v298, 1
        %v569 = vperm.slane %v298, 3
        %v570 = vperm.slane %v298, 5
        %v571 = vperm.slane %v298, 7
        %v572 = vperm.slane %v299, 1
        %v573 = vperm.slane %v299, 3
        %v574 = vperm.slane %v299, 5
        %v575 = vperm.slane %v299, 7
        %v592 = vperm.slane %v560, 1
        %v593 = vperm.slane %v561, 1
        %v594 = vperm.slane %v562, 1
        %v595 = vperm.slane %v563, 1
        %v596 = vperm.slane %v564, 1
        %v597 = vperm.slane %v565, 1
        %v598 = vperm.slane %v566, 1
        %v599 = vperm.slane %v567, 1
        %v600 = vperm.slane %v568, 1
        %v601 = vperm.slane %v569, 1
        %v602 = vperm.slane %v570, 1
        %v603 = vperm.slane %v571, 1
        %v604 = vperm.slane %v572, 1
        %v605 = vperm.slane %v573, 1
        %v606 = vperm.slane %v574, 1
        %v607 = vperm.slane %v575, 1
        %v608 = vmul.f32 %v530, %v592
        %v609 = vmul.f32 %v530, %v593
        %v610 = vmul.f32 %v530, %v594
        %v611 = vmul.f32 %v530, %v595
        %v612 = vmul.f32 %v530, %v596
        %v613 = vmul.f32 %v530, %v597
        %v614 = vmul.f32 %v530, %v598
        %v615 = vmul.f32 %v530, %v599
        %v616 = vmul.f32 %v530, %v600
        %v617 = vmul.f32 %v530, %v601
        %v618 = vmul.f32 %v530, %v602
        %v619 = vmul.f32 %v530, %v603
        %v620 = vmul.f32 %v530, %v604
        %v621 = vmul.f32 %v530, %v605
        %v622 = vmul.f32 %v530, %v606
        %v623 = vmul.f32 %v530, %v607
        %v624 = vmul.f32 %v534, %v592
        %v625 = vmul.f32 %v534, %v593
        %v626 = vmul.f32 %v534, %v594
        %v627 = vmul.f32 %v534, %v595
        %v628 = vmul.f32 %v534, %v596
        %v629 = vmul.f32 %v534, %v597
        %v630 = vmul.f32 %v534, %v598
        %v631 = vmul.f32 %v534, %v599
        %v632 = vmul.f32 %v534, %v600
        %v633 = vmul.f32 %v534, %v601
        %v634 = vmul.f32 %v534, %v602
        %v635 = vmul.f32 %v534, %v603
        %v636 = vmul.f32 %v534, %v604
        %v637 = vmul.f32 %v534, %v605
        %v638 = vmul.f32 %v534, %v606
        %v639 = vmul.f32 %v534, %v607
        %v640 = vmul.f32 %v538, %v592
        %v641 = vmul.f32 %v538, %v593
        %v642 = vmul.f32 %v538, %v594
        %v643 = vmul.f32 %v538, %v595
        %v644 = vmul.f32 %v538, %v596
        %v645 = vmul.f32 %v538, %v597
        %v646 = vmul.f32 %v538, %v598
        %v647 = vmul.f32 %v538, %v599
        %v648 = vmul.f32 %v538, %v600
        %v649 = vmul.f32 %v538, %v601
        %v650 = vmul.f32 %v538, %v602
        %v651 = vmul.f32 %v538, %v603
        %v652 = vmul.f32 %v538, %v604
        %v653 = vmul.f32 %v538, %v605
        %v654 = vmul.f32 %v538, %v606
        %v655 = vmul.f32 %v538, %v607
        %v656 = vmul.f32 %v542, %v592
        %v657 = vmul.f32 %v542, %v593
        %v658 = vmul.f32 %v542, %v594
        %v659 = vmul.f32 %v542, %v595
        %v660 = vmul.f32 %v542, %v596
        %v661 = vmul.f32 %v542, %v597
        %v662 = vmul.f32 %v542, %v598
        %v663 = vmul.f32 %v542, %v599
        %v664 = vmul.f32 %v542, %v600
        %v665 = vmul.f32 %v542, %v601
        %v666 = vmul.f32 %v542, %v602
        %v667 = vmul.f32 %v542, %v603
        %v668 = vmul.f32 %v542, %v604
        %v669 = vmul.f32 %v542, %v605
        %v670 = vmul.f32 %v542, %v606
        %v671 = vmul.f32 %v542, %v607
        %v672 = vmul.f32 %v546, %v592
        %v673 = vmul.f32 %v546, %v593
        %v674 = vmul.f32 %v546, %v594
        %v675 = vmul.f32 %v546, %v595
        %v676 = vmul.f32 %v546, %v596
        %v677 = vmul.f32 %v546, %v597
        %v678 = vmul.f32 %v546, %v598
        %v679 = vmul.f32 %v546, %v599
        %v680 = vmul.f32 %v546, %v600
        %v681 = vmul.f32 %v546, %v601
        %v682 = vmul.f32 %v546, %v602
        %v683 = vmul.f32 %v546, %v603
        %v684 = vmul.f32 %v546, %v604
        %v685 = vmul.f32 %v546, %v605
        %v686 = vmul.f32 %v546, %v606
        %v687 = vmul.f32 %v546, %v607
        %v688 = vmul.f32 %v550, %v592
        %v689 = vmul.f32 %v550, %v593
        %v690 = vmul.f32 %v550, %v594
        %v691 = vmul.f32 %v550, %v595
        %v692 = vmul.f32 %v550, %v596
        %v693 = vmul.f32 %v550, %v597
        %v694 = vmul.f32 %v550, %v598
        %v695 = vmul.f32 %v550, %v599
        %v696 = vmul.f32 %v550, %v600
        %v697 = vmul.f32 %v550, %v601
        %v698 = vmul.f32 %v550, %v602
        %v699 = vmul.f32 %v550, %v603
        %v700 = vmul.f32 %v550, %v604
        %v701 = vmul.f32 %v550, %v605
        %v702 = vmul.f32 %v550, %v606
        %v703 = vmul.f32 %v550, %v607
        %v704 = vmul.f32 %v554, %v592
        %v705 = vmul.f32 %v554, %v593
        %v706 = vmul.f32 %v554, %v594
        %v707 = vmul.f32 %v554, %v595
        %v708 = vmul.f32 %v554, %v596
        %v709 = vmul.f32 %v554, %v597
        %v710 = vmul.f32 %v554, %v598
        %v711 = vmul.f32 %v554, %v599
        %v712 = vmul.f32 %v554, %v600
        %v713 = vmul.f32 %v554, %v601
        %v714 = vmul.f32 %v554, %v602
        %v715 = vmul.f32 %v554, %v603
        %v716 = vmul.f32 %v554, %v604
        %v717 = vmul.f32 %v554, %v605
        %v718 = vmul.f32 %v554, %v606
        %v719 = vmul.f32 %v554, %v607
        %v720 = vmul.f32 %v558, %v592
        %v721 = vmul.f32 %v558, %v593
        %v722 = vmul.f32 %v558, %v594
        %v723 = vmul.f32 %v558, %v595
        %v724 = vmul.f32 %v558, %v596
        %v725 = vmul.f32 %v558, %v597
        %v726 = vmul.f32 %v558, %v598
        %v727 = vmul.f32 %v558, %v599
        %v728 = vmul.f32 %v558, %v600
        %v729 = vmul.f32 %v558, %v601
        %v730 = vmul.f32 %v558, %v602
        %v731 = vmul.f32 %v558, %v603
        %v732 = vmul.f32 %v558, %v604
        %v733 = vmul.f32 %v558, %v605
        %v734 = vmul.f32 %v558, %v606
        %v735 = vmul.f32 %v558, %v607
        %v736 = vadd.f32 %v400, %v608
        %v737 = vadd.f32 %v401, %v609
        %v738 = vadd.f32 %v402, %v610
        %v739 = vadd.f32 %v403, %v611
        %v740 = vadd.f32 %v404, %v612
        %v741 = vadd.f32 %v405, %v613
        %v742 = vadd.f32 %v406, %v614
        %v743 = vadd.f32 %v407, %v615
        %v744 = vadd.f32 %v408, %v616
        %v745 = vadd.f32 %v409, %v617
        %v746 = vadd.f32 %v410, %v618
        %v747 = vadd.f32 %v411, %v619
        %v748 = vadd.f32 %v412, %v620
        %v749 = vadd.f32 %v413, %v621
        %v750 = vadd.f32 %v414, %v622
        %v751 = vadd.f32 %v415, %v623
        %v752 = vadd.f32 %v416, %v624
        %v753 = vadd.f32 %v417, %v625
        %v754 = vadd.f32 %v418, %v626
        %v755 = vadd.f32 %v419, %v627
        %v756 = vadd.f32 %v420, %v628
        %v757 = vadd.f32 %v421, %v629
        %v758 = vadd.f32 %v422, %v630
        %v759 = vadd.f32 %v423, %v631
        %v760 = vadd.f32 %v424, %v632
        %v761 = vadd.f32 %v425, %v633
        %v762 = vadd.f32 %v426, %v634
        %v763 = vadd.f32 %v427, %v635
        %v764 = vadd.f32 %v428, %v636
        %v765 = vadd.f32 %v429, %v637
        %v766 = vadd.f32 %v430, %v638
        %v767 = vadd.f32 %v431, %v639
        %v768 = vadd.f32 %v432, %v640
        %v769 = vadd.f32 %v433, %v641
        %v770 = vadd.f32 %v434, %v642
        %v771 = vadd.f32 %v435, %v643
        %v772 = vadd.f32 %v436, %v644
        %v773 = vadd.f32 %v437, %v645
        %v774 = vadd.f32 %v438, %v646
        %v775 = vadd.f32 %v439, %v647
        %v776 = vadd.f32 %v440, %v648
        %v777 = vadd.f32 %v441, %v649
        %v778 = vadd.f32 %v442, %v650
        %v779 = vadd.f32 %v443, %v651
        %v780 = vadd.f32 %v444, %v652
        %v781 = vadd.f32 %v445, %v653
        %v782 = vadd.f32 %v446, %v654
        %v783 = vadd.f32 %v447, %v655
        %v784 = vadd.f32 %v448, %v656
        %v785 = vadd.f32 %v449, %v657
        %v786 = vadd.f32 %v450, %v658
        %v787 = vadd.f32 %v451, %v659
        %v788 = vadd.f32 %v452, %v660
        %v789 = vadd.f32 %v453, %v661
        %v790 = vadd.f32 %v454, %v662
        %v791 = vadd.f32 %v455, %v663
        %v792 = vadd.f32 %v456, %v664
        %v793 = vadd.f32 %v457, %v665
        %v794 = vadd.f32 %v458, %v666
        %v795 = vadd.f32 %v459, %v667
        %v796 = vadd.f32 %v460, %v668
        %v797 = vadd.f32 %v461, %v669
        %v798 = vadd.f32 %v462, %v670
        %v799 = vadd.f32 %v463, %v671
        %v800 = vadd.f32 %v464, %v672
        %v801 = vadd.f32 %v465, %v673
        %v802 = vadd.f32 %v466, %v674
        %v803 = vadd.f32 %v467, %v675
        %v804 = vadd.f32 %v468, %v676
        %v805 = vadd.f32 %v469, %v677
        %v806 = vadd.f32 %v470, %v678
        %v807 = vadd.f32 %v471, %v679
        %v808 = vadd.f32 %v472, %v680
        %v809 = vadd.f32 %v473, %v681
        %v810 = vadd.f32 %v474, %v682
        %v811 = vadd.f32 %v475, %v683
        %v812 = vadd.f32 %v476, %v684
        %v813 = vadd.f32 %v477, %v685
        %v814 = vadd.f32 %v478, %v686
        %v815 = vadd.f32 %v479, %v687
        %v816 = vadd.f32 %v480, %v688
        %v817 = vadd.f32 %v481, %v689
        %v818 = vadd.f32 %v482, %v690
        %v819 = vadd.f32 %v483, %v691
        %v820 = vadd.f32 %v484, %v692
        %v821 = vadd.f32 %v485, %v693
        %v822 = vadd.f32 %v486, %v694
        %v823 = vadd.f32 %v487, %v695
        %v824 = vadd.f32 %v488, %v696
        %v825 = vadd.f32 %v489, %v697
        %v826 = vadd.f32 %v490, %v698
        %v827 = vadd.f32 %v491, %v699
        %v828 = vadd.f32 %v492, %v700
        %v829 = vadd.f32 %v493, %v701
        %v830 = vadd.f32 %v494, %v702
        %v831 = vadd.f32 %v495, %v703
        %v832 = vadd.f32 %v496, %v704
        %v833 = vadd.f32 %v497, %v705
        %v834 = vadd.f32 %v498, %v706
        %v835 = vadd.f32 %v499, %v707
        %v836 = vadd.f32 %v500, %v708
        %v837 = vadd.f32 %v501, %v709
        %v838 = vadd.f32 %v502, %v710
        %v839 = vadd.f32 %v503, %v711
        %v840 = vadd.f32 %v504, %v712
        %v841 = vadd.f32 %v505, %v713
        %v842 = vadd.f32 %v506, %v714
        %v843 = vadd.f32 %v507, %v715
        %v844 = vadd.f32 %v508, %v716
        %v845 = vadd.f32 %v509, %v717
        %v846 = vadd.f32 %v510, %v718
        %v847 = vadd.f32 %v511, %v719
        %v848 = vadd.f32 %v512, %v720
        %v849 = vadd.f32 %v513, %v721
        %v850 = vadd.f32 %v514, %v722
        %v851 = vadd.f32 %v515, %v723
        %v852 = vadd.f32 %v516, %v724
        %v853 = vadd.f32 %v517, %v725
        %v854 = vadd.f32 %v518, %v726
        %v855 = vadd.f32 %v519, %v727
        %v856 = vadd.f32 %v520, %v728
        %v857 = vadd.f32 %v521, %v729
        %v858 = vadd.f32 %v522, %v730
        %v859 = vadd.f32 %v523, %v731
        %v860 = vadd.f32 %v524, %v732
        %v861 = vadd.f32 %v525, %v733
        %v862 = vadd.f32 %v526, %v734
        %v863 = vadd.f32 %v527, %v735
        %v864 = vld [vmem:[%s2] sm:$0xff]
        %v865 = vld [vmem:[%s2 + $0x8] sm:$0xff]
        %v866 = vld [vmem:[%s2 + $0x10] sm:$0xff]
        %v867 = vld [vmem:[%s2 + $0x18] sm:$0xff]
        %v868 = vld [vmem:[%s2 + $0x20] sm:$0xff]
        %v869 = vld [vmem:[%s2 + $0x28] sm:$0xff]
        %v870 = vld [vmem:[%s2 + $0x30] sm:$0xff]
        %v871 = vld [vmem:[%s2 + $0x38] sm:$0xff]
        %873 = vset.pattern.permute.xlu0 0
        %874 = vperm.xlu0 %873, %v864
        %v875 = vpop.permute.xlu0 %874
        %878 = vset.pattern.permute.xlu0 0
        %879 = vperm.xlu0 %878, %v865
        %v880 = vpop.permute.xlu0 %879
        %883 = vset.pattern.permute.xlu0 0
        %884 = vperm.xlu0 %883, %v866
        %v885 = vpop.permute.xlu0 %884
        %888 = vset.pattern.permute.xlu0 0
        %889 = vperm.xlu0 %888, %v867
        %v890 = vpop.permute.xlu0 %889
        %893 = vset.pattern.permute.xlu0 0
        %894 = vperm.xlu0 %893, %v868
        %v895 = vpop.permute.xlu0 %894
        %898 = vset.pattern.permute.xlu0 0
        %899 = vperm.xlu0 %898, %v869
        %v900 = vpop.permute.xlu0 %899
        %903 = vset.pattern.permute.xlu0 0
        %904 = vperm.xlu0 %903, %v870
        %v905 = vpop.permute.xlu0 %904
        %908 = vset.pattern.permute.xlu0 0
        %909 = vperm.xlu0 %908, %v871
        %v910 = vpop.permute.xlu0 %909
        %v912 = vadd.f32 %v736, %v875
        %v913 = vadd.f32 %v737, %v875
        %v914 = vadd.f32 %v738, %v875
        %v915 = vadd.f32 %v739, %v875
        %v916 = vadd.f32 %v740, %v875
        %v917 = vadd.f32 %v741, %v875
        %v918 = vadd.f32 %v742, %v875
        %v919 = vadd.f32 %v743, %v875
        %v920 = vadd.f32 %v744, %v875
        %v921 = vadd.f32 %v745, %v875
        %v922 = vadd.f32 %v746, %v875
        %v923 = vadd.f32 %v747, %v875
        %v924 = vadd.f32 %v748, %v875
        %v925 = vadd.f32 %v749, %v875
        %v926 = vadd.f32 %v750, %v875
        %v927 = vadd.f32 %v751, %v875
        %v928 = vadd.f32 %v752, %v880
        %v929 = vadd.f32 %v753, %v880
        %v930 = vadd.f32 %v754, %v880
        %v931 = vadd.f32 %v755, %v880
        %v932 = vadd.f32 %v756, %v880
        %v933 = vadd.f32 %v757, %v880
        %v934 = vadd.f32 %v758, %v880
        %v935 = vadd.f32 %v759, %v880
        %v936 = vadd.f32 %v760, %v880
        %v937 = vadd.f32 %v761, %v880
        %v938 = vadd.f32 %v762, %v880
        %v939 = vadd.f32 %v763, %v880
        %v940 = vadd.f32 %v764, %v880
        %v941 = vadd.f32 %v765, %v880
        %v942 = vadd.f32 %v766, %v880
        %v943 = vadd.f32 %v767, %v880
        %v944 = vadd.f32 %v768, %v885
        %v945 = vadd.f32 %v769, %v885
        %v946 = vadd.f32 %v770, %v885
        %v947 = vadd.f32 %v771, %v885
        %v948 = vadd.f32 %v772, %v885
        %v949 = vadd.f32 %v773, %v885
        %v950 = vadd.f32 %v774, %v885
        %v951 = vadd.f32 %v775, %v885
        %v952 = vadd.f32 %v776, %v885
        %v953 = vadd.f32 %v777, %v885
        %v954 = vadd.f32 %v778, %v885
        %v955 = vadd.f32 %v779, %v885
        %v956 = vadd.f32 %v780, %v885
        %v957 = vadd.f32 %v781, %v885
        %v958 = vadd.f32 %v782, %v885
        %v959 = vadd.f32 %v783, %v885
        %v960 = vadd.f32 %v784, %v890
        %v961 = vadd.f32 %v785, %v890
        %v962 = vadd.f32 %v786, %v890
        %v963 = vadd.f32 %v787, %v890
        %v964 = vadd.f32 %v788, %v890
        %v965 = vadd.f32 %v789, %v890
        %v966 = vadd.f32 %v790, %v890
        %v967 = vadd.f32 %v791, %v890
        %v968 = vadd.f32 %v792, %v890
        %v969 = vadd.f32 %v793, %v890
        %v970 = vadd.f32 %v794, %v890
        %v971 = vadd.f32 %v795, %v890
        %v972 = vadd.f32 %v796, %v890
        %v973 = vadd.f32 %v797, %v890
        %v974 = vadd.f32 %v798, %v890
        %v975 = vadd.f32 %v799, %v890
        %v976 = vadd.f32 %v800, %v895
        %v977 = vadd.f32 %v801, %v895
        %v978 = vadd.f32 %v802, %v895
        %v979 = vadd.f32 %v803, %v895
        %v980 = vadd.f32 %v804, %v895
        %v981 = vadd.f32 %v805, %v895
        %v982 = vadd.f32 %v806, %v895
        %v983 = vadd.f32 %v807, %v895
        %v984 = vadd.f32 %v808, %v895
        %v985 = vadd.f32 %v809, %v895
        %v986 = vadd.f32 %v810, %v895
        %v987 = vadd.f32 %v811, %v895
        %v988 = vadd.f32 %v812, %v895
        %v989 = vadd.f32 %v813, %v895
        %v990 = vadd.f32 %v814, %v895
        %v991 = vadd.f32 %v815, %v895
        %v992 = vadd.f32 %v816, %v900
        %v993 = vadd.f32 %v817, %v900
        %v994 = vadd.f32 %v818, %v900
        %v995 = vadd.f32 %v819, %v900
        %v996 = vadd.f32 %v820, %v900
        %v997 = vadd.f32 %v821, %v900
        %v998 = vadd.f32 %v822, %v900
        %v999 = vadd.f32 %v823, %v900
        %v1000 = vadd.f32 %v824, %v900
        %v1001 = vadd.f32 %v825, %v900
        %v1002 = vadd.f32 %v826, %v900
        %v1003 = vadd.f32 %v827, %v900
        %v1004 = vadd.f32 %v828, %v900
        %v1005 = vadd.f32 %v829, %v900
        %v1006 = vadd.f32 %v830, %v900
        %v1007 = vadd.f32 %v831, %v900
        %v1008 = vadd.f32 %v832, %v905
        %v1009 = vadd.f32 %v833, %v905
        %v1010 = vadd.f32 %v834, %v905
        %v1011 = vadd.f32 %v835, %v905
        %v1012 = vadd.f32 %v836, %v905
        %v1013 = vadd.f32 %v837, %v905
        %v1014 = vadd.f32 %v838, %v905
        %v1015 = vadd.f32 %v839, %v905
        %v1016 = vadd.f32 %v840, %v905
        %v1017 = vadd.f32 %v841, %v905
        %v1018 = vadd.f32 %v842, %v905
        %v1019 = vadd.f32 %v843, %v905
        %v1020 = vadd.f32 %v844, %v905
        %v1021 = vadd.f32 %v845, %v905
        %v1022 = vadd.f32 %v846, %v905
        %v1023 = vadd.f32 %v847, %v905
        %v1024 = vadd.f32 %v848, %v910
        %v1025 = vadd.f32 %v849, %v910
        %v1026 = vadd.f32 %v850, %v910
        %v1027 = vadd.f32 %v851, %v910
        %v1028 = vadd.f32 %v852, %v910
        %v1029 = vadd.f32 %v853, %v910
        %v1030 = vadd.f32 %v854, %v910
        %v1031 = vadd.f32 %v855, %v910
        %v1032 = vadd.f32 %v856, %v910
        %v1033 = vadd.f32 %v857, %v910
        %v1034 = vadd.f32 %v858, %v910
        %v1035 = vadd.f32 %v859, %v910
        %v1036 = vadd.f32 %v860, %v910
        %v1037 = vadd.f32 %v861, %v910
        %v1038 = vadd.f32 %v862, %v910
        %v1039 = vadd.f32 %v863, %v910
        %vm1040 = vcmp.ge.f32.partialorder %v912, 0.0
        %vm1041 = vcmp.ge.f32.partialorder %v913, 0.0
        %vm1042 = vcmp.ge.f32.partialorder %v914, 0.0
        %vm1043 = vcmp.ge.f32.partialorder %v915, 0.0
        %vm1044 = vcmp.ge.f32.partialorder %v916, 0.0
        %vm1045 = vcmp.ge.f32.partialorder %v917, 0.0
        %vm1046 = vcmp.ge.f32.partialorder %v918, 0.0
        %vm1047 = vcmp.ge.f32.partialorder %v919, 0.0
        %vm1048 = vcmp.ge.f32.partialorder %v920, 0.0
        %vm1049 = vcmp.ge.f32.partialorder %v921, 0.0
        %vm1050 = vcmp.ge.f32.partialorder %v922, 0.0
        %vm1051 = vcmp.ge.f32.partialorder %v923, 0.0
        %vm1052 = vcmp.ge.f32.partialorder %v924, 0.0
        %vm1053 = vcmp.ge.f32.partialorder %v925, 0.0
        %vm1054 = vcmp.ge.f32.partialorder %v926, 0.0
        %vm1055 = vcmp.ge.f32.partialorder %v927, 0.0
        %vm1056 = vcmp.ge.f32.partialorder %v928, 0.0
        %vm1057 = vcmp.ge.f32.partialorder %v929, 0.0
        %vm1058 = vcmp.ge.f32.partialorder %v930, 0.0
        %vm1059 = vcmp.ge.f32.partialorder %v931, 0.0
        %vm1060 = vcmp.ge.f32.partialorder %v932, 0.0
        %vm1061 = vcmp.ge.f32.partialorder %v933, 0.0
        %vm1062 = vcmp.ge.f32.partialorder %v934, 0.0
        %vm1063 = vcmp.ge.f32.partialorder %v935, 0.0
        %vm1064 = vcmp.ge.f32.partialorder %v936, 0.0
        %vm1065 = vcmp.ge.f32.partialorder %v937, 0.0
        %vm1066 = vcmp.ge.f32.partialorder %v938, 0.0
        %vm1067 = vcmp.ge.f32.partialorder %v939, 0.0
        %vm1068 = vcmp.ge.f32.partialorder %v940, 0.0
        %vm1069 = vcmp.ge.f32.partialorder %v941, 0.0
        %vm1070 = vcmp.ge.f32.partialorder %v942, 0.0
        %vm1071 = vcmp.ge.f32.partialorder %v943, 0.0
        %vm1072 = vcmp.ge.f32.partialorder %v944, 0.0
        %vm1073 = vcmp.ge.f32.partialorder %v945, 0.0
        %vm1074 = vcmp.ge.f32.partialorder %v946, 0.0
        %vm1075 = vcmp.ge.f32.partialorder %v947, 0.0
        %vm1076 = vcmp.ge.f32.partialorder %v948, 0.0
        %vm1077 = vcmp.ge.f32.partialorder %v949, 0.0
        %vm1078 = vcmp.ge.f32.partialorder %v950, 0.0
        %vm1079 = vcmp.ge.f32.partialorder %v951, 0.0
        %vm1080 = vcmp.ge.f32.partialorder %v952, 0.0
        %vm1081 = vcmp.ge.f32.partialorder %v953, 0.0
        %vm1082 = vcmp.ge.f32.partialorder %v954, 0.0
        %vm1083 = vcmp.ge.f32.partialorder %v955, 0.0
        %vm1084 = vcmp.ge.f32.partialorder %v956, 0.0
        %vm1085 = vcmp.ge.f32.partialorder %v957, 0.0
        %vm1086 = vcmp.ge.f32.partialorder %v958, 0.0
        %vm1087 = vcmp.ge.f32.partialorder %v959, 0.0
        %vm1088 = vcmp.ge.f32.partialorder %v960, 0.0
        %vm1089 = vcmp.ge.f32.partialorder %v961, 0.0
        %vm1090 = vcmp.ge.f32.partialorder %v962, 0.0
        %vm1091 = vcmp.ge.f32.partialorder %v963, 0.0
        %vm1092 = vcmp.ge.f32.partialorder %v964, 0.0
        %vm1093 = vcmp.ge.f32.partialorder %v965, 0.0
        %vm1094 = vcmp.ge.f32.partialorder %v966, 0.0
        %vm1095 = vcmp.ge.f32.partialorder %v967, 0.0
        %vm1096 = vcmp.ge.f32.partialorder %v968, 0.0
        %vm1097 = vcmp.ge.f32.partialorder %v969, 0.0
        %vm1098 = vcmp.ge.f32.partialorder %v970, 0.0
        %vm1099 = vcmp.ge.f32.partialorder %v971, 0.0
        %vm1100 = vcmp.ge.f32.partialorder %v972, 0.0
        %vm1101 = vcmp.ge.f32.partialorder %v973, 0.0
        %vm1102 = vcmp.ge.f32.partialorder %v974, 0.0
        %vm1103 = vcmp.ge.f32.partialorder %v975, 0.0
        %vm1104 = vcmp.ge.f32.partialorder %v976, 0.0
        %vm1105 = vcmp.ge.f32.partialorder %v977, 0.0
        %vm1106 = vcmp.ge.f32.partialorder %v978, 0.0
        %vm1107 = vcmp.ge.f32.partialorder %v979, 0.0
        %vm1108 = vcmp.ge.f32.partialorder %v980, 0.0
        %vm1109 = vcmp.ge.f32.partialorder %v981, 0.0
        %vm1110 = vcmp.ge.f32.partialorder %v982, 0.0
        %vm1111 = vcmp.ge.f32.partialorder %v983, 0.0
        %vm1112 = vcmp.ge.f32.partialorder %v984, 0.0
        %vm1113 = vcmp.ge.f32.partialorder %v985, 0.0
        %vm1114 = vcmp.ge.f32.partialorder %v986, 0.0
        %vm1115 = vcmp.ge.f32.partialorder %v987, 0.0
        %vm1116 = vcmp.ge.f32.partialorder %v988, 0.0
        %vm1117 = vcmp.ge.f32.partialorder %v989, 0.0
        %vm1118 = vcmp.ge.f32.partialorder %v990, 0.0
        %vm1119 = vcmp.ge.f32.partialorder %v991, 0.0
        %vm1120 = vcmp.ge.f32.partialorder %v992, 0.0
        %vm1121 = vcmp.ge.f32.partialorder %v993, 0.0
        %vm1122 = vcmp.ge.f32.partialorder %v994, 0.0
        %vm1123 = vcmp.ge.f32.partialorder %v995, 0.0
        %vm1124 = vcmp.ge.f32.partialorder %v996, 0.0
        %vm1125 = vcmp.ge.f32.partialorder %v997, 0.0
        %vm1126 = vcmp.ge.f32.partialorder %v998, 0.0
        %vm1127 = vcmp.ge.f32.partialorder %v999, 0.0
        %vm1128 = vcmp.ge.f32.partialorder %v1000, 0.0
        %vm1129 = vcmp.ge.f32.partialorder %v1001, 0.0
        %vm1130 = vcmp.ge.f32.partialorder %v1002, 0.0
        %vm1131 = vcmp.ge.f32.partialorder %v1003, 0.0
        %vm1132 = vcmp.ge.f32.partialorder %v1004, 0.0
        %vm1133 = vcmp.ge.f32.partialorder %v1005, 0.0
        %vm1134 = vcmp.ge.f32.partialorder %v1006, 0.0
        %vm1135 = vcmp.ge.f32.partialorder %v1007, 0.0
        %vm1136 = vcmp.ge.f32.partialorder %v1008, 0.0
        %vm1137 = vcmp.ge.f32.partialorder %v1009, 0.0
        %vm1138 = vcmp.ge.f32.partialorder %v1010, 0.0
        %vm1139 = vcmp.ge.f32.partialorder %v1011, 0.0
        %vm1140 = vcmp.ge.f32.partialorder %v1012, 0.0
        %vm1141 = vcmp.ge.f32.partialorder %v1013, 0.0
        %vm1142 = vcmp.ge.f32.partialorder %v1014, 0.0
        %vm1143 = vcmp.ge.f32.partialorder %v1015, 0.0
        %vm1144 = vcmp.ge.f32.partialorder %v1016, 0.0
        %vm1145 = vcmp.ge.f32.partialorder %v1017, 0.0
        %vm1146 = vcmp.ge.f32.partialorder %v1018, 0.0
        %vm1147 = vcmp.ge.f32.partialorder %v1019, 0.0
        %vm1148 = vcmp.ge.f32.partialorder %v1020, 0.0
        %vm1149 = vcmp.ge.f32.partialorder %v1021, 0.0
        %vm1150 = vcmp.ge.f32.partialorder %v1022, 0.0
        %vm1151 = vcmp.ge.f32.partialorder %v1023, 0.0
        %vm1152 = vcmp.ge.f32.partialorder %v1024, 0.0
        %vm1153 = vcmp.ge.f32.partialorder %v1025, 0.0
        %vm1154 = vcmp.ge.f32.partialorder %v1026, 0.0
        %vm1155 = vcmp.ge.f32.partialorder %v1027, 0.0
        %vm1156 = vcmp.ge.f32.partialorder %v1028, 0.0
        %vm1157 = vcmp.ge.f32.partialorder %v1029, 0.0
        %vm1158 = vcmp.ge.f32.partialorder %v1030, 0.0
        %vm1159 = vcmp.ge.f32.partialorder %v1031, 0.0
        %vm1160 = vcmp.ge.f32.partialorder %v1032, 0.0
        %vm1161 = vcmp.ge.f32.partialorder %v1033, 0.0
        %vm1162 = vcmp.ge.f32.partialorder %v1034, 0.0
        %vm1163 = vcmp.ge.f32.partialorder %v1035, 0.0
        %vm1164 = vcmp.ge.f32.partialorder %v1036, 0.0
        %vm1165 = vcmp.ge.f32.partialorder %v1037, 0.0
        %vm1166 = vcmp.ge.f32.partialorder %v1038, 0.0
        %vm1167 = vcmp.ge.f32.partialorder %v1039, 0.0
        %v1168 = vmul.f32 %v912, 0.2
        %v1169 = vmul.f32 %v913, 0.2
        %v1170 = vmul.f32 %v914, 0.2
        %v1171 = vmul.f32 %v915, 0.2
        %v1172 = vmul.f32 %v916, 0.2
        %v1173 = vmul.f32 %v917, 0.2
        %v1174 = vmul.f32 %v918, 0.2
        %v1175 = vmul.f32 %v919, 0.2
        %v1176 = vmul.f32 %v920, 0.2
        %v1177 = vmul.f32 %v921, 0.2
        %v1178 = vmul.f32 %v922, 0.2
        %v1179 = vmul.f32 %v923, 0.2
        %v1180 = vmul.f32 %v924, 0.2
        %v1181 = vmul.f32 %v925, 0.2
        %v1182 = vmul.f32 %v926, 0.2
        %v1183 = vmul.f32 %v927, 0.2
        %v1184 = vmul.f32 %v928, 0.2
        %v1185 = vmul.f32 %v929, 0.2
        %v1186 = vmul.f32 %v930, 0.2
        %v1187 = vmul.f32 %v931, 0.2
        %v1188 = vmul.f32 %v932, 0.2
        %v1189 = vmul.f32 %v933, 0.2
        %v1190 = vmul.f32 %v934, 0.2
        %v1191 = vmul.f32 %v935, 0.2
        %v1192 = vmul.f32 %v936, 0.2
        %v1193 = vmul.f32 %v937, 0.2
        %v1194 = vmul.f32 %v938, 0.2
        %v1195 = vmul.f32 %v939, 0.2
        %v1196 = vmul.f32 %v940, 0.2
        %v1197 = vmul.f32 %v941, 0.2
        %v1198 = vmul.f32 %v942, 0.2
        %v1199 = vmul.f32 %v943, 0.2
        %v1200 = vmul.f32 %v944, 0.2
        %v1201 = vmul.f32 %v945, 0.2
        %v1202 = vmul.f32 %v946, 0.2
        %v1203 = vmul.f32 %v947, 0.2
        %v1204 = vmul.f32 %v948, 0.2
        %v1205 = vmul.f32 %v949, 0.2
        %v1206 = vmul.f32 %v950, 0.2
        %v1207 = vmul.f32 %v951, 0.2
        %v1208 = vmul.f32 %v952, 0.2
        %v1209 = vmul.f32 %v953, 0.2
        %v1210 = vmul.f32 %v954, 0.2
        %v1211 = vmul.f32 %v955, 0.2
        %v1212 = vmul.f32 %v956, 0.2
        %v1213 = vmul.f32 %v957, 0.2
        %v1214 = vmul.f32 %v958, 0.2
        %v1215 = vmul.f32 %v959, 0.2
        %v1216 = vmul.f32 %v960, 0.2
        %v1217 = vmul.f32 %v961, 0.2
        %v1218 = vmul.f32 %v962, 0.2
        %v1219 = vmul.f32 %v963, 0.2
        %v1220 = vmul.f32 %v964, 0.2
        %v1221 = vmul.f32 %v965, 0.2
        %v1222 = vmul.f32 %v966, 0.2
        %v1223 = vmul.f32 %v967, 0.2
        %v1224 = vmul.f32 %v968, 0.2
        %v1225 = vmul.f32 %v969, 0.2
        %v1226 = vmul.f32 %v970, 0.2
        %v1227 = vmul.f32 %v971, 0.2
        %v1228 = vmul.f32 %v972, 0.2
        %v1229 = vmul.f32 %v973, 0.2
        %v1230 = vmul.f32 %v974, 0.2
        %v1231 = vmul.f32 %v975, 0.2
        %v1232 = vmul.f32 %v976, 0.2
        %v1233 = vmul.f32 %v977, 0.2
        %v1234 = vmul.f32 %v978, 0.2
        %v1235 = vmul.f32 %v979, 0.2
        %v1236 = vmul.f32 %v980, 0.2
        %v1237 = vmul.f32 %v981, 0.2
        %v1238 = vmul.f32 %v982, 0.2
        %v1239 = vmul.f32 %v983, 0.2
        %v1240 = vmul.f32 %v984, 0.2
        %v1241 = vmul.f32 %v985, 0.2
        %v1242 = vmul.f32 %v986, 0.2
        %v1243 = vmul.f32 %v987, 0.2
        %v1244 = vmul.f32 %v988, 0.2
        %v1245 = vmul.f32 %v989, 0.2
        %v1246 = vmul.f32 %v990, 0.2
        %v1247 = vmul.f32 %v991, 0.2
        %v1248 = vmul.f32 %v992, 0.2
        %v1249 = vmul.f32 %v993, 0.2
        %v1250 = vmul.f32 %v994, 0.2
        %v1251 = vmul.f32 %v995, 0.2
        %v1252 = vmul.f32 %v996, 0.2
        %v1253 = vmul.f32 %v997, 0.2
        %v1254 = vmul.f32 %v998, 0.2
        %v1255 = vmul.f32 %v999, 0.2
        %v1256 = vmul.f32 %v1000, 0.2
        %v1257 = vmul.f32 %v1001, 0.2
        %v1258 = vmul.f32 %v1002, 0.2
        %v1259 = vmul.f32 %v1003, 0.2
        %v1260 = vmul.f32 %v1004, 0.2
        %v1261 = vmul.f32 %v1005, 0.2
        %v1262 = vmul.f32 %v1006, 0.2
        %v1263 = vmul.f32 %v1007, 0.2
        %v1264 = vmul.f32 %v1008, 0.2
        %v1265 = vmul.f32 %v1009, 0.2
        %v1266 = vmul.f32 %v1010, 0.2
        %v1267 = vmul.f32 %v1011, 0.2
        %v1268 = vmul.f32 %v1012, 0.2
        %v1269 = vmul.f32 %v1013, 0.2
        %v1270 = vmul.f32 %v1014, 0.2
        %v1271 = vmul.f32 %v1015, 0.2
        %v1272 = vmul.f32 %v1016, 0.2
        %v1273 = vmul.f32 %v1017, 0.2
        %v1274 = vmul.f32 %v1018, 0.2
        %v1275 = vmul.f32 %v1019, 0.2
        %v1276 = vmul.f32 %v1020, 0.2
        %v1277 = vmul.f32 %v1021, 0.2
        %v1278 = vmul.f32 %v1022, 0.2
        %v1279 = vmul.f32 %v1023, 0.2
        %v1280 = vmul.f32 %v1024, 0.2
        %v1281 = vmul.f32 %v1025, 0.2
        %v1282 = vmul.f32 %v1026, 0.2
        %v1283 = vmul.f32 %v1027, 0.2
        %v1284 = vmul.f32 %v1028, 0.2
        %v1285 = vmul.f32 %v1029, 0.2
        %v1286 = vmul.f32 %v1030, 0.2
        %v1287 = vmul.f32 %v1031, 0.2
        %v1288 = vmul.f32 %v1032, 0.2
        %v1289 = vmul.f32 %v1033, 0.2
        %v1290 = vmul.f32 %v1034, 0.2
        %v1291 = vmul.f32 %v1035, 0.2
        %v1292 = vmul.f32 %v1036, 0.2
        %v1293 = vmul.f32 %v1037, 0.2
        %v1294 = vmul.f32 %v1038, 0.2
        %v1295 = vmul.f32 %v1039, 0.2
        %v1296 = vsel %vm1040, %v912, %v1168
        %v1297 = vsel %vm1041, %v913, %v1169
        %v1298 = vsel %vm1042, %v914, %v1170
        %v1299 = vsel %vm1043, %v915, %v1171
        %v1300 = vsel %vm1044, %v916, %v1172
        %v1301 = vsel %vm1045, %v917, %v1173
        %v1302 = vsel %vm1046, %v918, %v1174
        %v1303 = vsel %vm1047, %v919, %v1175
        %v1304 = vsel %vm1048, %v920, %v1176
        %v1305 = vsel %vm1049, %v921, %v1177
        %v1306 = vsel %vm1050, %v922, %v1178
        %v1307 = vsel %vm1051, %v923, %v1179
        %v1308 = vsel %vm1052, %v924, %v1180
        %v1309 = vsel %vm1053, %v925, %v1181
        %v1310 = vsel %vm1054, %v926, %v1182
        %v1311 = vsel %vm1055, %v927, %v1183
        %v1312 = vsel %vm1056, %v928, %v1184
        %v1313 = vsel %vm1057, %v929, %v1185
        %v1314 = vsel %vm1058, %v930, %v1186
        %v1315 = vsel %vm1059, %v931, %v1187
        %v1316 = vsel %vm1060, %v932, %v1188
        %v1317 = vsel %vm1061, %v933, %v1189
        %v1318 = vsel %vm1062, %v934, %v1190
        %v1319 = vsel %vm1063, %v935, %v1191
        %v1320 = vsel %vm1064, %v936, %v1192
        %v1321 = vsel %vm1065, %v937, %v1193
        %v1322 = vsel %vm1066, %v938, %v1194
        %v1323 = vsel %vm1067, %v939, %v1195
        %v1324 = vsel %vm1068, %v940, %v1196
        %v1325 = vsel %vm1069, %v941, %v1197
        %v1326 = vsel %vm1070, %v942, %v1198
        %v1327 = vsel %vm1071, %v943, %v1199
        %v1328 = vsel %vm1072, %v944, %v1200
        %v1329 = vsel %vm1073, %v945, %v1201
        %v1330 = vsel %vm1074, %v946, %v1202
        %v1331 = vsel %vm1075, %v947, %v1203
        %v1332 = vsel %vm1076, %v948, %v1204
        %v1333 = vsel %vm1077, %v949, %v1205
        %v1334 = vsel %vm1078, %v950, %v1206
        %v1335 = vsel %vm1079, %v951, %v1207
        %v1336 = vsel %vm1080, %v952, %v1208
        %v1337 = vsel %vm1081, %v953, %v1209
        %v1338 = vsel %vm1082, %v954, %v1210
        %v1339 = vsel %vm1083, %v955, %v1211
        %v1340 = vsel %vm1084, %v956, %v1212
        %v1341 = vsel %vm1085, %v957, %v1213
        %v1342 = vsel %vm1086, %v958, %v1214
        %v1343 = vsel %vm1087, %v959, %v1215
        %v1344 = vsel %vm1088, %v960, %v1216
        %v1345 = vsel %vm1089, %v961, %v1217
        %v1346 = vsel %vm1090, %v962, %v1218
        %v1347 = vsel %vm1091, %v963, %v1219
        %v1348 = vsel %vm1092, %v964, %v1220
        %v1349 = vsel %vm1093, %v965, %v1221
        %v1350 = vsel %vm1094, %v966, %v1222
        %v1351 = vsel %vm1095, %v967, %v1223
        %v1352 = vsel %vm1096, %v968, %v1224
        %v1353 = vsel %vm1097, %v969, %v1225
        %v1354 = vsel %vm1098, %v970, %v1226
        %v1355 = vsel %vm1099, %v971, %v1227
        %v1356 = vsel %vm1100, %v972, %v1228
        %v1357 = vsel %vm1101, %v973, %v1229
        %v1358 = vsel %vm1102, %v974, %v1230
        %v1359 = vsel %vm1103, %v975, %v1231
        %v1360 = vsel %vm1104, %v976, %v1232
        %v1361 = vsel %vm1105, %v977, %v1233
        %v1362 = vsel %vm1106, %v978, %v1234
        %v1363 = vsel %vm1107, %v979, %v1235
        %v1364 = vsel %vm1108, %v980, %v1236
        %v1365 = vsel %vm1109, %v981, %v1237
        %v1366 = vsel %vm1110, %v982, %v1238
        %v1367 = vsel %vm1111, %v983, %v1239
        %v1368 = vsel %vm1112, %v984, %v1240
        %v1369 = vsel %vm1113, %v985, %v1241
        %v1370 = vsel %vm1114, %v986, %v1242
        %v1371 = vsel %vm1115, %v987, %v1243
        %v1372 = vsel %vm1116, %v988, %v1244
        %v1373 = vsel %vm1117, %v989, %v1245
        %v1374 = vsel %vm1118, %v990, %v1246
        %v1375 = vsel %vm1119, %v991, %v1247
        %v1376 = vsel %vm1120, %v992, %v1248
        %v1377 = vsel %vm1121, %v993, %v1249
        %v1378 = vsel %vm1122, %v994, %v1250
        %v1379 = vsel %vm1123, %v995, %v1251
        %v1380 = vsel %vm1124, %v996, %v1252
        %v1381 = vsel %vm1125, %v997, %v1253
        %v1382 = vsel %vm1126, %v998, %v1254
        %v1383 = vsel %vm1127, %v999, %v1255
        %v1384 = vsel %vm1128, %v1000, %v1256
        %v1385 = vsel %vm1129, %v1001, %v1257
        %v1386 = vsel %vm1130, %v1002, %v1258
        %v1387 = vsel %vm1131, %v1003, %v1259
        %v1388 = vsel %vm1132, %v1004, %v1260
        %v1389 = vsel %vm1133, %v1005, %v1261
        %v1390 = vsel %vm1134, %v1006, %v1262
        %v1391 = vsel %vm1135, %v1007, %v1263
        %v1392 = vsel %vm1136, %v1008, %v1264
        %v1393 = vsel %vm1137, %v1009, %v1265
        %v1394 = vsel %vm1138, %v1010, %v1266
        %v1395 = vsel %vm1139, %v1011, %v1267
        %v1396 = vsel %vm1140, %v1012, %v1268
        %v1397 = vsel %vm1141, %v1013, %v1269
        %v1398 = vsel %vm1142, %v1014, %v1270
        %v1399 = vsel %vm1143, %v1015, %v1271
        %v1400 = vsel %vm1144, %v1016, %v1272
        %v1401 = vsel %vm1145, %v1017, %v1273
        %v1402 = vsel %vm1146, %v1018, %v1274
        %v1403 = vsel %vm1147, %v1019, %v1275
        %v1404 = vsel %vm1148, %v1020, %v1276
        %v1405 = vsel %vm1149, %v1021, %v1277
        %v1406 = vsel %vm1150, %v1022, %v1278
        %v1407 = vsel %vm1151, %v1023, %v1279
        %v1408 = vsel %vm1152, %v1024, %v1280
        %v1409 = vsel %vm1153, %v1025, %v1281
        %v1410 = vsel %vm1154, %v1026, %v1282
        %v1411 = vsel %vm1155, %v1027, %v1283
        %v1412 = vsel %vm1156, %v1028, %v1284
        %v1413 = vsel %vm1157, %v1029, %v1285
        %v1414 = vsel %vm1158, %v1030, %v1286
        %v1415 = vsel %vm1159, %v1031, %v1287
        %v1416 = vsel %vm1160, %v1032, %v1288
        %v1417 = vsel %vm1161, %v1033, %v1289
        %v1418 = vsel %vm1162, %v1034, %v1290
        %v1419 = vsel %vm1163, %v1035, %v1291
        %v1420 = vsel %vm1164, %v1036, %v1292
        %v1421 = vsel %vm1165, %v1037, %v1293
        %v1422 = vsel %vm1166, %v1038, %v1294
        %v1423 = vsel %vm1167, %v1039, %v1295
        %v1424 = vld [vmem:[%s3] sm:$0xf]
        %v1425 = vld [vmem:[%s3 + $0x4] sm:$0xf]
        %v1426 = vld [vmem:[%s3 + $0x8] sm:$0xf]
        %v1427 = vld [vmem:[%s3 + $0xc] sm:$0xf]
        %v1428 = vld [vmem:[%s3 + $0x10] sm:$0xf]
        %v1429 = vld [vmem:[%s3 + $0x14] sm:$0xf]
        %v1430 = vld [vmem:[%s3 + $0x18] sm:$0xf]
        %v1431 = vld [vmem:[%s3 + $0x1c] sm:$0xf]
        %v1432 = vld [vmem:[%s3 + $0x20] sm:$0xf]
        %v1433 = vld [vmem:[%s3 + $0x24] sm:$0xf]
        %v1434 = vld [vmem:[%s3 + $0x28] sm:$0xf]
        %v1435 = vld [vmem:[%s3 + $0x2c] sm:$0xf]
        %v1436 = vld [vmem:[%s3 + $0x30] sm:$0xf]
        %v1437 = vld [vmem:[%s3 + $0x34] sm:$0xf]
        %v1438 = vld [vmem:[%s3 + $0x38] sm:$0xf]
        %v1439 = vld [vmem:[%s3 + $0x3c] sm:$0xf]
        %v1440 = vpack.c.bf16 %v1312, %v1296
        %v1441 = vpack.c.bf16 %v1313, %v1297
        %v1442 = vpack.c.bf16 %v1314, %v1298
        %v1443 = vpack.c.bf16 %v1315, %v1299
        %v1444 = vpack.c.bf16 %v1316, %v1300
        %v1445 = vpack.c.bf16 %v1317, %v1301
        %v1446 = vpack.c.bf16 %v1318, %v1302
        %v1447 = vpack.c.bf16 %v1319, %v1303
        %v1448 = vpack.c.bf16 %v1320, %v1304
        %v1449 = vpack.c.bf16 %v1321, %v1305
        %v1450 = vpack.c.bf16 %v1322, %v1306
        %v1451 = vpack.c.bf16 %v1323, %v1307
        %v1452 = vpack.c.bf16 %v1324, %v1308
        %v1453 = vpack.c.bf16 %v1325, %v1309
        %v1454 = vpack.c.bf16 %v1326, %v1310
        %v1455 = vpack.c.bf16 %v1327, %v1311
        %v1456 = vpack.c.bf16 %v1344, %v1328
        %v1457 = vpack.c.bf16 %v1345, %v1329
        %v1458 = vpack.c.bf16 %v1346, %v1330
        %v1459 = vpack.c.bf16 %v1347, %v1331
        %v1460 = vpack.c.bf16 %v1348, %v1332
        %v1461 = vpack.c.bf16 %v1349, %v1333
        %v1462 = vpack.c.bf16 %v1350, %v1334
        %v1463 = vpack.c.bf16 %v1351, %v1335
        %v1464 = vpack.c.bf16 %v1352, %v1336
        %v1465 = vpack.c.bf16 %v1353, %v1337
        %v1466 = vpack.c.bf16 %v1354, %v1338
        %v1467 = vpack.c.bf16 %v1355, %v1339
        %v1468 = vpack.c.bf16 %v1356, %v1340
        %v1469 = vpack.c.bf16 %v1357, %v1341
        %v1470 = vpack.c.bf16 %v1358, %v1342
        %v1471 = vpack.c.bf16 %v1359, %v1343
        %v1472 = vpack.c.bf16 %v1376, %v1360
        %v1473 = vpack.c.bf16 %v1377, %v1361
        %v1474 = vpack.c.bf16 %v1378, %v1362
        %v1475 = vpack.c.bf16 %v1379, %v1363
        %v1476 = vpack.c.bf16 %v1380, %v1364
        %v1477 = vpack.c.bf16 %v1381, %v1365
        %v1478 = vpack.c.bf16 %v1382, %v1366
        %v1479 = vpack.c.bf16 %v1383, %v1367
        %v1480 = vpack.c.bf16 %v1384, %v1368
        %v1481 = vpack.c.bf16 %v1385, %v1369
        %v1482 = vpack.c.bf16 %v1386, %v1370
        %v1483 = vpack.c.bf16 %v1387, %v1371
        %v1484 = vpack.c.bf16 %v1388, %v1372
        %v1485 = vpack.c.bf16 %v1389, %v1373
        %v1486 = vpack.c.bf16 %v1390, %v1374
        %v1487 = vpack.c.bf16 %v1391, %v1375
        %v1488 = vpack.c.bf16 %v1408, %v1392
        %v1489 = vpack.c.bf16 %v1409, %v1393
        %v1490 = vpack.c.bf16 %v1410, %v1394
        %v1491 = vpack.c.bf16 %v1411, %v1395
        %v1492 = vpack.c.bf16 %v1412, %v1396
        %v1493 = vpack.c.bf16 %v1413, %v1397
        %v1494 = vpack.c.bf16 %v1414, %v1398
        %v1495 = vpack.c.bf16 %v1415, %v1399
        %v1496 = vpack.c.bf16 %v1416, %v1400
        %v1497 = vpack.c.bf16 %v1417, %v1401
        %v1498 = vpack.c.bf16 %v1418, %v1402
        %v1499 = vpack.c.bf16 %v1419, %v1403
        %v1500 = vpack.c.bf16 %v1420, %v1404
        %v1501 = vpack.c.bf16 %v1421, %v1405
        %v1502 = vpack.c.bf16 %v1422, %v1406
        %v1503 = vpack.c.bf16 %v1423, %v1407
        %v1520 = vunpack.c.l.b16 %v1424
        %v1521 = vunpack.c.l.b16 %v1425
        %v1522 = vunpack.c.l.b16 %v1426
        %v1523 = vunpack.c.l.b16 %v1427
        %v1524 = vunpack.c.l.b16 %v1428
        %v1525 = vunpack.c.l.b16 %v1429
        %v1526 = vunpack.c.l.b16 %v1430
        %v1527 = vunpack.c.l.b16 %v1431
        %v1528 = vunpack.c.l.b16 %v1432
        %v1529 = vunpack.c.l.b16 %v1433
        %v1530 = vunpack.c.l.b16 %v1434
        %v1531 = vunpack.c.l.b16 %v1435
        %v1532 = vunpack.c.l.b16 %v1436
        %v1533 = vunpack.c.l.b16 %v1437
        %v1534 = vunpack.c.l.b16 %v1438
        %v1535 = vunpack.c.l.b16 %v1439
        %v1536 = vpack.c.b16 %v1521, %v1520
        %v1537 = vpack.c.b16 %v1523, %v1522
        %v1538 = vpack.c.b16 %v1525, %v1524
        %v1539 = vpack.c.b16 %v1527, %v1526
        %v1540 = vpack.c.b16 %v1529, %v1528
        %v1541 = vpack.c.b16 %v1531, %v1530
        %v1542 = vpack.c.b16 %v1533, %v1532
        %v1543 = vpack.c.b16 %v1535, %v1534
        %vm1544 = vcmask 523264
        %v1546 = vsel %vm1544, %v1536, 0
        %v1549 = vsel %vm1544, %v1537, 0
        %v1552 = vsel %vm1544, %v1538, 0
        %v1555 = vsel %vm1544, %v1539, 0
        %v1558 = vsel %vm1544, %v1540, 0
        %v1561 = vsel %vm1544, %v1541, 0
        %v1564 = vsel %vm1544, %v1542, 0
        %v1567 = vsel %vm1544, %v1543, 0
        %1569 = vmatpush.bf16.msra.mxu0 0
        %1570 = vmatpush.bf16.msra.mxu0 0
        %1571 = vmatpush.bf16.msra.mxu0 0
        %1572 = vmatpush.bf16.msra.mxu0 0
        %1573 = vmatpush.bf16.msra.mxu0 %v1488
        %1574 = vmatpush.bf16.msra.mxu0 %v1472
        %1575 = vmatpush.bf16.msra.mxu0 %v1456
        %1576 = vmatpush.bf16.msra.mxu0 %v1440
        %1577 = vmatmul.bf16.gmra.mxu0 %v1546
        %v1578 = vpop.f32.mrf.mxu0
        %v1579 = vadd.f32 0.0, %v1578
        %v1580 = vpop.f32.mrf.mxu0
        %v1581 = vadd.f32 0.0, %v1580
        %1582 = vmatmul.bf16.gmra.mxu0 %v1549
        %v1583 = vpop.f32.mrf.mxu0
        %v1584 = vadd.f32 0.0, %v1583
        %v1585 = vpop.f32.mrf.mxu0
        %v1586 = vadd.f32 0.0, %v1585
        %1587 = vmatmul.bf16.gmra.mxu0 %v1552
        %v1588 = vpop.f32.mrf.mxu0
        %v1589 = vadd.f32 0.0, %v1588
        %v1590 = vpop.f32.mrf.mxu0
        %v1591 = vadd.f32 0.0, %v1590
        %1592 = vmatmul.bf16.gmra.mxu0 %v1555
        %v1593 = vpop.f32.mrf.mxu0
        %v1594 = vadd.f32 0.0, %v1593
        %v1595 = vpop.f32.mrf.mxu0
        %v1596 = vadd.f32 0.0, %v1595
        %1597 = vmatmul.bf16.gmra.mxu0 %v1558
        %v1598 = vpop.f32.mrf.mxu0
        %v1599 = vadd.f32 0.0, %v1598
        %v1600 = vpop.f32.mrf.mxu0
        %v1601 = vadd.f32 0.0, %v1600
        %1602 = vmatmul.bf16.gmra.mxu0 %v1561
        %v1603 = vpop.f32.mrf.mxu0
        %v1604 = vadd.f32 0.0, %v1603
        %v1605 = vpop.f32.mrf.mxu0
        %v1606 = vadd.f32 0.0, %v1605
        %1607 = vmatmul.bf16.gmra.mxu0 %v1564
        %v1608 = vpop.f32.mrf.mxu0
        %v1609 = vadd.f32 0.0, %v1608
        %v1610 = vpop.f32.mrf.mxu0
        %v1611 = vadd.f32 0.0, %v1610
        %1612 = vmatmul.bf16.gmra.mxu0 %v1567
        %v1613 = vpop.f32.mrf.mxu0
        %v1614 = vadd.f32 0.0, %v1613
        %v1615 = vpop.f32.mrf.mxu0
        %v1616 = vadd.f32 0.0, %v1615
        %1617 = vdwg.mxu0
        %1618 = vmatpush.bf16.msra.mxu0 0
        %1619 = vmatpush.bf16.msra.mxu0 0
        %1620 = vmatpush.bf16.msra.mxu0 0
        %1621 = vmatpush.bf16.msra.mxu0 0
        %1622 = vmatpush.bf16.msra.mxu0 %v1489
        %1623 = vmatpush.bf16.msra.mxu0 %v1473
        %1624 = vmatpush.bf16.msra.mxu0 %v1457
        %1625 = vmatpush.bf16.msra.mxu0 %v1441
        %1626 = vmatmul.bf16.gmra.mxu0 %v1546
        %v1627 = vpop.f32.mrf.mxu0
        %v1628 = vadd.f32 0.0, %v1627
        %v1629 = vpop.f32.mrf.mxu0
        %v1630 = vadd.f32 0.0, %v1629
        %1631 = vmatmul.bf16.gmra.mxu0 %v1549
        %v1632 = vpop.f32.mrf.mxu0
        %v1633 = vadd.f32 0.0, %v1632
        %v1634 = vpop.f32.mrf.mxu0
        %v1635 = vadd.f32 0.0, %v1634
        %1636 = vmatmul.bf16.gmra.mxu0 %v1552
        %v1637 = vpop.f32.mrf.mxu0
        %v1638 = vadd.f32 0.0, %v1637
        %v1639 = vpop.f32.mrf.mxu0
        %v1640 = vadd.f32 0.0, %v1639
        %1641 = vmatmul.bf16.gmra.mxu0 %v1555
        %v1642 = vpop.f32.mrf.mxu0
        %v1643 = vadd.f32 0.0, %v1642
        %v1644 = vpop.f32.mrf.mxu0
        %v1645 = vadd.f32 0.0, %v1644
        %1646 = vmatmul.bf16.gmra.mxu0 %v1558
        %v1647 = vpop.f32.mrf.mxu0
        %v1648 = vadd.f32 0.0, %v1647
        %v1649 = vpop.f32.mrf.mxu0
        %v1650 = vadd.f32 0.0, %v1649
        %1651 = vmatmul.bf16.gmra.mxu0 %v1561
        %v1652 = vpop.f32.mrf.mxu0
        %v1653 = vadd.f32 0.0, %v1652
        %v1654 = vpop.f32.mrf.mxu0
        %v1655 = vadd.f32 0.0, %v1654
        %1656 = vmatmul.bf16.gmra.mxu0 %v1564
        %v1657 = vpop.f32.mrf.mxu0
        %v1658 = vadd.f32 0.0, %v1657
        %v1659 = vpop.f32.mrf.mxu0
        %v1660 = vadd.f32 0.0, %v1659
        %1661 = vmatmul.bf16.gmra.mxu0 %v1567
        %v1662 = vpop.f32.mrf.mxu0
        %v1663 = vadd.f32 0.0, %v1662
        %v1664 = vpop.f32.mrf.mxu0
        %v1665 = vadd.f32 0.0, %v1664
        %1666 = vdwg.mxu0
        %1667 = vmatpush.bf16.msra.mxu0 0
        %1668 = vmatpush.bf16.msra.mxu0 0
        %1669 = vmatpush.bf16.msra.mxu0 0
        %1670 = vmatpush.bf16.msra.mxu0 0
        %1671 = vmatpush.bf16.msra.mxu0 %v1490
        %1672 = vmatpush.bf16.msra.mxu0 %v1474
        %1673 = vmatpush.bf16.msra.mxu0 %v1458
        %1674 = vmatpush.bf16.msra.mxu0 %v1442
        %1675 = vmatmul.bf16.gmra.mxu0 %v1546
        %v1676 = vpop.f32.mrf.mxu0
        %v1677 = vadd.f32 0.0, %v1676
        %v1678 = vpop.f32.mrf.mxu0
        %v1679 = vadd.f32 0.0, %v1678
        %1680 = vmatmul.bf16.gmra.mxu0 %v1549
        %v1681 = vpop.f32.mrf.mxu0
        %v1682 = vadd.f32 0.0, %v1681
        %v1683 = vpop.f32.mrf.mxu0
        %v1684 = vadd.f32 0.0, %v1683
        %1685 = vmatmul.bf16.gmra.mxu0 %v1552
        %v1686 = vpop.f32.mrf.mxu0
        %v1687 = vadd.f32 0.0, %v1686
        %v1688 = vpop.f32.mrf.mxu0
        %v1689 = vadd.f32 0.0, %v1688
        %1690 = vmatmul.bf16.gmra.mxu0 %v1555
        %v1691 = vpop.f32.mrf.mxu0
        %v1692 = vadd.f32 0.0, %v1691
        %v1693 = vpop.f32.mrf.mxu0
        %v1694 = vadd.f32 0.0, %v1693
        %1695 = vmatmul.bf16.gmra.mxu0 %v1558
        %v1696 = vpop.f32.mrf.mxu0
        %v1697 = vadd.f32 0.0, %v1696
        %v1698 = vpop.f32.mrf.mxu0
        %v1699 = vadd.f32 0.0, %v1698
        %1700 = vmatmul.bf16.gmra.mxu0 %v1561
        %v1701 = vpop.f32.mrf.mxu0
        %v1702 = vadd.f32 0.0, %v1701
        %v1703 = vpop.f32.mrf.mxu0
        %v1704 = vadd.f32 0.0, %v1703
        %1705 = vmatmul.bf16.gmra.mxu0 %v1564
        %v1706 = vpop.f32.mrf.mxu0
        %v1707 = vadd.f32 0.0, %v1706
        %v1708 = vpop.f32.mrf.mxu0
        %v1709 = vadd.f32 0.0, %v1708
        %1710 = vmatmul.bf16.gmra.mxu0 %v1567
        %v1711 = vpop.f32.mrf.mxu0
        %v1712 = vadd.f32 0.0, %v1711
        %v1713 = vpop.f32.mrf.mxu0
        %v1714 = vadd.f32 0.0, %v1713
        %1715 = vdwg.mxu0
        %1716 = vmatpush.bf16.msra.mxu0 0
        %1717 = vmatpush.bf16.msra.mxu0 0
        %1718 = vmatpush.bf16.msra.mxu0 0
        %1719 = vmatpush.bf16.msra.mxu0 0
        %1720 = vmatpush.bf16.msra.mxu0 %v1491
        %1721 = vmatpush.bf16.msra.mxu0 %v1475
        %1722 = vmatpush.bf16.msra.mxu0 %v1459
        %1723 = vmatpush.bf16.msra.mxu0 %v1443
        %1724 = vmatmul.bf16.gmra.mxu0 %v1546
        %v1725 = vpop.f32.mrf.mxu0
        %v1726 = vadd.f32 0.0, %v1725
        %v1727 = vpop.f32.mrf.mxu0
        %v1728 = vadd.f32 0.0, %v1727
        %1729 = vmatmul.bf16.gmra.mxu0 %v1549
        %v1730 = vpop.f32.mrf.mxu0
        %v1731 = vadd.f32 0.0, %v1730
        %v1732 = vpop.f32.mrf.mxu0
        %v1733 = vadd.f32 0.0, %v1732
        %1734 = vmatmul.bf16.gmra.mxu0 %v1552
        %v1735 = vpop.f32.mrf.mxu0
        %v1736 = vadd.f32 0.0, %v1735
        %v1737 = vpop.f32.mrf.mxu0
        %v1738 = vadd.f32 0.0, %v1737
        %1739 = vmatmul.bf16.gmra.mxu0 %v1555
        %v1740 = vpop.f32.mrf.mxu0
        %v1741 = vadd.f32 0.0, %v1740
        %v1742 = vpop.f32.mrf.mxu0
        %v1743 = vadd.f32 0.0, %v1742
        %1744 = vmatmul.bf16.gmra.mxu0 %v1558
        %v1745 = vpop.f32.mrf.mxu0
        %v1746 = vadd.f32 0.0, %v1745
        %v1747 = vpop.f32.mrf.mxu0
        %v1748 = vadd.f32 0.0, %v1747
        %1749 = vmatmul.bf16.gmra.mxu0 %v1561
        %v1750 = vpop.f32.mrf.mxu0
        %v1751 = vadd.f32 0.0, %v1750
        %v1752 = vpop.f32.mrf.mxu0
        %v1753 = vadd.f32 0.0, %v1752
        %1754 = vmatmul.bf16.gmra.mxu0 %v1564
        %v1755 = vpop.f32.mrf.mxu0
        %v1756 = vadd.f32 0.0, %v1755
        %v1757 = vpop.f32.mrf.mxu0
        %v1758 = vadd.f32 0.0, %v1757
        %1759 = vmatmul.bf16.gmra.mxu0 %v1567
        %v1760 = vpop.f32.mrf.mxu0
        %v1761 = vadd.f32 0.0, %v1760
        %v1762 = vpop.f32.mrf.mxu0
        %v1763 = vadd.f32 0.0, %v1762
        %1764 = vdwg.mxu0
        %1765 = vmatpush.bf16.msra.mxu0 0
        %1766 = vmatpush.bf16.msra.mxu0 0
        %1767 = vmatpush.bf16.msra.mxu0 0
        %1768 = vmatpush.bf16.msra.mxu0 0
        %1769 = vmatpush.bf16.msra.mxu0 %v1492
        %1770 = vmatpush.bf16.msra.mxu0 %v1476
        %1771 = vmatpush.bf16.msra.mxu0 %v1460
        %1772 = vmatpush.bf16.msra.mxu0 %v1444
        %1773 = vmatmul.bf16.gmra.mxu0 %v1546
        %v1774 = vpop.f32.mrf.mxu0
        %v1775 = vadd.f32 0.0, %v1774
        %v1776 = vpop.f32.mrf.mxu0
        %v1777 = vadd.f32 0.0, %v1776
        %1778 = vmatmul.bf16.gmra.mxu0 %v1549
        %v1779 = vpop.f32.mrf.mxu0
        %v1780 = vadd.f32 0.0, %v1779
        %v1781 = vpop.f32.mrf.mxu0
        %v1782 = vadd.f32 0.0, %v1781
        %1783 = vmatmul.bf16.gmra.mxu0 %v1552
        %v1784 = vpop.f32.mrf.mxu0
        %v1785 = vadd.f32 0.0, %v1784
        %v1786 = vpop.f32.mrf.mxu0
        %v1787 = vadd.f32 0.0, %v1786
        %1788 = vmatmul.bf16.gmra.mxu0 %v1555
        %v1789 = vpop.f32.mrf.mxu0
        %v1790 = vadd.f32 0.0, %v1789
        %v1791 = vpop.f32.mrf.mxu0
        %v1792 = vadd.f32 0.0, %v1791
        %1793 = vmatmul.bf16.gmra.mxu0 %v1558
        %v1794 = vpop.f32.mrf.mxu0
        %v1795 = vadd.f32 0.0, %v1794
        %v1796 = vpop.f32.mrf.mxu0
        %v1797 = vadd.f32 0.0, %v1796
        %1798 = vmatmul.bf16.gmra.mxu0 %v1561
        %v1799 = vpop.f32.mrf.mxu0
        %v1800 = vadd.f32 0.0, %v1799
        %v1801 = vpop.f32.mrf.mxu0
        %v1802 = vadd.f32 0.0, %v1801
        %1803 = vmatmul.bf16.gmra.mxu0 %v1564
        %v1804 = vpop.f32.mrf.mxu0
        %v1805 = vadd.f32 0.0, %v1804
        %v1806 = vpop.f32.mrf.mxu0
        %v1807 = vadd.f32 0.0, %v1806
        %1808 = vmatmul.bf16.gmra.mxu0 %v1567
        %v1809 = vpop.f32.mrf.mxu0
        %v1810 = vadd.f32 0.0, %v1809
        %v1811 = vpop.f32.mrf.mxu0
        %v1812 = vadd.f32 0.0, %v1811
        %1813 = vdwg.mxu0
        %1814 = vmatpush.bf16.msra.mxu0 0
        %1815 = vmatpush.bf16.msra.mxu0 0
        %1816 = vmatpush.bf16.msra.mxu0 0
        %1817 = vmatpush.bf16.msra.mxu0 0
        %1818 = vmatpush.bf16.msra.mxu0 %v1493
        %1819 = vmatpush.bf16.msra.mxu0 %v1477
        %1820 = vmatpush.bf16.msra.mxu0 %v1461
        %1821 = vmatpush.bf16.msra.mxu0 %v1445
        %1822 = vmatmul.bf16.gmra.mxu0 %v1546
        %v1823 = vpop.f32.mrf.mxu0
        %v1824 = vadd.f32 0.0, %v1823
        %v1825 = vpop.f32.mrf.mxu0
        %v1826 = vadd.f32 0.0, %v1825
        %1827 = vmatmul.bf16.gmra.mxu0 %v1549
        %v1828 = vpop.f32.mrf.mxu0
        %v1829 = vadd.f32 0.0, %v1828
        %v1830 = vpop.f32.mrf.mxu0
        %v1831 = vadd.f32 0.0, %v1830
        %1832 = vmatmul.bf16.gmra.mxu0 %v1552
        %v1833 = vpop.f32.mrf.mxu0
        %v1834 = vadd.f32 0.0, %v1833
        %v1835 = vpop.f32.mrf.mxu0
        %v1836 = vadd.f32 0.0, %v1835
        %1837 = vmatmul.bf16.gmra.mxu0 %v1555
        %v1838 = vpop.f32.mrf.mxu0
        %v1839 = vadd.f32 0.0, %v1838
        %v1840 = vpop.f32.mrf.mxu0
        %v1841 = vadd.f32 0.0, %v1840
        %1842 = vmatmul.bf16.gmra.mxu0 %v1558
        %v1843 = vpop.f32.mrf.mxu0
        %v1844 = vadd.f32 0.0, %v1843
        %v1845 = vpop.f32.mrf.mxu0
        %v1846 = vadd.f32 0.0, %v1845
        %1847 = vmatmul.bf16.gmra.mxu0 %v1561
        %v1848 = vpop.f32.mrf.mxu0
        %v1849 = vadd.f32 0.0, %v1848
        %v1850 = vpop.f32.mrf.mxu0
        %v1851 = vadd.f32 0.0, %v1850
        %1852 = vmatmul.bf16.gmra.mxu0 %v1564
        %v1853 = vpop.f32.mrf.mxu0
        %v1854 = vadd.f32 0.0, %v1853
        %v1855 = vpop.f32.mrf.mxu0
        %v1856 = vadd.f32 0.0, %v1855
        %1857 = vmatmul.bf16.gmra.mxu0 %v1567
        %v1858 = vpop.f32.mrf.mxu0
        %v1859 = vadd.f32 0.0, %v1858
        %v1860 = vpop.f32.mrf.mxu0
        %v1861 = vadd.f32 0.0, %v1860
        %1862 = vdwg.mxu0
        %1863 = vmatpush.bf16.msra.mxu0 0
        %1864 = vmatpush.bf16.msra.mxu0 0
        %1865 = vmatpush.bf16.msra.mxu0 0
        %1866 = vmatpush.bf16.msra.mxu0 0
        %1867 = vmatpush.bf16.msra.mxu0 %v1494
        %1868 = vmatpush.bf16.msra.mxu0 %v1478
        %1869 = vmatpush.bf16.msra.mxu0 %v1462
        %1870 = vmatpush.bf16.msra.mxu0 %v1446
        %1871 = vmatmul.bf16.gmra.mxu0 %v1546
        %v1872 = vpop.f32.mrf.mxu0
        %v1873 = vadd.f32 0.0, %v1872
        %v1874 = vpop.f32.mrf.mxu0
        %v1875 = vadd.f32 0.0, %v1874
        %1876 = vmatmul.bf16.gmra.mxu0 %v1549
        %v1877 = vpop.f32.mrf.mxu0
        %v1878 = vadd.f32 0.0, %v1877
        %v1879 = vpop.f32.mrf.mxu0
        %v1880 = vadd.f32 0.0, %v1879
        %1881 = vmatmul.bf16.gmra.mxu0 %v1552
        %v1882 = vpop.f32.mrf.mxu0
        %v1883 = vadd.f32 0.0, %v1882
        %v1884 = vpop.f32.mrf.mxu0
        %v1885 = vadd.f32 0.0, %v1884
        %1886 = vmatmul.bf16.gmra.mxu0 %v1555
        %v1887 = vpop.f32.mrf.mxu0
        %v1888 = vadd.f32 0.0, %v1887
        %v1889 = vpop.f32.mrf.mxu0
        %v1890 = vadd.f32 0.0, %v1889
        %1891 = vmatmul.bf16.gmra.mxu0 %v1558
        %v1892 = vpop.f32.mrf.mxu0
        %v1893 = vadd.f32 0.0, %v1892
        %v1894 = vpop.f32.mrf.mxu0
        %v1895 = vadd.f32 0.0, %v1894
        %1896 = vmatmul.bf16.gmra.mxu0 %v1561
        %v1897 = vpop.f32.mrf.mxu0
        %v1898 = vadd.f32 0.0, %v1897
        %v1899 = vpop.f32.mrf.mxu0
        %v1900 = vadd.f32 0.0, %v1899
        %1901 = vmatmul.bf16.gmra.mxu0 %v1564
        %v1902 = vpop.f32.mrf.mxu0
        %v1903 = vadd.f32 0.0, %v1902
        %v1904 = vpop.f32.mrf.mxu0
        %v1905 = vadd.f32 0.0, %v1904
        %1906 = vmatmul.bf16.gmra.mxu0 %v1567
        %v1907 = vpop.f32.mrf.mxu0
        %v1908 = vadd.f32 0.0, %v1907
        %v1909 = vpop.f32.mrf.mxu0
        %v1910 = vadd.f32 0.0, %v1909
        %1911 = vdwg.mxu0
        %1912 = vmatpush.bf16.msra.mxu0 0
        %1913 = vmatpush.bf16.msra.mxu0 0
        %1914 = vmatpush.bf16.msra.mxu0 0
        %1915 = vmatpush.bf16.msra.mxu0 0
        %1916 = vmatpush.bf16.msra.mxu0 %v1495
        %1917 = vmatpush.bf16.msra.mxu0 %v1479
        %1918 = vmatpush.bf16.msra.mxu0 %v1463
        %1919 = vmatpush.bf16.msra.mxu0 %v1447
        %1920 = vmatmul.bf16.gmra.mxu0 %v1546
        %v1921 = vpop.f32.mrf.mxu0
        %v1922 = vadd.f32 0.0, %v1921
        %v1923 = vpop.f32.mrf.mxu0
        %v1924 = vadd.f32 0.0, %v1923
        %1925 = vmatmul.bf16.gmra.mxu0 %v1549
        %v1926 = vpop.f32.mrf.mxu0
        %v1927 = vadd.f32 0.0, %v1926
        %v1928 = vpop.f32.mrf.mxu0
        %v1929 = vadd.f32 0.0, %v1928
        %1930 = vmatmul.bf16.gmra.mxu0 %v1552
        %v1931 = vpop.f32.mrf.mxu0
        %v1932 = vadd.f32 0.0, %v1931
        %v1933 = vpop.f32.mrf.mxu0
        %v1934 = vadd.f32 0.0, %v1933
        %1935 = vmatmul.bf16.gmra.mxu0 %v1555
        %v1936 = vpop.f32.mrf.mxu0
        %v1937 = vadd.f32 0.0, %v1936
        %v1938 = vpop.f32.mrf.mxu0
        %v1939 = vadd.f32 0.0, %v1938
        %1940 = vmatmul.bf16.gmra.mxu0 %v1558
        %v1941 = vpop.f32.mrf.mxu0
        %v1942 = vadd.f32 0.0, %v1941
        %v1943 = vpop.f32.mrf.mxu0
        %v1944 = vadd.f32 0.0, %v1943
        %1945 = vmatmul.bf16.gmra.mxu0 %v1561
        %v1946 = vpop.f32.mrf.mxu0
        %v1947 = vadd.f32 0.0, %v1946
        %v1948 = vpop.f32.mrf.mxu0
        %v1949 = vadd.f32 0.0, %v1948
        %1950 = vmatmul.bf16.gmra.mxu0 %v1564
        %v1951 = vpop.f32.mrf.mxu0
        %v1952 = vadd.f32 0.0, %v1951
        %v1953 = vpop.f32.mrf.mxu0
        %v1954 = vadd.f32 0.0, %v1953
        %1955 = vmatmul.bf16.gmra.mxu0 %v1567
        %v1956 = vpop.f32.mrf.mxu0
        %v1957 = vadd.f32 0.0, %v1956
        %v1958 = vpop.f32.mrf.mxu0
        %v1959 = vadd.f32 0.0, %v1958
        %1960 = vdwg.mxu0
        %1961 = vmatpush.bf16.msra.mxu0 0
        %1962 = vmatpush.bf16.msra.mxu0 0
        %1963 = vmatpush.bf16.msra.mxu0 0
        %1964 = vmatpush.bf16.msra.mxu0 0
        %1965 = vmatpush.bf16.msra.mxu0 %v1496
        %1966 = vmatpush.bf16.msra.mxu0 %v1480
        %1967 = vmatpush.bf16.msra.mxu0 %v1464
        %1968 = vmatpush.bf16.msra.mxu0 %v1448
        %1969 = vmatmul.bf16.gmra.mxu0 %v1546
        %v1970 = vpop.f32.mrf.mxu0
        %v1971 = vadd.f32 0.0, %v1970
        %v1972 = vpop.f32.mrf.mxu0
        %v1973 = vadd.f32 0.0, %v1972
        %1974 = vmatmul.bf16.gmra.mxu0 %v1549
        %v1975 = vpop.f32.mrf.mxu0
        %v1976 = vadd.f32 0.0, %v1975
        %v1977 = vpop.f32.mrf.mxu0
        %v1978 = vadd.f32 0.0, %v1977
        %1979 = vmatmul.bf16.gmra.mxu0 %v1552
        %v1980 = vpop.f32.mrf.mxu0
        %v1981 = vadd.f32 0.0, %v1980
        %v1982 = vpop.f32.mrf.mxu0
        %v1983 = vadd.f32 0.0, %v1982
        %1984 = vmatmul.bf16.gmra.mxu0 %v1555
        %v1985 = vpop.f32.mrf.mxu0
        %v1986 = vadd.f32 0.0, %v1985
        %v1987 = vpop.f32.mrf.mxu0
        %v1988 = vadd.f32 0.0, %v1987
        %1989 = vmatmul.bf16.gmra.mxu0 %v1558
        %v1990 = vpop.f32.mrf.mxu0
        %v1991 = vadd.f32 0.0, %v1990
        %v1992 = vpop.f32.mrf.mxu0
        %v1993 = vadd.f32 0.0, %v1992
        %1994 = vmatmul.bf16.gmra.mxu0 %v1561
        %v1995 = vpop.f32.mrf.mxu0
        %v1996 = vadd.f32 0.0, %v1995
        %v1997 = vpop.f32.mrf.mxu0
        %v1998 = vadd.f32 0.0, %v1997
        %1999 = vmatmul.bf16.gmra.mxu0 %v1564
        %v2000 = vpop.f32.mrf.mxu0
        %v2001 = vadd.f32 0.0, %v2000
        %v2002 = vpop.f32.mrf.mxu0
        %v2003 = vadd.f32 0.0, %v2002
        %2004 = vmatmul.bf16.gmra.mxu0 %v1567
        %v2005 = vpop.f32.mrf.mxu0
        %v2006 = vadd.f32 0.0, %v2005
        %v2007 = vpop.f32.mrf.mxu0
        %v2008 = vadd.f32 0.0, %v2007
        %2009 = vdwg.mxu0
        %2010 = vmatpush.bf16.msra.mxu0 0
        %2011 = vmatpush.bf16.msra.mxu0 0
        %2012 = vmatpush.bf16.msra.mxu0 0
        %2013 = vmatpush.bf16.msra.mxu0 0
        %2014 = vmatpush.bf16.msra.mxu0 %v1497
        %2015 = vmatpush.bf16.msra.mxu0 %v1481
        %2016 = vmatpush.bf16.msra.mxu0 %v1465
        %2017 = vmatpush.bf16.msra.mxu0 %v1449
        %2018 = vmatmul.bf16.gmra.mxu0 %v1546
        %v2019 = vpop.f32.mrf.mxu0
        %v2020 = vadd.f32 0.0, %v2019
        %v2021 = vpop.f32.mrf.mxu0
        %v2022 = vadd.f32 0.0, %v2021
        %2023 = vmatmul.bf16.gmra.mxu0 %v1549
        %v2024 = vpop.f32.mrf.mxu0
        %v2025 = vadd.f32 0.0, %v2024
        %v2026 = vpop.f32.mrf.mxu0
        %v2027 = vadd.f32 0.0, %v2026
        %2028 = vmatmul.bf16.gmra.mxu0 %v1552
        %v2029 = vpop.f32.mrf.mxu0
        %v2030 = vadd.f32 0.0, %v2029
        %v2031 = vpop.f32.mrf.mxu0
        %v2032 = vadd.f32 0.0, %v2031
        %2033 = vmatmul.bf16.gmra.mxu0 %v1555
        %v2034 = vpop.f32.mrf.mxu0
        %v2035 = vadd.f32 0.0, %v2034
        %v2036 = vpop.f32.mrf.mxu0
        %v2037 = vadd.f32 0.0, %v2036
        %2038 = vmatmul.bf16.gmra.mxu0 %v1558
        %v2039 = vpop.f32.mrf.mxu0
        %v2040 = vadd.f32 0.0, %v2039
        %v2041 = vpop.f32.mrf.mxu0
        %v2042 = vadd.f32 0.0, %v2041
        %2043 = vmatmul.bf16.gmra.mxu0 %v1561
        %v2044 = vpop.f32.mrf.mxu0
        %v2045 = vadd.f32 0.0, %v2044
        %v2046 = vpop.f32.mrf.mxu0
        %v2047 = vadd.f32 0.0, %v2046
        %2048 = vmatmul.bf16.gmra.mxu0 %v1564
        %v2049 = vpop.f32.mrf.mxu0
        %v2050 = vadd.f32 0.0, %v2049
        %v2051 = vpop.f32.mrf.mxu0
        %v2052 = vadd.f32 0.0, %v2051
        %2053 = vmatmul.bf16.gmra.mxu0 %v1567
        %v2054 = vpop.f32.mrf.mxu0
        %v2055 = vadd.f32 0.0, %v2054
        %v2056 = vpop.f32.mrf.mxu0
        %v2057 = vadd.f32 0.0, %v2056
        %2058 = vdwg.mxu0
        %2059 = vmatpush.bf16.msra.mxu0 0
        %2060 = vmatpush.bf16.msra.mxu0 0
        %2061 = vmatpush.bf16.msra.mxu0 0
        %2062 = vmatpush.bf16.msra.mxu0 0
        %2063 = vmatpush.bf16.msra.mxu0 %v1498
        %2064 = vmatpush.bf16.msra.mxu0 %v1482
        %2065 = vmatpush.bf16.msra.mxu0 %v1466
        %2066 = vmatpush.bf16.msra.mxu0 %v1450
        %2067 = vmatmul.bf16.gmra.mxu0 %v1546
        %v2068 = vpop.f32.mrf.mxu0
        %v2069 = vadd.f32 0.0, %v2068
        %v2070 = vpop.f32.mrf.mxu0
        %v2071 = vadd.f32 0.0, %v2070
        %2072 = vmatmul.bf16.gmra.mxu0 %v1549
        %v2073 = vpop.f32.mrf.mxu0
        %v2074 = vadd.f32 0.0, %v2073
        %v2075 = vpop.f32.mrf.mxu0
        %v2076 = vadd.f32 0.0, %v2075
        %2077 = vmatmul.bf16.gmra.mxu0 %v1552
        %v2078 = vpop.f32.mrf.mxu0
        %v2079 = vadd.f32 0.0, %v2078
        %v2080 = vpop.f32.mrf.mxu0
        %v2081 = vadd.f32 0.0, %v2080
        %2082 = vmatmul.bf16.gmra.mxu0 %v1555
        %v2083 = vpop.f32.mrf.mxu0
        %v2084 = vadd.f32 0.0, %v2083
        %v2085 = vpop.f32.mrf.mxu0
        %v2086 = vadd.f32 0.0, %v2085
        %2087 = vmatmul.bf16.gmra.mxu0 %v1558
        %v2088 = vpop.f32.mrf.mxu0
        %v2089 = vadd.f32 0.0, %v2088
        %v2090 = vpop.f32.mrf.mxu0
        %v2091 = vadd.f32 0.0, %v2090
        %2092 = vmatmul.bf16.gmra.mxu0 %v1561
        %v2093 = vpop.f32.mrf.mxu0
        %v2094 = vadd.f32 0.0, %v2093
        %v2095 = vpop.f32.mrf.mxu0
        %v2096 = vadd.f32 0.0, %v2095
        %2097 = vmatmul.bf16.gmra.mxu0 %v1564
        %v2098 = vpop.f32.mrf.mxu0
        %v2099 = vadd.f32 0.0, %v2098
        %v2100 = vpop.f32.mrf.mxu0
        %v2101 = vadd.f32 0.0, %v2100
        %2102 = vmatmul.bf16.gmra.mxu0 %v1567
        %v2103 = vpop.f32.mrf.mxu0
        %v2104 = vadd.f32 0.0, %v2103
        %v2105 = vpop.f32.mrf.mxu0
        %v2106 = vadd.f32 0.0, %v2105
        %2107 = vdwg.mxu0
        %2108 = vmatpush.bf16.msra.mxu0 0
        %2109 = vmatpush.bf16.msra.mxu0 0
        %2110 = vmatpush.bf16.msra.mxu0 0
        %2111 = vmatpush.bf16.msra.mxu0 0
        %2112 = vmatpush.bf16.msra.mxu0 %v1499
        %2113 = vmatpush.bf16.msra.mxu0 %v1483
        %2114 = vmatpush.bf16.msra.mxu0 %v1467
        %2115 = vmatpush.bf16.msra.mxu0 %v1451
        %2116 = vmatmul.bf16.gmra.mxu0 %v1546
        %v2117 = vpop.f32.mrf.mxu0
        %v2118 = vadd.f32 0.0, %v2117
        %v2119 = vpop.f32.mrf.mxu0
        %v2120 = vadd.f32 0.0, %v2119
        %2121 = vmatmul.bf16.gmra.mxu0 %v1549
        %v2122 = vpop.f32.mrf.mxu0
        %v2123 = vadd.f32 0.0, %v2122
        %v2124 = vpop.f32.mrf.mxu0
        %v2125 = vadd.f32 0.0, %v2124
        %2126 = vmatmul.bf16.gmra.mxu0 %v1552
        %v2127 = vpop.f32.mrf.mxu0
        %v2128 = vadd.f32 0.0, %v2127
        %v2129 = vpop.f32.mrf.mxu0
        %v2130 = vadd.f32 0.0, %v2129
        %2131 = vmatmul.bf16.gmra.mxu0 %v1555
        %v2132 = vpop.f32.mrf.mxu0
        %v2133 = vadd.f32 0.0, %v2132
        %v2134 = vpop.f32.mrf.mxu0
        %v2135 = vadd.f32 0.0, %v2134
        %2136 = vmatmul.bf16.gmra.mxu0 %v1558
        %v2137 = vpop.f32.mrf.mxu0
        %v2138 = vadd.f32 0.0, %v2137
        %v2139 = vpop.f32.mrf.mxu0
        %v2140 = vadd.f32 0.0, %v2139
        %2141 = vmatmul.bf16.gmra.mxu0 %v1561
        %v2142 = vpop.f32.mrf.mxu0
        %v2143 = vadd.f32 0.0, %v2142
        %v2144 = vpop.f32.mrf.mxu0
        %v2145 = vadd.f32 0.0, %v2144
        %2146 = vmatmul.bf16.gmra.mxu0 %v1564
        %v2147 = vpop.f32.mrf.mxu0
        %v2148 = vadd.f32 0.0, %v2147
        %v2149 = vpop.f32.mrf.mxu0
        %v2150 = vadd.f32 0.0, %v2149
        %2151 = vmatmul.bf16.gmra.mxu0 %v1567
        %v2152 = vpop.f32.mrf.mxu0
        %v2153 = vadd.f32 0.0, %v2152
        %v2154 = vpop.f32.mrf.mxu0
        %v2155 = vadd.f32 0.0, %v2154
        %2156 = vdwg.mxu0
        %2157 = vmatpush.bf16.msra.mxu0 0
        %2158 = vmatpush.bf16.msra.mxu0 0
        %2159 = vmatpush.bf16.msra.mxu0 0
        %2160 = vmatpush.bf16.msra.mxu0 0
        %2161 = vmatpush.bf16.msra.mxu0 %v1500
        %2162 = vmatpush.bf16.msra.mxu0 %v1484
        %2163 = vmatpush.bf16.msra.mxu0 %v1468
        %2164 = vmatpush.bf16.msra.mxu0 %v1452
        %2165 = vmatmul.bf16.gmra.mxu0 %v1546
        %v2166 = vpop.f32.mrf.mxu0
        %v2167 = vadd.f32 0.0, %v2166
        %v2168 = vpop.f32.mrf.mxu0
        %v2169 = vadd.f32 0.0, %v2168
        %2170 = vmatmul.bf16.gmra.mxu0 %v1549
        %v2171 = vpop.f32.mrf.mxu0
        %v2172 = vadd.f32 0.0, %v2171
        %v2173 = vpop.f32.mrf.mxu0
        %v2174 = vadd.f32 0.0, %v2173
        %2175 = vmatmul.bf16.gmra.mxu0 %v1552
        %v2176 = vpop.f32.mrf.mxu0
        %v2177 = vadd.f32 0.0, %v2176
        %v2178 = vpop.f32.mrf.mxu0
        %v2179 = vadd.f32 0.0, %v2178
        %2180 = vmatmul.bf16.gmra.mxu0 %v1555
        %v2181 = vpop.f32.mrf.mxu0
        %v2182 = vadd.f32 0.0, %v2181
        %v2183 = vpop.f32.mrf.mxu0
        %v2184 = vadd.f32 0.0, %v2183
        %2185 = vmatmul.bf16.gmra.mxu0 %v1558
        %v2186 = vpop.f32.mrf.mxu0
        %v2187 = vadd.f32 0.0, %v2186
        %v2188 = vpop.f32.mrf.mxu0
        %v2189 = vadd.f32 0.0, %v2188
        %2190 = vmatmul.bf16.gmra.mxu0 %v1561
        %v2191 = vpop.f32.mrf.mxu0
        %v2192 = vadd.f32 0.0, %v2191
        %v2193 = vpop.f32.mrf.mxu0
        %v2194 = vadd.f32 0.0, %v2193
        %2195 = vmatmul.bf16.gmra.mxu0 %v1564
        %v2196 = vpop.f32.mrf.mxu0
        %v2197 = vadd.f32 0.0, %v2196
        %v2198 = vpop.f32.mrf.mxu0
        %v2199 = vadd.f32 0.0, %v2198
        %2200 = vmatmul.bf16.gmra.mxu0 %v1567
        %v2201 = vpop.f32.mrf.mxu0
        %v2202 = vadd.f32 0.0, %v2201
        %v2203 = vpop.f32.mrf.mxu0
        %v2204 = vadd.f32 0.0, %v2203
        %2205 = vdwg.mxu0
        %2206 = vmatpush.bf16.msra.mxu0 0
        %2207 = vmatpush.bf16.msra.mxu0 0
        %2208 = vmatpush.bf16.msra.mxu0 0
        %2209 = vmatpush.bf16.msra.mxu0 0
        %2210 = vmatpush.bf16.msra.mxu0 %v1501
        %2211 = vmatpush.bf16.msra.mxu0 %v1485
        %2212 = vmatpush.bf16.msra.mxu0 %v1469
        %2213 = vmatpush.bf16.msra.mxu0 %v1453
        %2214 = vmatmul.bf16.gmra.mxu0 %v1546
        %v2215 = vpop.f32.mrf.mxu0
        %v2216 = vadd.f32 0.0, %v2215
        %v2217 = vpop.f32.mrf.mxu0
        %v2218 = vadd.f32 0.0, %v2217
        %2219 = vmatmul.bf16.gmra.mxu0 %v1549
        %v2220 = vpop.f32.mrf.mxu0
        %v2221 = vadd.f32 0.0, %v2220
        %v2222 = vpop.f32.mrf.mxu0
        %v2223 = vadd.f32 0.0, %v2222
        %2224 = vmatmul.bf16.gmra.mxu0 %v1552
        %v2225 = vpop.f32.mrf.mxu0
        %v2226 = vadd.f32 0.0, %v2225
        %v2227 = vpop.f32.mrf.mxu0
        %v2228 = vadd.f32 0.0, %v2227
        %2229 = vmatmul.bf16.gmra.mxu0 %v1555
        %v2230 = vpop.f32.mrf.mxu0
        %v2231 = vadd.f32 0.0, %v2230
        %v2232 = vpop.f32.mrf.mxu0
        %v2233 = vadd.f32 0.0, %v2232
        %2234 = vmatmul.bf16.gmra.mxu0 %v1558
        %v2235 = vpop.f32.mrf.mxu0
        %v2236 = vadd.f32 0.0, %v2235
        %v2237 = vpop.f32.mrf.mxu0
        %v2238 = vadd.f32 0.0, %v2237
        %2239 = vmatmul.bf16.gmra.mxu0 %v1561
        %v2240 = vpop.f32.mrf.mxu0
        %v2241 = vadd.f32 0.0, %v2240
        %v2242 = vpop.f32.mrf.mxu0
        %v2243 = vadd.f32 0.0, %v2242
        %2244 = vmatmul.bf16.gmra.mxu0 %v1564
        %v2245 = vpop.f32.mrf.mxu0
        %v2246 = vadd.f32 0.0, %v2245
        %v2247 = vpop.f32.mrf.mxu0
        %v2248 = vadd.f32 0.0, %v2247
        %2249 = vmatmul.bf16.gmra.mxu0 %v1567
        %v2250 = vpop.f32.mrf.mxu0
        %v2251 = vadd.f32 0.0, %v2250
        %v2252 = vpop.f32.mrf.mxu0
        %v2253 = vadd.f32 0.0, %v2252
        %2254 = vdwg.mxu0
        %2255 = vmatpush.bf16.msra.mxu0 0
        %2256 = vmatpush.bf16.msra.mxu0 0
        %2257 = vmatpush.bf16.msra.mxu0 0
        %2258 = vmatpush.bf16.msra.mxu0 0
        %2259 = vmatpush.bf16.msra.mxu0 %v1502
        %2260 = vmatpush.bf16.msra.mxu0 %v1486
        %2261 = vmatpush.bf16.msra.mxu0 %v1470
        %2262 = vmatpush.bf16.msra.mxu0 %v1454
        %2263 = vmatmul.bf16.gmra.mxu0 %v1546
        %v2264 = vpop.f32.mrf.mxu0
        %v2265 = vadd.f32 0.0, %v2264
        %v2266 = vpop.f32.mrf.mxu0
        %v2267 = vadd.f32 0.0, %v2266
        %2268 = vmatmul.bf16.gmra.mxu0 %v1549
        %v2269 = vpop.f32.mrf.mxu0
        %v2270 = vadd.f32 0.0, %v2269
        %v2271 = vpop.f32.mrf.mxu0
        %v2272 = vadd.f32 0.0, %v2271
        %2273 = vmatmul.bf16.gmra.mxu0 %v1552
        %v2274 = vpop.f32.mrf.mxu0
        %v2275 = vadd.f32 0.0, %v2274
        %v2276 = vpop.f32.mrf.mxu0
        %v2277 = vadd.f32 0.0, %v2276
        %2278 = vmatmul.bf16.gmra.mxu0 %v1555
        %v2279 = vpop.f32.mrf.mxu0
        %v2280 = vadd.f32 0.0, %v2279
        %v2281 = vpop.f32.mrf.mxu0
        %v2282 = vadd.f32 0.0, %v2281
        %2283 = vmatmul.bf16.gmra.mxu0 %v1558
        %v2284 = vpop.f32.mrf.mxu0
        %v2285 = vadd.f32 0.0, %v2284
        %v2286 = vpop.f32.mrf.mxu0
        %v2287 = vadd.f32 0.0, %v2286
        %2288 = vmatmul.bf16.gmra.mxu0 %v1561
        %v2289 = vpop.f32.mrf.mxu0
        %v2290 = vadd.f32 0.0, %v2289
        %v2291 = vpop.f32.mrf.mxu0
        %v2292 = vadd.f32 0.0, %v2291
        %2293 = vmatmul.bf16.gmra.mxu0 %v1564
        %v2294 = vpop.f32.mrf.mxu0
        %v2295 = vadd.f32 0.0, %v2294
        %v2296 = vpop.f32.mrf.mxu0
        %v2297 = vadd.f32 0.0, %v2296
        %2298 = vmatmul.bf16.gmra.mxu0 %v1567
        %v2299 = vpop.f32.mrf.mxu0
        %v2300 = vadd.f32 0.0, %v2299
        %v2301 = vpop.f32.mrf.mxu0
        %v2302 = vadd.f32 0.0, %v2301
        %2303 = vdwg.mxu0
        %2304 = vmatpush.bf16.msra.mxu0 0
        %2305 = vmatpush.bf16.msra.mxu0 0
        %2306 = vmatpush.bf16.msra.mxu0 0
        %2307 = vmatpush.bf16.msra.mxu0 0
        %2308 = vmatpush.bf16.msra.mxu0 %v1503
        %2309 = vmatpush.bf16.msra.mxu0 %v1487
        %2310 = vmatpush.bf16.msra.mxu0 %v1471
        %2311 = vmatpush.bf16.msra.mxu0 %v1455
        %2312 = vmatmul.bf16.gmra.mxu0 %v1546
        %v2313 = vpop.f32.mrf.mxu0
        %v2314 = vadd.f32 0.0, %v2313
        %v2315 = vpop.f32.mrf.mxu0
        %v2316 = vadd.f32 0.0, %v2315
        %2317 = vmatmul.bf16.gmra.mxu0 %v1549
        %v2318 = vpop.f32.mrf.mxu0
        %v2319 = vadd.f32 0.0, %v2318
        %v2320 = vpop.f32.mrf.mxu0
        %v2321 = vadd.f32 0.0, %v2320
        %2322 = vmatmul.bf16.gmra.mxu0 %v1552
        %v2323 = vpop.f32.mrf.mxu0
        %v2324 = vadd.f32 0.0, %v2323
        %v2325 = vpop.f32.mrf.mxu0
        %v2326 = vadd.f32 0.0, %v2325
        %2327 = vmatmul.bf16.gmra.mxu0 %v1555
        %v2328 = vpop.f32.mrf.mxu0
        %v2329 = vadd.f32 0.0, %v2328
        %v2330 = vpop.f32.mrf.mxu0
        %v2331 = vadd.f32 0.0, %v2330
        %2332 = vmatmul.bf16.gmra.mxu0 %v1558
        %v2333 = vpop.f32.mrf.mxu0
        %v2334 = vadd.f32 0.0, %v2333
        %v2335 = vpop.f32.mrf.mxu0
        %v2336 = vadd.f32 0.0, %v2335
        %2337 = vmatmul.bf16.gmra.mxu0 %v1561
        %v2338 = vpop.f32.mrf.mxu0
        %v2339 = vadd.f32 0.0, %v2338
        %v2340 = vpop.f32.mrf.mxu0
        %v2341 = vadd.f32 0.0, %v2340
        %2342 = vmatmul.bf16.gmra.mxu0 %v1564
        %v2343 = vpop.f32.mrf.mxu0
        %v2344 = vadd.f32 0.0, %v2343
        %v2345 = vpop.f32.mrf.mxu0
        %v2346 = vadd.f32 0.0, %v2345
        %2347 = vmatmul.bf16.gmra.mxu0 %v1567
        %v2348 = vpop.f32.mrf.mxu0
        %v2349 = vadd.f32 0.0, %v2348
        %v2350 = vpop.f32.mrf.mxu0
        %v2351 = vadd.f32 0.0, %v2350
        %2352 = vdwg.mxu0
        %p2353 = scmp.eq.s32.totalorder %s25, 0
        %p2354 = scmp.eq.s32.totalorder %s25, 1
        %p2355 = scmp.eq.s32.totalorder %s26, 0
        %p2356 = pnand %p2353, %p2355
        %p2357 = pneg %p2356
        // Predicated region
        $region49: #{tpu_custom_call.1} parent=47 // pred_check
          _
        $region50: #{tpu_custom_call.1} parent=47 // pred_check_branch
          %2359 = sbr.rel (%p2356) target = $region52
        $region51: #{tpu_custom_call.1} parent=47 // pred_region
          %vm2360 = vcmask 15360
          %2361 = vst.msk [vmem:[#allocation2] sm:$0xff] %vm2360, 0.0
          %2362 = vst.msk [vmem:[#allocation2 + $0x8] sm:$0xff] %vm2360, 0.0
          %2363 = vst.msk [vmem:[#allocation2 + $0x10] sm:$0xff] %vm2360, 0.0
          %2364 = vst.msk [vmem:[#allocation2 + $0x18] sm:$0xff] %vm2360, 0.0
          %2365 = vst.msk [vmem:[#allocation2 + $0x20] sm:$0xff] %vm2360, 0.0
          %2366 = vst.msk [vmem:[#allocation2 + $0x28] sm:$0xff] %vm2360, 0.0
          %2367 = vst.msk [vmem:[#allocation2 + $0x30] sm:$0xff] %vm2360, 0.0
          %2368 = vst.msk [vmem:[#allocation2 + $0x38] sm:$0xff] %vm2360, 0.0
          %2369 = vst.msk [vmem:[#allocation2 + $0x40] sm:$0xff] %vm2360, 0.0
          %2370 = vst.msk [vmem:[#allocation2 + $0x48] sm:$0xff] %vm2360, 0.0
          %2371 = vst.msk [vmem:[#allocation2 + $0x50] sm:$0xff] %vm2360, 0.0
          %2372 = vst.msk [vmem:[#allocation2 + $0x58] sm:$0xff] %vm2360, 0.0
          %2373 = vst.msk [vmem:[#allocation2 + $0x60] sm:$0xff] %vm2360, 0.0
          %2374 = vst.msk [vmem:[#allocation2 + $0x68] sm:$0xff] %vm2360, 0.0
          %2375 = vst.msk [vmem:[#allocation2 + $0x70] sm:$0xff] %vm2360, 0.0
          %2376 = vst.msk [vmem:[#allocation2 + $0x78] sm:$0xff] %vm2360, 0.0
        $region52: #{tpu_custom_call.1} parent=47 // pred_fallthru
          _
        // Predicated region
        $region53: #{tpu_custom_call.1} parent=47 // pred_check
          %p2377 = pneg %p2353
        $region54: #{tpu_custom_call.1} parent=47 // pred_check_branch
          %2379 = sbr.rel (%p2377) target = $region56
        $region55: #{tpu_custom_call.1} parent=47 // pred_region
          %v2380 = vld [vmem:[#allocation2] sm:$0xff]
          %v2381 = vld [vmem:[#allocation2 + $0x8] sm:$0xff]
          %v2382 = vld [vmem:[#allocation2 + $0x10] sm:$0xff]
          %v2383 = vld [vmem:[#allocation2 + $0x18] sm:$0xff]
          %v2384 = vld [vmem:[#allocation2 + $0x20] sm:$0xff]
          %v2385 = vld [vmem:[#allocation2 + $0x28] sm:$0xff]
          %v2386 = vld [vmem:[#allocation2 + $0x30] sm:$0xff]
          %v2387 = vld [vmem:[#allocation2 + $0x38] sm:$0xff]
          %v2388 = vld [vmem:[#allocation2 + $0x40] sm:$0xff]
          %v2389 = vld [vmem:[#allocation2 + $0x48] sm:$0xff]
          %v2390 = vld [vmem:[#allocation2 + $0x50] sm:$0xff]
          %v2391 = vld [vmem:[#allocation2 + $0x58] sm:$0xff]
          %v2392 = vld [vmem:[#allocation2 + $0x60] sm:$0xff]
          %v2393 = vld [vmem:[#allocation2 + $0x68] sm:$0xff]
          %v2394 = vld [vmem:[#allocation2 + $0x70] sm:$0xff]
          %v2395 = vld [vmem:[#allocation2 + $0x78] sm:$0xff]
          %v2396 = vadd.f32 %v1579, %v1628
          %v2397 = vadd.f32 %v2396, %v1677
          %v2398 = vadd.f32 %v2397, %v1726
          %v2399 = vadd.f32 %v2398, %v1775
          %v2400 = vadd.f32 %v2399, %v1824
          %v2401 = vadd.f32 %v2400, %v1873
          %v2402 = vadd.f32 %v2401, %v1922
          %v2403 = vadd.f32 %v2402, %v1971
          %v2404 = vadd.f32 %v2403, %v2020
          %v2405 = vadd.f32 %v2404, %v2069
          %v2406 = vadd.f32 %v2405, %v2118
          %v2407 = vadd.f32 %v2406, %v2167
          %v2408 = vadd.f32 %v2407, %v2216
          %v2409 = vadd.f32 %v2408, %v2265
          %v2410 = vadd.f32 %v2409, %v2314
          %2411 = vadd.xlane.f32.xlu0 %v2410
          %v2412 = vpop.xlane.xlu0 %2411
          %v2413 = vadd.f32 %v1581, %v1630
          %v2414 = vadd.f32 %v2413, %v1679
          %v2415 = vadd.f32 %v2414, %v1728
          %v2416 = vadd.f32 %v2415, %v1777
          %v2417 = vadd.f32 %v2416, %v1826
          %v2418 = vadd.f32 %v2417, %v1875
          %v2419 = vadd.f32 %v2418, %v1924
          %v2420 = vadd.f32 %v2419, %v1973
          %v2421 = vadd.f32 %v2420, %v2022
          %v2422 = vadd.f32 %v2421, %v2071
          %v2423 = vadd.f32 %v2422, %v2120
          %v2424 = vadd.f32 %v2423, %v2169
          %v2425 = vadd.f32 %v2424, %v2218
          %v2426 = vadd.f32 %v2425, %v2267
          %v2427 = vadd.f32 %v2426, %v2316
          %2428 = vadd.xlane.f32.xlu0 %v2427
          %v2429 = vpop.xlane.xlu0 %2428
          %v2430 = vadd.f32 %v1584, %v1633
          %v2431 = vadd.f32 %v2430, %v1682
          %v2432 = vadd.f32 %v2431, %v1731
          %v2433 = vadd.f32 %v2432, %v1780
          %v2434 = vadd.f32 %v2433, %v1829
          %v2435 = vadd.f32 %v2434, %v1878
          %v2436 = vadd.f32 %v2435, %v1927
          %v2437 = vadd.f32 %v2436, %v1976
          %v2438 = vadd.f32 %v2437, %v2025
          %v2439 = vadd.f32 %v2438, %v2074
          %v2440 = vadd.f32 %v2439, %v2123
          %v2441 = vadd.f32 %v2440, %v2172
          %v2442 = vadd.f32 %v2441, %v2221
          %v2443 = vadd.f32 %v2442, %v2270
          %v2444 = vadd.f32 %v2443, %v2319
          %2445 = vadd.xlane.f32.xlu0 %v2444
          %v2446 = vpop.xlane.xlu0 %2445
          %v2447 = vadd.f32 %v1586, %v1635
          %v2448 = vadd.f32 %v2447, %v1684
          %v2449 = vadd.f32 %v2448, %v1733
          %v2450 = vadd.f32 %v2449, %v1782
          %v2451 = vadd.f32 %v2450, %v1831
          %v2452 = vadd.f32 %v2451, %v1880
          %v2453 = vadd.f32 %v2452, %v1929
          %v2454 = vadd.f32 %v2453, %v1978
          %v2455 = vadd.f32 %v2454, %v2027
          %v2456 = vadd.f32 %v2455, %v2076
          %v2457 = vadd.f32 %v2456, %v2125
          %v2458 = vadd.f32 %v2457, %v2174
          %v2459 = vadd.f32 %v2458, %v2223
          %v2460 = vadd.f32 %v2459, %v2272
          %v2461 = vadd.f32 %v2460, %v2321
          %2462 = vadd.xlane.f32.xlu0 %v2461
          %v2463 = vpop.xlane.xlu0 %2462
          %v2464 = vadd.f32 %v1589, %v1638
          %v2465 = vadd.f32 %v2464, %v1687
          %v2466 = vadd.f32 %v2465, %v1736
          %v2467 = vadd.f32 %v2466, %v1785
          %v2468 = vadd.f32 %v2467, %v1834
          %v2469 = vadd.f32 %v2468, %v1883
          %v2470 = vadd.f32 %v2469, %v1932
          %v2471 = vadd.f32 %v2470, %v1981
          %v2472 = vadd.f32 %v2471, %v2030
          %v2473 = vadd.f32 %v2472, %v2079
          %v2474 = vadd.f32 %v2473, %v2128
          %v2475 = vadd.f32 %v2474, %v2177
          %v2476 = vadd.f32 %v2475, %v2226
          %v2477 = vadd.f32 %v2476, %v2275
          %v2478 = vadd.f32 %v2477, %v2324
          %2479 = vadd.xlane.f32.xlu0 %v2478
          %v2480 = vpop.xlane.xlu0 %2479
          %v2481 = vadd.f32 %v1591, %v1640
          %v2482 = vadd.f32 %v2481, %v1689
          %v2483 = vadd.f32 %v2482, %v1738
          %v2484 = vadd.f32 %v2483, %v1787
          %v2485 = vadd.f32 %v2484, %v1836
          %v2486 = vadd.f32 %v2485, %v1885
          %v2487 = vadd.f32 %v2486, %v1934
          %v2488 = vadd.f32 %v2487, %v1983
          %v2489 = vadd.f32 %v2488, %v2032
          %v2490 = vadd.f32 %v2489, %v2081
          %v2491 = vadd.f32 %v2490, %v2130
          %v2492 = vadd.f32 %v2491, %v2179
          %v2493 = vadd.f32 %v2492, %v2228
          %v2494 = vadd.f32 %v2493, %v2277
          %v2495 = vadd.f32 %v2494, %v2326
          %2496 = vadd.xlane.f32.xlu0 %v2495
          %v2497 = vpop.xlane.xlu0 %2496
          %v2498 = vadd.f32 %v1594, %v1643
          %v2499 = vadd.f32 %v2498, %v1692
          %v2500 = vadd.f32 %v2499, %v1741
          %v2501 = vadd.f32 %v2500, %v1790
          %v2502 = vadd.f32 %v2501, %v1839
          %v2503 = vadd.f32 %v2502, %v1888
          %v2504 = vadd.f32 %v2503, %v1937
          %v2505 = vadd.f32 %v2504, %v1986
          %v2506 = vadd.f32 %v2505, %v2035
          %v2507 = vadd.f32 %v2506, %v2084
          %v2508 = vadd.f32 %v2507, %v2133
          %v2509 = vadd.f32 %v2508, %v2182
          %v2510 = vadd.f32 %v2509, %v2231
          %v2511 = vadd.f32 %v2510, %v2280
          %v2512 = vadd.f32 %v2511, %v2329
          %2513 = vadd.xlane.f32.xlu0 %v2512
          %v2514 = vpop.xlane.xlu0 %2513
          %v2515 = vadd.f32 %v1596, %v1645
          %v2516 = vadd.f32 %v2515, %v1694
          %v2517 = vadd.f32 %v2516, %v1743
          %v2518 = vadd.f32 %v2517, %v1792
          %v2519 = vadd.f32 %v2518, %v1841
          %v2520 = vadd.f32 %v2519, %v1890
          %v2521 = vadd.f32 %v2520, %v1939
          %v2522 = vadd.f32 %v2521, %v1988
          %v2523 = vadd.f32 %v2522, %v2037
          %v2524 = vadd.f32 %v2523, %v2086
          %v2525 = vadd.f32 %v2524, %v2135
          %v2526 = vadd.f32 %v2525, %v2184
          %v2527 = vadd.f32 %v2526, %v2233
          %v2528 = vadd.f32 %v2527, %v2282
          %v2529 = vadd.f32 %v2528, %v2331
          %2530 = vadd.xlane.f32.xlu0 %v2529
          %v2531 = vpop.xlane.xlu0 %2530
          %v2532 = vadd.f32 %v1599, %v1648
          %v2533 = vadd.f32 %v2532, %v1697
          %v2534 = vadd.f32 %v2533, %v1746
          %v2535 = vadd.f32 %v2534, %v1795
          %v2536 = vadd.f32 %v2535, %v1844
          %v2537 = vadd.f32 %v2536, %v1893
          %v2538 = vadd.f32 %v2537, %v1942
          %v2539 = vadd.f32 %v2538, %v1991
          %v2540 = vadd.f32 %v2539, %v2040
          %v2541 = vadd.f32 %v2540, %v2089
          %v2542 = vadd.f32 %v2541, %v2138
          %v2543 = vadd.f32 %v2542, %v2187
          %v2544 = vadd.f32 %v2543, %v2236
          %v2545 = vadd.f32 %v2544, %v2285
          %v2546 = vadd.f32 %v2545, %v2334
          %2547 = vadd.xlane.f32.xlu0 %v2546
          %v2548 = vpop.xlane.xlu0 %2547
          %v2549 = vadd.f32 %v1601, %v1650
          %v2550 = vadd.f32 %v2549, %v1699
          %v2551 = vadd.f32 %v2550, %v1748
          %v2552 = vadd.f32 %v2551, %v1797
          %v2553 = vadd.f32 %v2552, %v1846
          %v2554 = vadd.f32 %v2553, %v1895
          %v2555 = vadd.f32 %v2554, %v1944
          %v2556 = vadd.f32 %v2555, %v1993
          %v2557 = vadd.f32 %v2556, %v2042
          %v2558 = vadd.f32 %v2557, %v2091
          %v2559 = vadd.f32 %v2558, %v2140
          %v2560 = vadd.f32 %v2559, %v2189
          %v2561 = vadd.f32 %v2560, %v2238
          %v2562 = vadd.f32 %v2561, %v2287
          %v2563 = vadd.f32 %v2562, %v2336
          %2564 = vadd.xlane.f32.xlu0 %v2563
          %v2565 = vpop.xlane.xlu0 %2564
          %v2566 = vadd.f32 %v1604, %v1653
          %v2567 = vadd.f32 %v2566, %v1702
          %v2568 = vadd.f32 %v2567, %v1751
          %v2569 = vadd.f32 %v2568, %v1800
          %v2570 = vadd.f32 %v2569, %v1849
          %v2571 = vadd.f32 %v2570, %v1898
          %v2572 = vadd.f32 %v2571, %v1947
          %v2573 = vadd.f32 %v2572, %v1996
          %v2574 = vadd.f32 %v2573, %v2045
          %v2575 = vadd.f32 %v2574, %v2094
          %v2576 = vadd.f32 %v2575, %v2143
          %v2577 = vadd.f32 %v2576, %v2192
          %v2578 = vadd.f32 %v2577, %v2241
          %v2579 = vadd.f32 %v2578, %v2290
          %v2580 = vadd.f32 %v2579, %v2339
          %2581 = vadd.xlane.f32.xlu0 %v2580
          %v2582 = vpop.xlane.xlu0 %2581
          %v2583 = vadd.f32 %v1606, %v1655
          %v2584 = vadd.f32 %v2583, %v1704
          %v2585 = vadd.f32 %v2584, %v1753
          %v2586 = vadd.f32 %v2585, %v1802
          %v2587 = vadd.f32 %v2586, %v1851
          %v2588 = vadd.f32 %v2587, %v1900
          %v2589 = vadd.f32 %v2588, %v1949
          %v2590 = vadd.f32 %v2589, %v1998
          %v2591 = vadd.f32 %v2590, %v2047
          %v2592 = vadd.f32 %v2591, %v2096
          %v2593 = vadd.f32 %v2592, %v2145
          %v2594 = vadd.f32 %v2593, %v2194
          %v2595 = vadd.f32 %v2594, %v2243
          %v2596 = vadd.f32 %v2595, %v2292
          %v2597 = vadd.f32 %v2596, %v2341
          %2598 = vadd.xlane.f32.xlu0 %v2597
          %v2599 = vpop.xlane.xlu0 %2598
          %v2600 = vadd.f32 %v1609, %v1658
          %v2601 = vadd.f32 %v2600, %v1707
          %v2602 = vadd.f32 %v2601, %v1756
          %v2603 = vadd.f32 %v2602, %v1805
          %v2604 = vadd.f32 %v2603, %v1854
          %v2605 = vadd.f32 %v2604, %v1903
          %v2606 = vadd.f32 %v2605, %v1952
          %v2607 = vadd.f32 %v2606, %v2001
          %v2608 = vadd.f32 %v2607, %v2050
          %v2609 = vadd.f32 %v2608, %v2099
          %v2610 = vadd.f32 %v2609, %v2148
          %v2611 = vadd.f32 %v2610, %v2197
          %v2612 = vadd.f32 %v2611, %v2246
          %v2613 = vadd.f32 %v2612, %v2295
          %v2614 = vadd.f32 %v2613, %v2344
          %2615 = vadd.xlane.f32.xlu0 %v2614
          %v2616 = vpop.xlane.xlu0 %2615
          %v2617 = vadd.f32 %v1611, %v1660
          %v2618 = vadd.f32 %v2617, %v1709
          %v2619 = vadd.f32 %v2618, %v1758
          %v2620 = vadd.f32 %v2619, %v1807
          %v2621 = vadd.f32 %v2620, %v1856
          %v2622 = vadd.f32 %v2621, %v1905
          %v2623 = vadd.f32 %v2622, %v1954
          %v2624 = vadd.f32 %v2623, %v2003
          %v2625 = vadd.f32 %v2624, %v2052
          %v2626 = vadd.f32 %v2625, %v2101
          %v2627 = vadd.f32 %v2626, %v2150
          %v2628 = vadd.f32 %v2627, %v2199
          %v2629 = vadd.f32 %v2628, %v2248
          %v2630 = vadd.f32 %v2629, %v2297
          %v2631 = vadd.f32 %v2630, %v2346
          %2632 = vadd.xlane.f32.xlu0 %v2631
          %v2633 = vpop.xlane.xlu0 %2632
          %v2634 = vadd.f32 %v1614, %v1663
          %v2635 = vadd.f32 %v2634, %v1712
          %v2636 = vadd.f32 %v2635, %v1761
          %v2637 = vadd.f32 %v2636, %v1810
          %v2638 = vadd.f32 %v2637, %v1859
          %v2639 = vadd.f32 %v2638, %v1908
          %v2640 = vadd.f32 %v2639, %v1957
          %v2641 = vadd.f32 %v2640, %v2006
          %v2642 = vadd.f32 %v2641, %v2055
          %v2643 = vadd.f32 %v2642, %v2104
          %v2644 = vadd.f32 %v2643, %v2153
          %v2645 = vadd.f32 %v2644, %v2202
          %v2646 = vadd.f32 %v2645, %v2251
          %v2647 = vadd.f32 %v2646, %v2300
          %v2648 = vadd.f32 %v2647, %v2349
          %2649 = vadd.xlane.f32.xlu0 %v2648
          %v2650 = vpop.xlane.xlu0 %2649
          %v2651 = vadd.f32 %v1616, %v1665
          %v2652 = vadd.f32 %v2651, %v1714
          %v2653 = vadd.f32 %v2652, %v1763
          %v2654 = vadd.f32 %v2653, %v1812
          %v2655 = vadd.f32 %v2654, %v1861
          %v2656 = vadd.f32 %v2655, %v1910
          %v2657 = vadd.f32 %v2656, %v1959
          %v2658 = vadd.f32 %v2657, %v2008
          %v2659 = vadd.f32 %v2658, %v2057
          %v2660 = vadd.f32 %v2659, %v2106
          %v2661 = vadd.f32 %v2660, %v2155
          %v2662 = vadd.f32 %v2661, %v2204
          %v2663 = vadd.f32 %v2662, %v2253
          %v2664 = vadd.f32 %v2663, %v2302
          %v2665 = vadd.f32 %v2664, %v2351
          %2666 = vadd.xlane.f32.xlu0 %v2665
          %v2667 = vpop.xlane.xlu0 %2666
          %v2668 = vadd.f32 %v2380, %v2412
          %v2669 = vadd.f32 %v2381, %v2429
          %v2670 = vadd.f32 %v2382, %v2446
          %v2671 = vadd.f32 %v2383, %v2463
          %v2672 = vadd.f32 %v2384, %v2480
          %v2673 = vadd.f32 %v2385, %v2497
          %v2674 = vadd.f32 %v2386, %v2514
          %v2675 = vadd.f32 %v2387, %v2531
          %v2676 = vadd.f32 %v2388, %v2548
          %v2677 = vadd.f32 %v2389, %v2565
          %v2678 = vadd.f32 %v2390, %v2582
          %v2679 = vadd.f32 %v2391, %v2599
          %v2680 = vadd.f32 %v2392, %v2616
          %v2681 = vadd.f32 %v2393, %v2633
          %v2682 = vadd.f32 %v2394, %v2650
          %v2683 = vadd.f32 %v2395, %v2667
          %vm2684 = vcmask 7168
          %2685 = vst.msk [vmem:[#allocation2] sm:$0xff] %vm2684, %v2668
          %2686 = vst.msk [vmem:[#allocation2 + $0x8] sm:$0xff] %vm2684, %v2669
          %2687 = vst.msk [vmem:[#allocation2 + $0x10] sm:$0xff] %vm2684, %v2670
          %2688 = vst.msk [vmem:[#allocation2 + $0x18] sm:$0xff] %vm2684, %v2671
          %2689 = vst.msk [vmem:[#allocation2 + $0x20] sm:$0xff] %vm2684, %v2672
          %2690 = vst.msk [vmem:[#allocation2 + $0x28] sm:$0xff] %vm2684, %v2673
          %2691 = vst.msk [vmem:[#allocation2 + $0x30] sm:$0xff] %vm2684, %v2674
          %2692 = vst.msk [vmem:[#allocation2 + $0x38] sm:$0xff] %vm2684, %v2675
          %2693 = vst.msk [vmem:[#allocation2 + $0x40] sm:$0xff] %vm2684, %v2676
          %2694 = vst.msk [vmem:[#allocation2 + $0x48] sm:$0xff] %vm2684, %v2677
          %2695 = vst.msk [vmem:[#allocation2 + $0x50] sm:$0xff] %vm2684, %v2678
          %2696 = vst.msk [vmem:[#allocation2 + $0x58] sm:$0xff] %vm2684, %v2679
          %2697 = vst.msk [vmem:[#allocation2 + $0x60] sm:$0xff] %vm2684, %v2680
          %2698 = vst.msk [vmem:[#allocation2 + $0x68] sm:$0xff] %vm2684, %v2681
          %2699 = vst.msk [vmem:[#allocation2 + $0x70] sm:$0xff] %vm2684, %v2682
          %2700 = vst.msk [vmem:[#allocation2 + $0x78] sm:$0xff] %vm2684, %v2683
          %v2701 = vld [vmem:[#allocation2] sm:$0xff]
          %v2702 = vld [vmem:[#allocation2 + $0x8] sm:$0xff]
          %v2703 = vld [vmem:[#allocation2 + $0x10] sm:$0xff]
          %v2704 = vld [vmem:[#allocation2 + $0x18] sm:$0xff]
          %v2705 = vld [vmem:[#allocation2 + $0x20] sm:$0xff]
          %v2706 = vld [vmem:[#allocation2 + $0x28] sm:$0xff]
          %v2707 = vld [vmem:[#allocation2 + $0x30] sm:$0xff]
          %v2708 = vld [vmem:[#allocation2 + $0x38] sm:$0xff]
          %v2709 = vld [vmem:[#allocation2 + $0x40] sm:$0xff]
          %v2710 = vld [vmem:[#allocation2 + $0x48] sm:$0xff]
          %v2711 = vld [vmem:[#allocation2 + $0x50] sm:$0xff]
          %v2712 = vld [vmem:[#allocation2 + $0x58] sm:$0xff]
          %v2713 = vld [vmem:[#allocation2 + $0x60] sm:$0xff]
          %v2714 = vld [vmem:[#allocation2 + $0x68] sm:$0xff]
          %v2715 = vld [vmem:[#allocation2 + $0x70] sm:$0xff]
          %v2716 = vld [vmem:[#allocation2 + $0x78] sm:$0xff]
          %v2717 = vmul.f32 %v1579, %v1579
          %v2718 = vmul.f32 %v1628, %v1628
          %v2719 = vmul.f32 %v1677, %v1677
          %v2720 = vmul.f32 %v1726, %v1726
          %v2721 = vmul.f32 %v1775, %v1775
          %v2722 = vmul.f32 %v1824, %v1824
          %v2723 = vmul.f32 %v1873, %v1873
          %v2724 = vmul.f32 %v1922, %v1922
          %v2725 = vmul.f32 %v1971, %v1971
          %v2726 = vmul.f32 %v2020, %v2020
          %v2727 = vmul.f32 %v2069, %v2069
          %v2728 = vmul.f32 %v2118, %v2118
          %v2729 = vmul.f32 %v2167, %v2167
          %v2730 = vmul.f32 %v2216, %v2216
          %v2731 = vmul.f32 %v2265, %v2265
          %v2732 = vmul.f32 %v2314, %v2314
          %v2733 = vmul.f32 %v1581, %v1581
          %v2734 = vmul.f32 %v1630, %v1630
          %v2735 = vmul.f32 %v1679, %v1679
          %v2736 = vmul.f32 %v1728, %v1728
          %v2737 = vmul.f32 %v1777, %v1777
          %v2738 = vmul.f32 %v1826, %v1826
          %v2739 = vmul.f32 %v1875, %v1875
          %v2740 = vmul.f32 %v1924, %v1924
          %v2741 = vmul.f32 %v1973, %v1973
          %v2742 = vmul.f32 %v2022, %v2022
          %v2743 = vmul.f32 %v2071, %v2071
          %v2744 = vmul.f32 %v2120, %v2120
          %v2745 = vmul.f32 %v2169, %v2169
          %v2746 = vmul.f32 %v2218, %v2218
          %v2747 = vmul.f32 %v2267, %v2267
          %v2748 = vmul.f32 %v2316, %v2316
          %v2749 = vmul.f32 %v1584, %v1584
          %v2750 = vmul.f32 %v1633, %v1633
          %v2751 = vmul.f32 %v1682, %v1682
          %v2752 = vmul.f32 %v1731, %v1731
          %v2753 = vmul.f32 %v1780, %v1780
          %v2754 = vmul.f32 %v1829, %v1829
          %v2755 = vmul.f32 %v1878, %v1878
          %v2756 = vmul.f32 %v1927, %v1927
          %v2757 = vmul.f32 %v1976, %v1976
          %v2758 = vmul.f32 %v2025, %v2025
          %v2759 = vmul.f32 %v2074, %v2074
          %v2760 = vmul.f32 %v2123, %v2123
          %v2761 = vmul.f32 %v2172, %v2172
          %v2762 = vmul.f32 %v2221, %v2221
          %v2763 = vmul.f32 %v2270, %v2270
          %v2764 = vmul.f32 %v2319, %v2319
          %v2765 = vmul.f32 %v1586, %v1586
          %v2766 = vmul.f32 %v1635, %v1635
          %v2767 = vmul.f32 %v1684, %v1684
          %v2768 = vmul.f32 %v1733, %v1733
          %v2769 = vmul.f32 %v1782, %v1782
          %v2770 = vmul.f32 %v1831, %v1831
          %v2771 = vmul.f32 %v1880, %v1880
          %v2772 = vmul.f32 %v1929, %v1929
          %v2773 = vmul.f32 %v1978, %v1978
          %v2774 = vmul.f32 %v2027, %v2027
          %v2775 = vmul.f32 %v2076, %v2076
          %v2776 = vmul.f32 %v2125, %v2125
          %v2777 = vmul.f32 %v2174, %v2174
          %v2778 = vmul.f32 %v2223, %v2223
          %v2779 = vmul.f32 %v2272, %v2272
          %v2780 = vmul.f32 %v2321, %v2321
          %v2781 = vmul.f32 %v1589, %v1589
          %v2782 = vmul.f32 %v1638, %v1638
          %v2783 = vmul.f32 %v1687, %v1687
          %v2784 = vmul.f32 %v1736, %v1736
          %v2785 = vmul.f32 %v1785, %v1785
          %v2786 = vmul.f32 %v1834, %v1834
          %v2787 = vmul.f32 %v1883, %v1883
          %v2788 = vmul.f32 %v1932, %v1932
          %v2789 = vmul.f32 %v1981, %v1981
          %v2790 = vmul.f32 %v2030, %v2030
          %v2791 = vmul.f32 %v2079, %v2079
          %v2792 = vmul.f32 %v2128, %v2128
          %v2793 = vmul.f32 %v2177, %v2177
          %v2794 = vmul.f32 %v2226, %v2226
          %v2795 = vmul.f32 %v2275, %v2275
          %v2796 = vmul.f32 %v2324, %v2324
          %v2797 = vmul.f32 %v1591, %v1591
          %v2798 = vmul.f32 %v1640, %v1640
          %v2799 = vmul.f32 %v1689, %v1689
          %v2800 = vmul.f32 %v1738, %v1738
          %v2801 = vmul.f32 %v1787, %v1787
          %v2802 = vmul.f32 %v1836, %v1836
          %v2803 = vmul.f32 %v1885, %v1885
          %v2804 = vmul.f32 %v1934, %v1934
          %v2805 = vmul.f32 %v1983, %v1983
          %v2806 = vmul.f32 %v2032, %v2032
          %v2807 = vmul.f32 %v2081, %v2081
          %v2808 = vmul.f32 %v2130, %v2130
          %v2809 = vmul.f32 %v2179, %v2179
          %v2810 = vmul.f32 %v2228, %v2228
          %v2811 = vmul.f32 %v2277, %v2277
          %v2812 = vmul.f32 %v2326, %v2326
          %v2813 = vmul.f32 %v1594, %v1594
          %v2814 = vmul.f32 %v1643, %v1643
          %v2815 = vmul.f32 %v1692, %v1692
          %v2816 = vmul.f32 %v1741, %v1741
          %v2817 = vmul.f32 %v1790, %v1790
          %v2818 = vmul.f32 %v1839, %v1839
          %v2819 = vmul.f32 %v1888, %v1888
          %v2820 = vmul.f32 %v1937, %v1937
          %v2821 = vmul.f32 %v1986, %v1986
          %v2822 = vmul.f32 %v2035, %v2035
          %v2823 = vmul.f32 %v2084, %v2084
          %v2824 = vmul.f32 %v2133, %v2133
          %v2825 = vmul.f32 %v2182, %v2182
          %v2826 = vmul.f32 %v2231, %v2231
          %v2827 = vmul.f32 %v2280, %v2280
          %v2828 = vmul.f32 %v2329, %v2329
          %v2829 = vmul.f32 %v1596, %v1596
          %v2830 = vmul.f32 %v1645, %v1645
          %v2831 = vmul.f32 %v1694, %v1694
          %v2832 = vmul.f32 %v1743, %v1743
          %v2833 = vmul.f32 %v1792, %v1792
          %v2834 = vmul.f32 %v1841, %v1841
          %v2835 = vmul.f32 %v1890, %v1890
          %v2836 = vmul.f32 %v1939, %v1939
          %v2837 = vmul.f32 %v1988, %v1988
          %v2838 = vmul.f32 %v2037, %v2037
          %v2839 = vmul.f32 %v2086, %v2086
          %v2840 = vmul.f32 %v2135, %v2135
          %v2841 = vmul.f32 %v2184, %v2184
          %v2842 = vmul.f32 %v2233, %v2233
          %v2843 = vmul.f32 %v2282, %v2282
          %v2844 = vmul.f32 %v2331, %v2331
          %v2845 = vmul.f32 %v1599, %v1599
          %v2846 = vmul.f32 %v1648, %v1648
          %v2847 = vmul.f32 %v1697, %v1697
          %v2848 = vmul.f32 %v1746, %v1746
          %v2849 = vmul.f32 %v1795, %v1795
          %v2850 = vmul.f32 %v1844, %v1844
          %v2851 = vmul.f32 %v1893, %v1893
          %v2852 = vmul.f32 %v1942, %v1942
          %v2853 = vmul.f32 %v1991, %v1991
          %v2854 = vmul.f32 %v2040, %v2040
          %v2855 = vmul.f32 %v2089, %v2089
          %v2856 = vmul.f32 %v2138, %v2138
          %v2857 = vmul.f32 %v2187, %v2187
          %v2858 = vmul.f32 %v2236, %v2236
          %v2859 = vmul.f32 %v2285, %v2285
          %v2860 = vmul.f32 %v2334, %v2334
          %v2861 = vmul.f32 %v1601, %v1601
          %v2862 = vmul.f32 %v1650, %v1650
          %v2863 = vmul.f32 %v1699, %v1699
          %v2864 = vmul.f32 %v1748, %v1748
          %v2865 = vmul.f32 %v1797, %v1797
          %v2866 = vmul.f32 %v1846, %v1846
          %v2867 = vmul.f32 %v1895, %v1895
          %v2868 = vmul.f32 %v1944, %v1944
          %v2869 = vmul.f32 %v1993, %v1993
          %v2870 = vmul.f32 %v2042, %v2042
          %v2871 = vmul.f32 %v2091, %v2091
          %v2872 = vmul.f32 %v2140, %v2140
          %v2873 = vmul.f32 %v2189, %v2189
          %v2874 = vmul.f32 %v2238, %v2238
          %v2875 = vmul.f32 %v2287, %v2287
          %v2876 = vmul.f32 %v2336, %v2336
          %v2877 = vmul.f32 %v1604, %v1604
          %v2878 = vmul.f32 %v1653, %v1653
          %v2879 = vmul.f32 %v1702, %v1702
          %v2880 = vmul.f32 %v1751, %v1751
          %v2881 = vmul.f32 %v1800, %v1800
          %v2882 = vmul.f32 %v1849, %v1849
          %v2883 = vmul.f32 %v1898, %v1898
          %v2884 = vmul.f32 %v1947, %v1947
          %v2885 = vmul.f32 %v1996, %v1996
          %v2886 = vmul.f32 %v2045, %v2045
          %v2887 = vmul.f32 %v2094, %v2094
          %v2888 = vmul.f32 %v2143, %v2143
          %v2889 = vmul.f32 %v2192, %v2192
          %v2890 = vmul.f32 %v2241, %v2241
          %v2891 = vmul.f32 %v2290, %v2290
          %v2892 = vmul.f32 %v2339, %v2339
          %v2893 = vmul.f32 %v1606, %v1606
          %v2894 = vmul.f32 %v1655, %v1655
          %v2895 = vmul.f32 %v1704, %v1704
          %v2896 = vmul.f32 %v1753, %v1753
          %v2897 = vmul.f32 %v1802, %v1802
          %v2898 = vmul.f32 %v1851, %v1851
          %v2899 = vmul.f32 %v1900, %v1900
          %v2900 = vmul.f32 %v1949, %v1949
          %v2901 = vmul.f32 %v1998, %v1998
          %v2902 = vmul.f32 %v2047, %v2047
          %v2903 = vmul.f32 %v2096, %v2096
          %v2904 = vmul.f32 %v2145, %v2145
          %v2905 = vmul.f32 %v2194, %v2194
          %v2906 = vmul.f32 %v2243, %v2243
          %v2907 = vmul.f32 %v2292, %v2292
          %v2908 = vmul.f32 %v2341, %v2341
          %v2909 = vmul.f32 %v1609, %v1609
          %v2910 = vmul.f32 %v1658, %v1658
          %v2911 = vmul.f32 %v1707, %v1707
          %v2912 = vmul.f32 %v1756, %v1756
          %v2913 = vmul.f32 %v1805, %v1805
          %v2914 = vmul.f32 %v1854, %v1854
          %v2915 = vmul.f32 %v1903, %v1903
          %v2916 = vmul.f32 %v1952, %v1952
          %v2917 = vmul.f32 %v2001, %v2001
          %v2918 = vmul.f32 %v2050, %v2050
          %v2919 = vmul.f32 %v2099, %v2099
          %v2920 = vmul.f32 %v2148, %v2148
          %v2921 = vmul.f32 %v2197, %v2197
          %v2922 = vmul.f32 %v2246, %v2246
          %v2923 = vmul.f32 %v2295, %v2295
          %v2924 = vmul.f32 %v2344, %v2344
          %v2925 = vmul.f32 %v1611, %v1611
          %v2926 = vmul.f32 %v1660, %v1660
          %v2927 = vmul.f32 %v1709, %v1709
          %v2928 = vmul.f32 %v1758, %v1758
          %v2929 = vmul.f32 %v1807, %v1807
          %v2930 = vmul.f32 %v1856, %v1856
          %v2931 = vmul.f32 %v1905, %v1905
          %v2932 = vmul.f32 %v1954, %v1954
          %v2933 = vmul.f32 %v2003, %v2003
          %v2934 = vmul.f32 %v2052, %v2052
          %v2935 = vmul.f32 %v2101, %v2101
          %v2936 = vmul.f32 %v2150, %v2150
          %v2937 = vmul.f32 %v2199, %v2199
          %v2938 = vmul.f32 %v2248, %v2248
          %v2939 = vmul.f32 %v2297, %v2297
          %v2940 = vmul.f32 %v2346, %v2346
          %v2941 = vmul.f32 %v1614, %v1614
          %v2942 = vmul.f32 %v1663, %v1663
          %v2943 = vmul.f32 %v1712, %v1712
          %v2944 = vmul.f32 %v1761, %v1761
          %v2945 = vmul.f32 %v1810, %v1810
          %v2946 = vmul.f32 %v1859, %v1859
          %v2947 = vmul.f32 %v1908, %v1908
          %v2948 = vmul.f32 %v1957, %v1957
          %v2949 = vmul.f32 %v2006, %v2006
          %v2950 = vmul.f32 %v2055, %v2055
          %v2951 = vmul.f32 %v2104, %v2104
          %v2952 = vmul.f32 %v2153, %v2153
          %v2953 = vmul.f32 %v2202, %v2202
          %v2954 = vmul.f32 %v2251, %v2251
          %v2955 = vmul.f32 %v2300, %v2300
          %v2956 = vmul.f32 %v2349, %v2349
          %v2957 = vmul.f32 %v1616, %v1616
          %v2958 = vmul.f32 %v1665, %v1665
          %v2959 = vmul.f32 %v1714, %v1714
          %v2960 = vmul.f32 %v1763, %v1763
          %v2961 = vmul.f32 %v1812, %v1812
          %v2962 = vmul.f32 %v1861, %v1861
          %v2963 = vmul.f32 %v1910, %v1910
          %v2964 = vmul.f32 %v1959, %v1959
          %v2965 = vmul.f32 %v2008, %v2008
          %v2966 = vmul.f32 %v2057, %v2057
          %v2967 = vmul.f32 %v2106, %v2106
          %v2968 = vmul.f32 %v2155, %v2155
          %v2969 = vmul.f32 %v2204, %v2204
          %v2970 = vmul.f32 %v2253, %v2253
          %v2971 = vmul.f32 %v2302, %v2302
          %v2972 = vmul.f32 %v2351, %v2351
          %v2973 = vadd.f32 %v2717, %v2718
          %v2974 = vadd.f32 %v2973, %v2719
          %v2975 = vadd.f32 %v2974, %v2720
          %v2976 = vadd.f32 %v2975, %v2721
          %v2977 = vadd.f32 %v2976, %v2722
          %v2978 = vadd.f32 %v2977, %v2723
          %v2979 = vadd.f32 %v2978, %v2724
          %v2980 = vadd.f32 %v2979, %v2725
          %v2981 = vadd.f32 %v2980, %v2726
          %v2982 = vadd.f32 %v2981, %v2727
          %v2983 = vadd.f32 %v2982, %v2728
          %v2984 = vadd.f32 %v2983, %v2729
          %v2985 = vadd.f32 %v2984, %v2730
          %v2986 = vadd.f32 %v2985, %v2731
          %v2987 = vadd.f32 %v2986, %v2732
          %2988 = vadd.xlane.f32.xlu0 %v2987
          %v2989 = vpop.xlane.xlu0 %2988
          %v2990 = vadd.f32 %v2733, %v2734
          %v2991 = vadd.f32 %v2990, %v2735
          %v2992 = vadd.f32 %v2991, %v2736
          %v2993 = vadd.f32 %v2992, %v2737
          %v2994 = vadd.f32 %v2993, %v2738
          %v2995 = vadd.f32 %v2994, %v2739
          %v2996 = vadd.f32 %v2995, %v2740
          %v2997 = vadd.f32 %v2996, %v2741
          %v2998 = vadd.f32 %v2997, %v2742
          %v2999 = vadd.f32 %v2998, %v2743
          %v3000 = vadd.f32 %v2999, %v2744
          %v3001 = vadd.f32 %v3000, %v2745
          %v3002 = vadd.f32 %v3001, %v2746
          %v3003 = vadd.f32 %v3002, %v2747
          %v3004 = vadd.f32 %v3003, %v2748
          %3005 = vadd.xlane.f32.xlu0 %v3004
          %v3006 = vpop.xlane.xlu0 %3005
          %v3007 = vadd.f32 %v2749, %v2750
          %v3008 = vadd.f32 %v3007, %v2751
          %v3009 = vadd.f32 %v3008, %v2752
          %v3010 = vadd.f32 %v3009, %v2753
          %v3011 = vadd.f32 %v3010, %v2754
          %v3012 = vadd.f32 %v3011, %v2755
          %v3013 = vadd.f32 %v3012, %v2756
          %v3014 = vadd.f32 %v3013, %v2757
          %v3015 = vadd.f32 %v3014, %v2758
          %v3016 = vadd.f32 %v3015, %v2759
          %v3017 = vadd.f32 %v3016, %v2760
          %v3018 = vadd.f32 %v3017, %v2761
          %v3019 = vadd.f32 %v3018, %v2762
          %v3020 = vadd.f32 %v3019, %v2763
          %v3021 = vadd.f32 %v3020, %v2764
          %3022 = vadd.xlane.f32.xlu0 %v3021
          %v3023 = vpop.xlane.xlu0 %3022
          %v3024 = vadd.f32 %v2765, %v2766
          %v3025 = vadd.f32 %v3024, %v2767
          %v3026 = vadd.f32 %v3025, %v2768
          %v3027 = vadd.f32 %v3026, %v2769
          %v3028 = vadd.f32 %v3027, %v2770
          %v3029 = vadd.f32 %v3028, %v2771
          %v3030 = vadd.f32 %v3029, %v2772
          %v3031 = vadd.f32 %v3030, %v2773
          %v3032 = vadd.f32 %v3031, %v2774
          %v3033 = vadd.f32 %v3032, %v2775
          %v3034 = vadd.f32 %v3033, %v2776
          %v3035 = vadd.f32 %v3034, %v2777
          %v3036 = vadd.f32 %v3035, %v2778
          %v3037 = vadd.f32 %v3036, %v2779
          %v3038 = vadd.f32 %v3037, %v2780
          %3039 = vadd.xlane.f32.xlu0 %v3038
          %v3040 = vpop.xlane.xlu0 %3039
          %v3041 = vadd.f32 %v2781, %v2782
          %v3042 = vadd.f32 %v3041, %v2783
          %v3043 = vadd.f32 %v3042, %v2784
          %v3044 = vadd.f32 %v3043, %v2785
          %v3045 = vadd.f32 %v3044, %v2786
          %v3046 = vadd.f32 %v3045, %v2787
          %v3047 = vadd.f32 %v3046, %v2788
          %v3048 = vadd.f32 %v3047, %v2789
          %v3049 = vadd.f32 %v3048, %v2790
          %v3050 = vadd.f32 %v3049, %v2791
          %v3051 = vadd.f32 %v3050, %v2792
          %v3052 = vadd.f32 %v3051, %v2793
          %v3053 = vadd.f32 %v3052, %v2794
          %v3054 = vadd.f32 %v3053, %v2795
          %v3055 = vadd.f32 %v3054, %v2796
          %3056 = vadd.xlane.f32.xlu0 %v3055
          %v3057 = vpop.xlane.xlu0 %3056
          %v3058 = vadd.f32 %v2797, %v2798
          %v3059 = vadd.f32 %v3058, %v2799
          %v3060 = vadd.f32 %v3059, %v2800
          %v3061 = vadd.f32 %v3060, %v2801
          %v3062 = vadd.f32 %v3061, %v2802
          %v3063 = vadd.f32 %v3062, %v2803
          %v3064 = vadd.f32 %v3063, %v2804
          %v3065 = vadd.f32 %v3064, %v2805
          %v3066 = vadd.f32 %v3065, %v2806
          %v3067 = vadd.f32 %v3066, %v2807
          %v3068 = vadd.f32 %v3067, %v2808
          %v3069 = vadd.f32 %v3068, %v2809
          %v3070 = vadd.f32 %v3069, %v2810
          %v3071 = vadd.f32 %v3070, %v2811
          %v3072 = vadd.f32 %v3071, %v2812
          %3073 = vadd.xlane.f32.xlu0 %v3072
          %v3074 = vpop.xlane.xlu0 %3073
          %v3075 = vadd.f32 %v2813, %v2814
          %v3076 = vadd.f32 %v3075, %v2815
          %v3077 = vadd.f32 %v3076, %v2816
          %v3078 = vadd.f32 %v3077, %v2817
          %v3079 = vadd.f32 %v3078, %v2818
          %v3080 = vadd.f32 %v3079, %v2819
          %v3081 = vadd.f32 %v3080, %v2820
          %v3082 = vadd.f32 %v3081, %v2821
          %v3083 = vadd.f32 %v3082, %v2822
          %v3084 = vadd.f32 %v3083, %v2823
          %v3085 = vadd.f32 %v3084, %v2824
          %v3086 = vadd.f32 %v3085, %v2825
          %v3087 = vadd.f32 %v3086, %v2826
          %v3088 = vadd.f32 %v3087, %v2827
          %v3089 = vadd.f32 %v3088, %v2828
          %3090 = vadd.xlane.f32.xlu0 %v3089
          %v3091 = vpop.xlane.xlu0 %3090
          %v3092 = vadd.f32 %v2829, %v2830
          %v3093 = vadd.f32 %v3092, %v2831
          %v3094 = vadd.f32 %v3093, %v2832
          %v3095 = vadd.f32 %v3094, %v2833
          %v3096 = vadd.f32 %v3095, %v2834
          %v3097 = vadd.f32 %v3096, %v2835
          %v3098 = vadd.f32 %v3097, %v2836
          %v3099 = vadd.f32 %v3098, %v2837
          %v3100 = vadd.f32 %v3099, %v2838
          %v3101 = vadd.f32 %v3100, %v2839
          %v3102 = vadd.f32 %v3101, %v2840
          %v3103 = vadd.f32 %v3102, %v2841
          %v3104 = vadd.f32 %v3103, %v2842
          %v3105 = vadd.f32 %v3104, %v2843
          %v3106 = vadd.f32 %v3105, %v2844
          %3107 = vadd.xlane.f32.xlu0 %v3106
          %v3108 = vpop.xlane.xlu0 %3107
          %v3109 = vadd.f32 %v2845, %v2846
          %v3110 = vadd.f32 %v3109, %v2847
          %v3111 = vadd.f32 %v3110, %v2848
          %v3112 = vadd.f32 %v3111, %v2849
          %v3113 = vadd.f32 %v3112, %v2850
          %v3114 = vadd.f32 %v3113, %v2851
          %v3115 = vadd.f32 %v3114, %v2852
          %v3116 = vadd.f32 %v3115, %v2853
          %v3117 = vadd.f32 %v3116, %v2854
          %v3118 = vadd.f32 %v3117, %v2855
          %v3119 = vadd.f32 %v3118, %v2856
          %v3120 = vadd.f32 %v3119, %v2857
          %v3121 = vadd.f32 %v3120, %v2858
          %v3122 = vadd.f32 %v3121, %v2859
          %v3123 = vadd.f32 %v3122, %v2860
          %3124 = vadd.xlane.f32.xlu0 %v3123
          %v3125 = vpop.xlane.xlu0 %3124
          %v3126 = vadd.f32 %v2861, %v2862
          %v3127 = vadd.f32 %v3126, %v2863
          %v3128 = vadd.f32 %v3127, %v2864
          %v3129 = vadd.f32 %v3128, %v2865
          %v3130 = vadd.f32 %v3129, %v2866
          %v3131 = vadd.f32 %v3130, %v2867
          %v3132 = vadd.f32 %v3131, %v2868
          %v3133 = vadd.f32 %v3132, %v2869
          %v3134 = vadd.f32 %v3133, %v2870
          %v3135 = vadd.f32 %v3134, %v2871
          %v3136 = vadd.f32 %v3135, %v2872
          %v3137 = vadd.f32 %v3136, %v2873
          %v3138 = vadd.f32 %v3137, %v2874
          %v3139 = vadd.f32 %v3138, %v2875
          %v3140 = vadd.f32 %v3139, %v2876
          %3141 = vadd.xlane.f32.xlu0 %v3140
          %v3142 = vpop.xlane.xlu0 %3141
          %v3143 = vadd.f32 %v2877, %v2878
          %v3144 = vadd.f32 %v3143, %v2879
          %v3145 = vadd.f32 %v3144, %v2880
          %v3146 = vadd.f32 %v3145, %v2881
          %v3147 = vadd.f32 %v3146, %v2882
          %v3148 = vadd.f32 %v3147, %v2883
          %v3149 = vadd.f32 %v3148, %v2884
          %v3150 = vadd.f32 %v3149, %v2885
          %v3151 = vadd.f32 %v3150, %v2886
          %v3152 = vadd.f32 %v3151, %v2887
          %v3153 = vadd.f32 %v3152, %v2888
          %v3154 = vadd.f32 %v3153, %v2889
          %v3155 = vadd.f32 %v3154, %v2890
          %v3156 = vadd.f32 %v3155, %v2891
          %v3157 = vadd.f32 %v3156, %v2892
          %3158 = vadd.xlane.f32.xlu0 %v3157
          %v3159 = vpop.xlane.xlu0 %3158
          %v3160 = vadd.f32 %v2893, %v2894
          %v3161 = vadd.f32 %v3160, %v2895
          %v3162 = vadd.f32 %v3161, %v2896
          %v3163 = vadd.f32 %v3162, %v2897
          %v3164 = vadd.f32 %v3163, %v2898
          %v3165 = vadd.f32 %v3164, %v2899
          %v3166 = vadd.f32 %v3165, %v2900
          %v3167 = vadd.f32 %v3166, %v2901
          %v3168 = vadd.f32 %v3167, %v2902
          %v3169 = vadd.f32 %v3168, %v2903
          %v3170 = vadd.f32 %v3169, %v2904
          %v3171 = vadd.f32 %v3170, %v2905
          %v3172 = vadd.f32 %v3171, %v2906
          %v3173 = vadd.f32 %v3172, %v2907
          %v3174 = vadd.f32 %v3173, %v2908
          %3175 = vadd.xlane.f32.xlu0 %v3174
          %v3176 = vpop.xlane.xlu0 %3175
          %v3177 = vadd.f32 %v2909, %v2910
          %v3178 = vadd.f32 %v3177, %v2911
          %v3179 = vadd.f32 %v3178, %v2912
          %v3180 = vadd.f32 %v3179, %v2913
          %v3181 = vadd.f32 %v3180, %v2914
          %v3182 = vadd.f32 %v3181, %v2915
          %v3183 = vadd.f32 %v3182, %v2916
          %v3184 = vadd.f32 %v3183, %v2917
          %v3185 = vadd.f32 %v3184, %v2918
          %v3186 = vadd.f32 %v3185, %v2919
          %v3187 = vadd.f32 %v3186, %v2920
          %v3188 = vadd.f32 %v3187, %v2921
          %v3189 = vadd.f32 %v3188, %v2922
          %v3190 = vadd.f32 %v3189, %v2923
          %v3191 = vadd.f32 %v3190, %v2924
          %3192 = vadd.xlane.f32.xlu0 %v3191
          %v3193 = vpop.xlane.xlu0 %3192
          %v3194 = vadd.f32 %v2925, %v2926
          %v3195 = vadd.f32 %v3194, %v2927
          %v3196 = vadd.f32 %v3195, %v2928
          %v3197 = vadd.f32 %v3196, %v2929
          %v3198 = vadd.f32 %v3197, %v2930
          %v3199 = vadd.f32 %v3198, %v2931
          %v3200 = vadd.f32 %v3199, %v2932
          %v3201 = vadd.f32 %v3200, %v2933
          %v3202 = vadd.f32 %v3201, %v2934
          %v3203 = vadd.f32 %v3202, %v2935
          %v3204 = vadd.f32 %v3203, %v2936
          %v3205 = vadd.f32 %v3204, %v2937
          %v3206 = vadd.f32 %v3205, %v2938
          %v3207 = vadd.f32 %v3206, %v2939
          %v3208 = vadd.f32 %v3207, %v2940
          %3209 = vadd.xlane.f32.xlu0 %v3208
          %v3210 = vpop.xlane.xlu0 %3209
          %v3211 = vadd.f32 %v2941, %v2942
          %v3212 = vadd.f32 %v3211, %v2943
          %v3213 = vadd.f32 %v3212, %v2944
          %v3214 = vadd.f32 %v3213, %v2945
          %v3215 = vadd.f32 %v3214, %v2946
          %v3216 = vadd.f32 %v3215, %v2947
          %v3217 = vadd.f32 %v3216, %v2948
          %v3218 = vadd.f32 %v3217, %v2949
          %v3219 = vadd.f32 %v3218, %v2950
          %v3220 = vadd.f32 %v3219, %v2951
          %v3221 = vadd.f32 %v3220, %v2952
          %v3222 = vadd.f32 %v3221, %v2953
          %v3223 = vadd.f32 %v3222, %v2954
          %v3224 = vadd.f32 %v3223, %v2955
          %v3225 = vadd.f32 %v3224, %v2956
          %3226 = vadd.xlane.f32.xlu0 %v3225
          %v3227 = vpop.xlane.xlu0 %3226
          %v3228 = vadd.f32 %v2957, %v2958
          %v3229 = vadd.f32 %v3228, %v2959
          %v3230 = vadd.f32 %v3229, %v2960
          %v3231 = vadd.f32 %v3230, %v2961
          %v3232 = vadd.f32 %v3231, %v2962
          %v3233 = vadd.f32 %v3232, %v2963
          %v3234 = vadd.f32 %v3233, %v2964
          %v3235 = vadd.f32 %v3234, %v2965
          %v3236 = vadd.f32 %v3235, %v2966
          %v3237 = vadd.f32 %v3236, %v2967
          %v3238 = vadd.f32 %v3237, %v2968
          %v3239 = vadd.f32 %v3238, %v2969
          %v3240 = vadd.f32 %v3239, %v2970
          %v3241 = vadd.f32 %v3240, %v2971
          %v3242 = vadd.f32 %v3241, %v2972
          %3243 = vadd.xlane.f32.xlu0 %v3242
          %v3244 = vpop.xlane.xlu0 %3243
          %v3245 = vadd.f32 %v2701, %v2989
          %v3246 = vadd.f32 %v2702, %v3006
          %v3247 = vadd.f32 %v2703, %v3023
          %v3248 = vadd.f32 %v2704, %v3040
          %v3249 = vadd.f32 %v2705, %v3057
          %v3250 = vadd.f32 %v2706, %v3074
          %v3251 = vadd.f32 %v2707, %v3091
          %v3252 = vadd.f32 %v2708, %v3108
          %v3253 = vadd.f32 %v2709, %v3125
          %v3254 = vadd.f32 %v2710, %v3142
          %v3255 = vadd.f32 %v2711, %v3159
          %v3256 = vadd.f32 %v2712, %v3176
          %v3257 = vadd.f32 %v2713, %v3193
          %v3258 = vadd.f32 %v2714, %v3210
          %v3259 = vadd.f32 %v2715, %v3227
          %v3260 = vadd.f32 %v2716, %v3244
          %vm3261 = vcmask 15368
          %3262 = vst.msk [vmem:[#allocation2] sm:$0xff] %vm3261, %v3245
          %3263 = vst.msk [vmem:[#allocation2 + $0x8] sm:$0xff] %vm3261, %v3246
          %3264 = vst.msk [vmem:[#allocation2 + $0x10] sm:$0xff] %vm3261, %v3247
          %3265 = vst.msk [vmem:[#allocation2 + $0x18] sm:$0xff] %vm3261, %v3248
          %3266 = vst.msk [vmem:[#allocation2 + $0x20] sm:$0xff] %vm3261, %v3249
          %3267 = vst.msk [vmem:[#allocation2 + $0x28] sm:$0xff] %vm3261, %v3250
          %3268 = vst.msk [vmem:[#allocation2 + $0x30] sm:$0xff] %vm3261, %v3251
          %3269 = vst.msk [vmem:[#allocation2 + $0x38] sm:$0xff] %vm3261, %v3252
          %3270 = vst.msk [vmem:[#allocation2 + $0x40] sm:$0xff] %vm3261, %v3253
          %3271 = vst.msk [vmem:[#allocation2 + $0x48] sm:$0xff] %vm3261, %v3254
          %3272 = vst.msk [vmem:[#allocation2 + $0x50] sm:$0xff] %vm3261, %v3255
          %3273 = vst.msk [vmem:[#allocation2 + $0x58] sm:$0xff] %vm3261, %v3256
          %3274 = vst.msk [vmem:[#allocation2 + $0x60] sm:$0xff] %vm3261, %v3257
          %3275 = vst.msk [vmem:[#allocation2 + $0x68] sm:$0xff] %vm3261, %v3258
          %3276 = vst.msk [vmem:[#allocation2 + $0x70] sm:$0xff] %vm3261, %v3259
          %3277 = vst.msk [vmem:[#allocation2 + $0x78] sm:$0xff] %vm3261, %v3260
        $region56: #{tpu_custom_call.1} parent=47 // pred_fallthru
          _
        %p3278 = pnand %p2354, %p2355
        %p3279 = pneg %p3278
        // Predicated region
        $region57: #{tpu_custom_call.1} parent=47 // pred_check
          _
        $region58: #{tpu_custom_call.1} parent=47 // pred_check_branch
          %3281 = sbr.rel (%p3278) target = $region60
        $region59: #{tpu_custom_call.1} parent=47 // pred_region
          %v3282 = vld [vmem:[#allocation2] sm:$0xff]
          %v3283 = vld [vmem:[#allocation2 + $0x8] sm:$0xff]
          %v3284 = vld [vmem:[#allocation2 + $0x10] sm:$0xff]
          %v3285 = vld [vmem:[#allocation2 + $0x18] sm:$0xff]
          %v3286 = vld [vmem:[#allocation2 + $0x20] sm:$0xff]
          %v3287 = vld [vmem:[#allocation2 + $0x28] sm:$0xff]
          %v3288 = vld [vmem:[#allocation2 + $0x30] sm:$0xff]
          %v3289 = vld [vmem:[#allocation2 + $0x38] sm:$0xff]
          %v3290 = vld [vmem:[#allocation2 + $0x40] sm:$0xff]
          %v3291 = vld [vmem:[#allocation2 + $0x48] sm:$0xff]
          %v3292 = vld [vmem:[#allocation2 + $0x50] sm:$0xff]
          %v3293 = vld [vmem:[#allocation2 + $0x58] sm:$0xff]
          %v3294 = vld [vmem:[#allocation2 + $0x60] sm:$0xff]
          %v3295 = vld [vmem:[#allocation2 + $0x68] sm:$0xff]
          %v3296 = vld [vmem:[#allocation2 + $0x70] sm:$0xff]
          %v3297 = vld [vmem:[#allocation2 + $0x78] sm:$0xff]
          %v3298 = vmul.f32 %v3282, 0.00048828125
          %v3299 = vmul.f32 %v3283, 0.00048828125
          %v3300 = vmul.f32 %v3284, 0.00048828125
          %v3301 = vmul.f32 %v3285, 0.00048828125
          %v3302 = vmul.f32 %v3286, 0.00048828125
          %v3303 = vmul.f32 %v3287, 0.00048828125
          %v3304 = vmul.f32 %v3288, 0.00048828125
          %v3305 = vmul.f32 %v3289, 0.00048828125
          %v3306 = vmul.f32 %v3290, 0.00048828125
          %v3307 = vmul.f32 %v3291, 0.00048828125
          %v3308 = vmul.f32 %v3292, 0.00048828125
          %v3309 = vmul.f32 %v3293, 0.00048828125
          %v3310 = vmul.f32 %v3294, 0.00048828125
          %v3311 = vmul.f32 %v3295, 0.00048828125
          %v3312 = vmul.f32 %v3296, 0.00048828125
          %v3313 = vmul.f32 %v3297, 0.00048828125
          %v3314 = vmul.f32 %v3298, %v3298
          %v3315 = vmul.f32 %v3299, %v3299
          %v3316 = vmul.f32 %v3300, %v3300
          %v3317 = vmul.f32 %v3301, %v3301
          %v3318 = vmul.f32 %v3302, %v3302
          %v3319 = vmul.f32 %v3303, %v3303
          %v3320 = vmul.f32 %v3304, %v3304
          %v3321 = vmul.f32 %v3305, %v3305
          %v3322 = vmul.f32 %v3306, %v3306
          %v3323 = vmul.f32 %v3307, %v3307
          %v3324 = vmul.f32 %v3308, %v3308
          %v3325 = vmul.f32 %v3309, %v3309
          %v3326 = vmul.f32 %v3310, %v3310
          %v3327 = vmul.f32 %v3311, %v3311
          %v3328 = vmul.f32 %v3312, %v3312
          %v3329 = vmul.f32 %v3313, %v3313
          %3346 = vrot.lane.b32.xlu0 %v3314, 1
          %v3347 = vpop.permute.xlu0 %3346
          %3348 = vrot.lane.b32.xlu0 %v3315, 1
          %v3349 = vpop.permute.xlu0 %3348
          %3350 = vrot.lane.b32.xlu0 %v3316, 1
          %v3351 = vpop.permute.xlu0 %3350
          %3352 = vrot.lane.b32.xlu0 %v3317, 1
          %v3353 = vpop.permute.xlu0 %3352
          %3354 = vrot.lane.b32.xlu0 %v3318, 1
          %v3355 = vpop.permute.xlu0 %3354
          %3356 = vrot.lane.b32.xlu0 %v3319, 1
          %v3357 = vpop.permute.xlu0 %3356
          %3358 = vrot.lane.b32.xlu0 %v3320, 1
          %v3359 = vpop.permute.xlu0 %3358
          %3360 = vrot.lane.b32.xlu0 %v3321, 1
          %v3361 = vpop.permute.xlu0 %3360
          %3362 = vrot.lane.b32.xlu0 %v3322, 1
          %v3363 = vpop.permute.xlu0 %3362
          %3364 = vrot.lane.b32.xlu0 %v3323, 1
          %v3365 = vpop.permute.xlu0 %3364
          %3366 = vrot.lane.b32.xlu0 %v3324, 1
          %v3367 = vpop.permute.xlu0 %3366
          %3368 = vrot.lane.b32.xlu0 %v3325, 1
          %v3369 = vpop.permute.xlu0 %3368
          %3370 = vrot.lane.b32.xlu0 %v3326, 1
          %v3371 = vpop.permute.xlu0 %3370
          %3372 = vrot.lane.b32.xlu0 %v3327, 1
          %v3373 = vpop.permute.xlu0 %3372
          %3374 = vrot.lane.b32.xlu0 %v3328, 1
          %v3375 = vpop.permute.xlu0 %3374
          %3376 = vrot.lane.b32.xlu0 %v3329, 1
          %v3377 = vpop.permute.xlu0 %3376
          %v3394 = vsub.f32 %v3298, %v3347
          %v3395 = vsub.f32 %v3299, %v3349
          %v3396 = vsub.f32 %v3300, %v3351
          %v3397 = vsub.f32 %v3301, %v3353
          %v3398 = vsub.f32 %v3302, %v3355
          %v3399 = vsub.f32 %v3303, %v3357
          %v3400 = vsub.f32 %v3304, %v3359
          %v3401 = vsub.f32 %v3305, %v3361
          %v3402 = vsub.f32 %v3306, %v3363
          %v3403 = vsub.f32 %v3307, %v3365
          %v3404 = vsub.f32 %v3308, %v3367
          %v3405 = vsub.f32 %v3309, %v3369
          %v3406 = vsub.f32 %v3310, %v3371
          %v3407 = vsub.f32 %v3311, %v3373
          %v3408 = vsub.f32 %v3312, %v3375
          %v3409 = vsub.f32 %v3313, %v3377
          %v3410 = vmax.f32 %v3394, 0.0
          %v3411 = vmax.f32 %v3395, 0.0
          %v3412 = vmax.f32 %v3396, 0.0
          %v3413 = vmax.f32 %v3397, 0.0
          %v3414 = vmax.f32 %v3398, 0.0
          %v3415 = vmax.f32 %v3399, 0.0
          %v3416 = vmax.f32 %v3400, 0.0
          %v3417 = vmax.f32 %v3401, 0.0
          %v3418 = vmax.f32 %v3402, 0.0
          %v3419 = vmax.f32 %v3403, 0.0
          %v3420 = vmax.f32 %v3404, 0.0
          %v3421 = vmax.f32 %v3405, 0.0
          %v3422 = vmax.f32 %v3406, 0.0
          %v3423 = vmax.f32 %v3407, 0.0
          %v3424 = vmax.f32 %v3408, 0.0
          %v3425 = vmax.f32 %v3409, 0.0
          %v3426 = vld [vmem:[%s4] sm:$0xff]
          %v3427 = vld [vmem:[%s4 + $0x8] sm:$0xff]
          %v3428 = vld [vmem:[%s4 + $0x10] sm:$0xff]
          %v3429 = vld [vmem:[%s4 + $0x18] sm:$0xff]
          %v3430 = vld [vmem:[%s4 + $0x20] sm:$0xff]
          %v3431 = vld [vmem:[%s4 + $0x28] sm:$0xff]
          %v3432 = vld [vmem:[%s4 + $0x30] sm:$0xff]
          %v3433 = vld [vmem:[%s4 + $0x38] sm:$0xff]
          %v3434 = vld [vmem:[%s4 + $0x40] sm:$0xff]
          %v3435 = vld [vmem:[%s4 + $0x48] sm:$0xff]
          %v3436 = vld [vmem:[%s4 + $0x50] sm:$0xff]
          %v3437 = vld [vmem:[%s4 + $0x58] sm:$0xff]
          %v3438 = vld [vmem:[%s4 + $0x60] sm:$0xff]
          %v3439 = vld [vmem:[%s4 + $0x68] sm:$0xff]
          %v3440 = vld [vmem:[%s4 + $0x70] sm:$0xff]
          %v3441 = vld [vmem:[%s4 + $0x78] sm:$0xff]
          %v3442 = vadd.f32 %v3410, 1e-05
          %v3443 = vadd.f32 %v3411, 1e-05
          %v3444 = vadd.f32 %v3412, 1e-05
          %v3445 = vadd.f32 %v3413, 1e-05
          %v3446 = vadd.f32 %v3414, 1e-05
          %v3447 = vadd.f32 %v3415, 1e-05
          %v3448 = vadd.f32 %v3416, 1e-05
          %v3449 = vadd.f32 %v3417, 1e-05
          %v3450 = vadd.f32 %v3418, 1e-05
          %v3451 = vadd.f32 %v3419, 1e-05
          %v3452 = vadd.f32 %v3420, 1e-05
          %v3453 = vadd.f32 %v3421, 1e-05
          %v3454 = vadd.f32 %v3422, 1e-05
          %v3455 = vadd.f32 %v3423, 1e-05
          %v3456 = vadd.f32 %v3424, 1e-05
          %v3457 = vadd.f32 %v3425, 1e-05
          %v3458 = vrsqrt.pop %v3442
          %v3459 = vmul.f32 %v3458, %v3442
          %v3460 = vmul.f32 %v3459, %v3458
          %v3461 = vmul.f32 0.5, %v3460
          %v3462 = vsub.f32 1.5, %v3461
          %v3463 = vmul.f32 %v3458, %v3462
          %vm3464 = vweird.f32 %v3442
          %vm3465 = vweird.f32 %v3458
          %vm3466 = vmor %vm3464, %vm3465
          %v3467 = vsel %vm3466, %v3458, %v3463
          %v3468 = vrsqrt.pop %v3443
          %v3469 = vmul.f32 %v3468, %v3443
          %v3470 = vmul.f32 %v3469, %v3468
          %v3471 = vmul.f32 0.5, %v3470
          %v3472 = vsub.f32 1.5, %v3471
          %v3473 = vmul.f32 %v3468, %v3472
          %vm3474 = vweird.f32 %v3443
          %vm3475 = vweird.f32 %v3468
          %vm3476 = vmor %vm3474, %vm3475
          %v3477 = vsel %vm3476, %v3468, %v3473
          %v3478 = vrsqrt.pop %v3444
          %v3479 = vmul.f32 %v3478, %v3444
          %v3480 = vmul.f32 %v3479, %v3478
          %v3481 = vmul.f32 0.5, %v3480
          %v3482 = vsub.f32 1.5, %v3481
          %v3483 = vmul.f32 %v3478, %v3482
          %vm3484 = vweird.f32 %v3444
          %vm3485 = vweird.f32 %v3478
          %vm3486 = vmor %vm3484, %vm3485
          %v3487 = vsel %vm3486, %v3478, %v3483
          %v3488 = vrsqrt.pop %v3445
          %v3489 = vmul.f32 %v3488, %v3445
          %v3490 = vmul.f32 %v3489, %v3488
          %v3491 = vmul.f32 0.5, %v3490
          %v3492 = vsub.f32 1.5, %v3491
          %v3493 = vmul.f32 %v3488, %v3492
          %vm3494 = vweird.f32 %v3445
          %vm3495 = vweird.f32 %v3488
          %vm3496 = vmor %vm3494, %vm3495
          %v3497 = vsel %vm3496, %v3488, %v3493
          %v3498 = vrsqrt.pop %v3446
          %v3499 = vmul.f32 %v3498, %v3446
          %v3500 = vmul.f32 %v3499, %v3498
          %v3501 = vmul.f32 0.5, %v3500
          %v3502 = vsub.f32 1.5, %v3501
          %v3503 = vmul.f32 %v3498, %v3502
          %vm3504 = vweird.f32 %v3446
          %vm3505 = vweird.f32 %v3498
          %vm3506 = vmor %vm3504, %vm3505
          %v3507 = vsel %vm3506, %v3498, %v3503
          %v3508 = vrsqrt.pop %v3447
          %v3509 = vmul.f32 %v3508, %v3447
          %v3510 = vmul.f32 %v3509, %v3508
          %v3511 = vmul.f32 0.5, %v3510
          %v3512 = vsub.f32 1.5, %v3511
          %v3513 = vmul.f32 %v3508, %v3512
          %vm3514 = vweird.f32 %v3447
          %vm3515 = vweird.f32 %v3508
          %vm3516 = vmor %vm3514, %vm3515
          %v3517 = vsel %vm3516, %v3508, %v3513
          %v3518 = vrsqrt.pop %v3448
          %v3519 = vmul.f32 %v3518, %v3448
          %v3520 = vmul.f32 %v3519, %v3518
          %v3521 = vmul.f32 0.5, %v3520
          %v3522 = vsub.f32 1.5, %v3521
          %v3523 = vmul.f32 %v3518, %v3522
          %vm3524 = vweird.f32 %v3448
          %vm3525 = vweird.f32 %v3518
          %vm3526 = vmor %vm3524, %vm3525
          %v3527 = vsel %vm3526, %v3518, %v3523
          %v3528 = vrsqrt.pop %v3449
          %v3529 = vmul.f32 %v3528, %v3449
          %v3530 = vmul.f32 %v3529, %v3528
          %v3531 = vmul.f32 0.5, %v3530
          %v3532 = vsub.f32 1.5, %v3531
          %v3533 = vmul.f32 %v3528, %v3532
          %vm3534 = vweird.f32 %v3449
          %vm3535 = vweird.f32 %v3528
          %vm3536 = vmor %vm3534, %vm3535
          %v3537 = vsel %vm3536, %v3528, %v3533
          %v3538 = vrsqrt.pop %v3450
          %v3539 = vmul.f32 %v3538, %v3450
          %v3540 = vmul.f32 %v3539, %v3538
          %v3541 = vmul.f32 0.5, %v3540
          %v3542 = vsub.f32 1.5, %v3541
          %v3543 = vmul.f32 %v3538, %v3542
          %vm3544 = vweird.f32 %v3450
          %vm3545 = vweird.f32 %v3538
          %vm3546 = vmor %vm3544, %vm3545
          %v3547 = vsel %vm3546, %v3538, %v3543
          %v3548 = vrsqrt.pop %v3451
          %v3549 = vmul.f32 %v3548, %v3451
          %v3550 = vmul.f32 %v3549, %v3548
          %v3551 = vmul.f32 0.5, %v3550
          %v3552 = vsub.f32 1.5, %v3551
          %v3553 = vmul.f32 %v3548, %v3552
          %vm3554 = vweird.f32 %v3451
          %vm3555 = vweird.f32 %v3548
          %vm3556 = vmor %vm3554, %vm3555
          %v3557 = vsel %vm3556, %v3548, %v3553
          %v3558 = vrsqrt.pop %v3452
          %v3559 = vmul.f32 %v3558, %v3452
          %v3560 = vmul.f32 %v3559, %v3558
          %v3561 = vmul.f32 0.5, %v3560
          %v3562 = vsub.f32 1.5, %v3561
          %v3563 = vmul.f32 %v3558, %v3562
          %vm3564 = vweird.f32 %v3452
          %vm3565 = vweird.f32 %v3558
          %vm3566 = vmor %vm3564, %vm3565
          %v3567 = vsel %vm3566, %v3558, %v3563
          %v3568 = vrsqrt.pop %v3453
          %v3569 = vmul.f32 %v3568, %v3453
          %v3570 = vmul.f32 %v3569, %v3568
          %v3571 = vmul.f32 0.5, %v3570
          %v3572 = vsub.f32 1.5, %v3571
          %v3573 = vmul.f32 %v3568, %v3572
          %vm3574 = vweird.f32 %v3453
          %vm3575 = vweird.f32 %v3568
          %vm3576 = vmor %vm3574, %vm3575
          %v3577 = vsel %vm3576, %v3568, %v3573
          %v3578 = vrsqrt.pop %v3454
          %v3579 = vmul.f32 %v3578, %v3454
          %v3580 = vmul.f32 %v3579, %v3578
          %v3581 = vmul.f32 0.5, %v3580
          %v3582 = vsub.f32 1.5, %v3581
          %v3583 = vmul.f32 %v3578, %v3582
          %vm3584 = vweird.f32 %v3454
          %vm3585 = vweird.f32 %v3578
          %vm3586 = vmor %vm3584, %vm3585
          %v3587 = vsel %vm3586, %v3578, %v3583
          %v3588 = vrsqrt.pop %v3455
          %v3589 = vmul.f32 %v3588, %v3455
          %v3590 = vmul.f32 %v3589, %v3588
          %v3591 = vmul.f32 0.5, %v3590
          %v3592 = vsub.f32 1.5, %v3591
          %v3593 = vmul.f32 %v3588, %v3592
          %vm3594 = vweird.f32 %v3455
          %vm3595 = vweird.f32 %v3588
          %vm3596 = vmor %vm3594, %vm3595
          %v3597 = vsel %vm3596, %v3588, %v3593
          %v3598 = vrsqrt.pop %v3456
          %v3599 = vmul.f32 %v3598, %v3456
          %v3600 = vmul.f32 %v3599, %v3598
          %v3601 = vmul.f32 0.5, %v3600
          %v3602 = vsub.f32 1.5, %v3601
          %v3603 = vmul.f32 %v3598, %v3602
          %vm3604 = vweird.f32 %v3456
          %vm3605 = vweird.f32 %v3598
          %vm3606 = vmor %vm3604, %vm3605
          %v3607 = vsel %vm3606, %v3598, %v3603
          %v3608 = vrsqrt.pop %v3457
          %v3609 = vmul.f32 %v3608, %v3457
          %v3610 = vmul.f32 %v3609, %v3608
          %v3611 = vmul.f32 0.5, %v3610
          %v3612 = vsub.f32 1.5, %v3611
          %v3613 = vmul.f32 %v3608, %v3612
          %vm3614 = vweird.f32 %v3457
          %vm3615 = vweird.f32 %v3608
          %vm3616 = vmor %vm3614, %vm3615
          %v3617 = vsel %vm3616, %v3608, %v3613
          %3634 = vrot.lane.b32.xlu0 %v3467, 127
          %v3635 = vpop.permute.xlu0 %3634
          %3636 = vrot.lane.b32.xlu0 %v3477, 127
          %v3637 = vpop.permute.xlu0 %3636
          %3638 = vrot.lane.b32.xlu0 %v3487, 127
          %v3639 = vpop.permute.xlu0 %3638
          %3640 = vrot.lane.b32.xlu0 %v3497, 127
          %v3641 = vpop.permute.xlu0 %3640
          %3642 = vrot.lane.b32.xlu0 %v3507, 127
          %v3643 = vpop.permute.xlu0 %3642
          %3644 = vrot.lane.b32.xlu0 %v3517, 127
          %v3645 = vpop.permute.xlu0 %3644
          %3646 = vrot.lane.b32.xlu0 %v3527, 127
          %v3647 = vpop.permute.xlu0 %3646
          %3648 = vrot.lane.b32.xlu0 %v3537, 127
          %v3649 = vpop.permute.xlu0 %3648
          %3650 = vrot.lane.b32.xlu0 %v3547, 127
          %v3651 = vpop.permute.xlu0 %3650
          %3652 = vrot.lane.b32.xlu0 %v3557, 127
          %v3653 = vpop.permute.xlu0 %3652
          %3654 = vrot.lane.b32.xlu0 %v3567, 127
          %v3655 = vpop.permute.xlu0 %3654
          %3656 = vrot.lane.b32.xlu0 %v3577, 127
          %v3657 = vpop.permute.xlu0 %3656
          %3658 = vrot.lane.b32.xlu0 %v3587, 127
          %v3659 = vpop.permute.xlu0 %3658
          %3660 = vrot.lane.b32.xlu0 %v3597, 127
          %v3661 = vpop.permute.xlu0 %3660
          %3662 = vrot.lane.b32.xlu0 %v3607, 127
          %v3663 = vpop.permute.xlu0 %3662
          %3664 = vrot.lane.b32.xlu0 %v3617, 127
          %v3665 = vpop.permute.xlu0 %3664
          %v3682 = vmul.f32 %v3426, %v3635
          %v3683 = vmul.f32 %v3427, %v3637
          %v3684 = vmul.f32 %v3428, %v3639
          %v3685 = vmul.f32 %v3429, %v3641
          %v3686 = vmul.f32 %v3430, %v3643
          %v3687 = vmul.f32 %v3431, %v3645
          %v3688 = vmul.f32 %v3432, %v3647
          %v3689 = vmul.f32 %v3433, %v3649
          %v3690 = vmul.f32 %v3434, %v3651
          %v3691 = vmul.f32 %v3435, %v3653
          %v3692 = vmul.f32 %v3436, %v3655
          %v3693 = vmul.f32 %v3437, %v3657
          %v3694 = vmul.f32 %v3438, %v3659
          %v3695 = vmul.f32 %v3439, %v3661
          %v3696 = vmul.f32 %v3440, %v3663
          %v3697 = vmul.f32 %v3441, %v3665
          %vm3698 = vcmask 7168
          %3699 = vst.msk [vmem:[#allocation3] sm:$0xff] %vm3698, %v3682
          %3700 = vst.msk [vmem:[#allocation3 + $0x8] sm:$0xff] %vm3698, %v3683
          %3701 = vst.msk [vmem:[#allocation3 + $0x10] sm:$0xff] %vm3698, %v3684
          %3702 = vst.msk [vmem:[#allocation3 + $0x18] sm:$0xff] %vm3698, %v3685
          %3703 = vst.msk [vmem:[#allocation3 + $0x20] sm:$0xff] %vm3698, %v3686
          %3704 = vst.msk [vmem:[#allocation3 + $0x28] sm:$0xff] %vm3698, %v3687
          %3705 = vst.msk [vmem:[#allocation3 + $0x30] sm:$0xff] %vm3698, %v3688
          %3706 = vst.msk [vmem:[#allocation3 + $0x38] sm:$0xff] %vm3698, %v3689
          %3707 = vst.msk [vmem:[#allocation3 + $0x40] sm:$0xff] %vm3698, %v3690
          %3708 = vst.msk [vmem:[#allocation3 + $0x48] sm:$0xff] %vm3698, %v3691
          %3709 = vst.msk [vmem:[#allocation3 + $0x50] sm:$0xff] %vm3698, %v3692
          %3710 = vst.msk [vmem:[#allocation3 + $0x58] sm:$0xff] %vm3698, %v3693
          %3711 = vst.msk [vmem:[#allocation3 + $0x60] sm:$0xff] %vm3698, %v3694
          %3712 = vst.msk [vmem:[#allocation3 + $0x68] sm:$0xff] %vm3698, %v3695
          %3713 = vst.msk [vmem:[#allocation3 + $0x70] sm:$0xff] %vm3698, %v3696
          %3714 = vst.msk [vmem:[#allocation3 + $0x78] sm:$0xff] %vm3698, %v3697
          %v3715 = vld [vmem:[%s5] sm:$0xff]
          %v3716 = vld [vmem:[%s5 + $0x8] sm:$0xff]
          %v3717 = vld [vmem:[%s5 + $0x10] sm:$0xff]
          %v3718 = vld [vmem:[%s5 + $0x18] sm:$0xff]
          %v3719 = vld [vmem:[%s5 + $0x20] sm:$0xff]
          %v3720 = vld [vmem:[%s5 + $0x28] sm:$0xff]
          %v3721 = vld [vmem:[%s5 + $0x30] sm:$0xff]
          %v3722 = vld [vmem:[%s5 + $0x38] sm:$0xff]
          %v3723 = vld [vmem:[%s5 + $0x40] sm:$0xff]
          %v3724 = vld [vmem:[%s5 + $0x48] sm:$0xff]
          %v3725 = vld [vmem:[%s5 + $0x50] sm:$0xff]
          %v3726 = vld [vmem:[%s5 + $0x58] sm:$0xff]
          %v3727 = vld [vmem:[%s5 + $0x60] sm:$0xff]
          %v3728 = vld [vmem:[%s5 + $0x68] sm:$0xff]
          %v3729 = vld [vmem:[%s5 + $0x70] sm:$0xff]
          %v3730 = vld [vmem:[%s5 + $0x78] sm:$0xff]
          %v3731 = vmul.f32 %v3298, %v3682
          %v3732 = vmul.f32 %v3299, %v3683
          %v3733 = vmul.f32 %v3300, %v3684
          %v3734 = vmul.f32 %v3301, %v3685
          %v3735 = vmul.f32 %v3302, %v3686
          %v3736 = vmul.f32 %v3303, %v3687
          %v3737 = vmul.f32 %v3304, %v3688
          %v3738 = vmul.f32 %v3305, %v3689
          %v3739 = vmul.f32 %v3306, %v3690
          %v3740 = vmul.f32 %v3307, %v3691
          %v3741 = vmul.f32 %v3308, %v3692
          %v3742 = vmul.f32 %v3309, %v3693
          %v3743 = vmul.f32 %v3310, %v3694
          %v3744 = vmul.f32 %v3311, %v3695
          %v3745 = vmul.f32 %v3312, %v3696
          %v3746 = vmul.f32 %v3313, %v3697
          %v3747 = vsub.f32 %v3715, %v3731
          %v3748 = vsub.f32 %v3716, %v3732
          %v3749 = vsub.f32 %v3717, %v3733
          %v3750 = vsub.f32 %v3718, %v3734
          %v3751 = vsub.f32 %v3719, %v3735
          %v3752 = vsub.f32 %v3720, %v3736
          %v3753 = vsub.f32 %v3721, %v3737
          %v3754 = vsub.f32 %v3722, %v3738
          %v3755 = vsub.f32 %v3723, %v3739
          %v3756 = vsub.f32 %v3724, %v3740
          %v3757 = vsub.f32 %v3725, %v3741
          %v3758 = vsub.f32 %v3726, %v3742
          %v3759 = vsub.f32 %v3727, %v3743
          %v3760 = vsub.f32 %v3728, %v3744
          %v3761 = vsub.f32 %v3729, %v3745
          %v3762 = vsub.f32 %v3730, %v3746
          %3779 = vrot.lane.b32.xlu0 %v3747, 1
          %v3780 = vpop.permute.xlu0 %3779
          %3781 = vrot.lane.b32.xlu0 %v3748, 1
          %v3782 = vpop.permute.xlu0 %3781
          %3783 = vrot.lane.b32.xlu0 %v3749, 1
          %v3784 = vpop.permute.xlu0 %3783
          %3785 = vrot.lane.b32.xlu0 %v3750, 1
          %v3786 = vpop.permute.xlu0 %3785
          %3787 = vrot.lane.b32.xlu0 %v3751, 1
          %v3788 = vpop.permute.xlu0 %3787
          %3789 = vrot.lane.b32.xlu0 %v3752, 1
          %v3790 = vpop.permute.xlu0 %3789
          %3791 = vrot.lane.b32.xlu0 %v3753, 1
          %v3792 = vpop.permute.xlu0 %3791
          %3793 = vrot.lane.b32.xlu0 %v3754, 1
          %v3794 = vpop.permute.xlu0 %3793
          %3795 = vrot.lane.b32.xlu0 %v3755, 1
          %v3796 = vpop.permute.xlu0 %3795
          %3797 = vrot.lane.b32.xlu0 %v3756, 1
          %v3798 = vpop.permute.xlu0 %3797
          %3799 = vrot.lane.b32.xlu0 %v3757, 1
          %v3800 = vpop.permute.xlu0 %3799
          %3801 = vrot.lane.b32.xlu0 %v3758, 1
          %v3802 = vpop.permute.xlu0 %3801
          %3803 = vrot.lane.b32.xlu0 %v3759, 1
          %v3804 = vpop.permute.xlu0 %3803
          %3805 = vrot.lane.b32.xlu0 %v3760, 1
          %v3806 = vpop.permute.xlu0 %3805
          %3807 = vrot.lane.b32.xlu0 %v3761, 1
          %v3808 = vpop.permute.xlu0 %3807
          %3809 = vrot.lane.b32.xlu0 %v3762, 1
          %v3810 = vpop.permute.xlu0 %3809
          %vm3827 = vcmask 15368
          %3828 = vst.msk [vmem:[#allocation3] sm:$0xff] %vm3827, %v3780
          %3829 = vst.msk [vmem:[#allocation3 + $0x8] sm:$0xff] %vm3827, %v3782
          %3830 = vst.msk [vmem:[#allocation3 + $0x10] sm:$0xff] %vm3827, %v3784
          %3831 = vst.msk [vmem:[#allocation3 + $0x18] sm:$0xff] %vm3827, %v3786
          %3832 = vst.msk [vmem:[#allocation3 + $0x20] sm:$0xff] %vm3827, %v3788
          %3833 = vst.msk [vmem:[#allocation3 + $0x28] sm:$0xff] %vm3827, %v3790
          %3834 = vst.msk [vmem:[#allocation3 + $0x30] sm:$0xff] %vm3827, %v3792
          %3835 = vst.msk [vmem:[#allocation3 + $0x38] sm:$0xff] %vm3827, %v3794
          %3836 = vst.msk [vmem:[#allocation3 + $0x40] sm:$0xff] %vm3827, %v3796
          %3837 = vst.msk [vmem:[#allocation3 + $0x48] sm:$0xff] %vm3827, %v3798
          %3838 = vst.msk [vmem:[#allocation3 + $0x50] sm:$0xff] %vm3827, %v3800
          %3839 = vst.msk [vmem:[#allocation3 + $0x58] sm:$0xff] %vm3827, %v3802
          %3840 = vst.msk [vmem:[#allocation3 + $0x60] sm:$0xff] %vm3827, %v3804
          %3841 = vst.msk [vmem:[#allocation3 + $0x68] sm:$0xff] %vm3827, %v3806
          %3842 = vst.msk [vmem:[#allocation3 + $0x70] sm:$0xff] %vm3827, %v3808
          %3843 = vst.msk [vmem:[#allocation3 + $0x78] sm:$0xff] %vm3827, %v3810
        $region60: #{tpu_custom_call.1} parent=47 // pred_fallthru
          _
        // Predicated region
        $region61: #{tpu_custom_call.1} parent=47 // pred_check
          %p3844 = pneg %p2354
        $region62: #{tpu_custom_call.1} parent=47 // pred_check_branch
          %3846 = sbr.rel (%p3844) target = $region64
        $region63: #{tpu_custom_call.1} parent=47 // pred_region
          %v3847 = vld [vmem:[#allocation3] sm:$0xff]
          %v3848 = vld [vmem:[#allocation3 + $0x8] sm:$0xff]
          %v3849 = vld [vmem:[#allocation3 + $0x10] sm:$0xff]
          %v3850 = vld [vmem:[#allocation3 + $0x18] sm:$0xff]
          %v3851 = vld [vmem:[#allocation3 + $0x20] sm:$0xff]
          %v3852 = vld [vmem:[#allocation3 + $0x28] sm:$0xff]
          %v3853 = vld [vmem:[#allocation3 + $0x30] sm:$0xff]
          %v3854 = vld [vmem:[#allocation3 + $0x38] sm:$0xff]
          %v3855 = vld [vmem:[#allocation3 + $0x40] sm:$0xff]
          %v3856 = vld [vmem:[#allocation3 + $0x48] sm:$0xff]
          %v3857 = vld [vmem:[#allocation3 + $0x50] sm:$0xff]
          %v3858 = vld [vmem:[#allocation3 + $0x58] sm:$0xff]
          %v3859 = vld [vmem:[#allocation3 + $0x60] sm:$0xff]
          %v3860 = vld [vmem:[#allocation3 + $0x68] sm:$0xff]
          %v3861 = vld [vmem:[#allocation3 + $0x70] sm:$0xff]
          %v3862 = vld [vmem:[#allocation3 + $0x78] sm:$0xff]
          %3864 = vset.pattern.permute.xlu0 0
          %3865 = vperm.xlu0 %3864, %v3847
          %v3866 = vpop.permute.xlu0 %3865
          %3869 = vset.pattern.permute.xlu0 0
          %3870 = vperm.xlu0 %3869, %v3848
          %v3871 = vpop.permute.xlu0 %3870
          %3874 = vset.pattern.permute.xlu0 0
          %3875 = vperm.xlu0 %3874, %v3849
          %v3876 = vpop.permute.xlu0 %3875
          %3879 = vset.pattern.permute.xlu0 0
          %3880 = vperm.xlu0 %3879, %v3850
          %v3881 = vpop.permute.xlu0 %3880
          %3884 = vset.pattern.permute.xlu0 0
          %3885 = vperm.xlu0 %3884, %v3851
          %v3886 = vpop.permute.xlu0 %3885
          %3889 = vset.pattern.permute.xlu0 0
          %3890 = vperm.xlu0 %3889, %v3852
          %v3891 = vpop.permute.xlu0 %3890
          %3894 = vset.pattern.permute.xlu0 0
          %3895 = vperm.xlu0 %3894, %v3853
          %v3896 = vpop.permute.xlu0 %3895
          %3899 = vset.pattern.permute.xlu0 0
          %3900 = vperm.xlu0 %3899, %v3854
          %v3901 = vpop.permute.xlu0 %3900
          %3904 = vset.pattern.permute.xlu0 0
          %3905 = vperm.xlu0 %3904, %v3855
          %v3906 = vpop.permute.xlu0 %3905
          %3909 = vset.pattern.permute.xlu0 0
          %3910 = vperm.xlu0 %3909, %v3856
          %v3911 = vpop.permute.xlu0 %3910
          %3914 = vset.pattern.permute.xlu0 0
          %3915 = vperm.xlu0 %3914, %v3857
          %v3916 = vpop.permute.xlu0 %3915
          %3919 = vset.pattern.permute.xlu0 0
          %3920 = vperm.xlu0 %3919, %v3858
          %v3921 = vpop.permute.xlu0 %3920
          %3924 = vset.pattern.permute.xlu0 0
          %3925 = vperm.xlu0 %3924, %v3859
          %v3926 = vpop.permute.xlu0 %3925
          %3929 = vset.pattern.permute.xlu0 0
          %3930 = vperm.xlu0 %3929, %v3860
          %v3931 = vpop.permute.xlu0 %3930
          %3934 = vset.pattern.permute.xlu0 0
          %3935 = vperm.xlu0 %3934, %v3861
          %v3936 = vpop.permute.xlu0 %3935
          %3939 = vset.pattern.permute.xlu0 0
          %3940 = vperm.xlu0 %3939, %v3862
          %v3941 = vpop.permute.xlu0 %3940
          %v3943 = vmul.f32 %v1579, %v3866
          %v3944 = vmul.f32 %v1628, %v3866
          %v3945 = vmul.f32 %v1677, %v3866
          %v3946 = vmul.f32 %v1726, %v3866
          %v3947 = vmul.f32 %v1775, %v3866
          %v3948 = vmul.f32 %v1824, %v3866
          %v3949 = vmul.f32 %v1873, %v3866
          %v3950 = vmul.f32 %v1922, %v3866
          %v3951 = vmul.f32 %v1971, %v3866
          %v3952 = vmul.f32 %v2020, %v3866
          %v3953 = vmul.f32 %v2069, %v3866
          %v3954 = vmul.f32 %v2118, %v3866
          %v3955 = vmul.f32 %v2167, %v3866
          %v3956 = vmul.f32 %v2216, %v3866
          %v3957 = vmul.f32 %v2265, %v3866
          %v3958 = vmul.f32 %v2314, %v3866
          %v3959 = vmul.f32 %v1581, %v3871
          %v3960 = vmul.f32 %v1630, %v3871
          %v3961 = vmul.f32 %v1679, %v3871
          %v3962 = vmul.f32 %v1728, %v3871
          %v3963 = vmul.f32 %v1777, %v3871
          %v3964 = vmul.f32 %v1826, %v3871
          %v3965 = vmul.f32 %v1875, %v3871
          %v3966 = vmul.f32 %v1924, %v3871
          %v3967 = vmul.f32 %v1973, %v3871
          %v3968 = vmul.f32 %v2022, %v3871
          %v3969 = vmul.f32 %v2071, %v3871
          %v3970 = vmul.f32 %v2120, %v3871
          %v3971 = vmul.f32 %v2169, %v3871
          %v3972 = vmul.f32 %v2218, %v3871
          %v3973 = vmul.f32 %v2267, %v3871
          %v3974 = vmul.f32 %v2316, %v3871
          %v3975 = vmul.f32 %v1584, %v3876
          %v3976 = vmul.f32 %v1633, %v3876
          %v3977 = vmul.f32 %v1682, %v3876
          %v3978 = vmul.f32 %v1731, %v3876
          %v3979 = vmul.f32 %v1780, %v3876
          %v3980 = vmul.f32 %v1829, %v3876
          %v3981 = vmul.f32 %v1878, %v3876
          %v3982 = vmul.f32 %v1927, %v3876
          %v3983 = vmul.f32 %v1976, %v3876
          %v3984 = vmul.f32 %v2025, %v3876
          %v3985 = vmul.f32 %v2074, %v3876
          %v3986 = vmul.f32 %v2123, %v3876
          %v3987 = vmul.f32 %v2172, %v3876
          %v3988 = vmul.f32 %v2221, %v3876
          %v3989 = vmul.f32 %v2270, %v3876
          %v3990 = vmul.f32 %v2319, %v3876
          %v3991 = vmul.f32 %v1586, %v3881
          %v3992 = vmul.f32 %v1635, %v3881
          %v3993 = vmul.f32 %v1684, %v3881
          %v3994 = vmul.f32 %v1733, %v3881
          %v3995 = vmul.f32 %v1782, %v3881
          %v3996 = vmul.f32 %v1831, %v3881
          %v3997 = vmul.f32 %v1880, %v3881
          %v3998 = vmul.f32 %v1929, %v3881
          %v3999 = vmul.f32 %v1978, %v3881
          %v4000 = vmul.f32 %v2027, %v3881
          %v4001 = vmul.f32 %v2076, %v3881
          %v4002 = vmul.f32 %v2125, %v3881
          %v4003 = vmul.f32 %v2174, %v3881
          %v4004 = vmul.f32 %v2223, %v3881
          %v4005 = vmul.f32 %v2272, %v3881
          %v4006 = vmul.f32 %v2321, %v3881
          %v4007 = vmul.f32 %v1589, %v3886
          %v4008 = vmul.f32 %v1638, %v3886
          %v4009 = vmul.f32 %v1687, %v3886
          %v4010 = vmul.f32 %v1736, %v3886
          %v4011 = vmul.f32 %v1785, %v3886
          %v4012 = vmul.f32 %v1834, %v3886
          %v4013 = vmul.f32 %v1883, %v3886
          %v4014 = vmul.f32 %v1932, %v3886
          %v4015 = vmul.f32 %v1981, %v3886
          %v4016 = vmul.f32 %v2030, %v3886
          %v4017 = vmul.f32 %v2079, %v3886
          %v4018 = vmul.f32 %v2128, %v3886
          %v4019 = vmul.f32 %v2177, %v3886
          %v4020 = vmul.f32 %v2226, %v3886
          %v4021 = vmul.f32 %v2275, %v3886
          %v4022 = vmul.f32 %v2324, %v3886
          %v4023 = vmul.f32 %v1591, %v3891
          %v4024 = vmul.f32 %v1640, %v3891
          %v4025 = vmul.f32 %v1689, %v3891
          %v4026 = vmul.f32 %v1738, %v3891
          %v4027 = vmul.f32 %v1787, %v3891
          %v4028 = vmul.f32 %v1836, %v3891
          %v4029 = vmul.f32 %v1885, %v3891
          %v4030 = vmul.f32 %v1934, %v3891
          %v4031 = vmul.f32 %v1983, %v3891
          %v4032 = vmul.f32 %v2032, %v3891
          %v4033 = vmul.f32 %v2081, %v3891
          %v4034 = vmul.f32 %v2130, %v3891
          %v4035 = vmul.f32 %v2179, %v3891
          %v4036 = vmul.f32 %v2228, %v3891
          %v4037 = vmul.f32 %v2277, %v3891
          %v4038 = vmul.f32 %v2326, %v3891
          %v4039 = vmul.f32 %v1594, %v3896
          %v4040 = vmul.f32 %v1643, %v3896
          %v4041 = vmul.f32 %v1692, %v3896
          %v4042 = vmul.f32 %v1741, %v3896
          %v4043 = vmul.f32 %v1790, %v3896
          %v4044 = vmul.f32 %v1839, %v3896
          %v4045 = vmul.f32 %v1888, %v3896
          %v4046 = vmul.f32 %v1937, %v3896
          %v4047 = vmul.f32 %v1986, %v3896
          %v4048 = vmul.f32 %v2035, %v3896
          %v4049 = vmul.f32 %v2084, %v3896
          %v4050 = vmul.f32 %v2133, %v3896
          %v4051 = vmul.f32 %v2182, %v3896
          %v4052 = vmul.f32 %v2231, %v3896
          %v4053 = vmul.f32 %v2280, %v3896
          %v4054 = vmul.f32 %v2329, %v3896
          %v4055 = vmul.f32 %v1596, %v3901
          %v4056 = vmul.f32 %v1645, %v3901
          %v4057 = vmul.f32 %v1694, %v3901
          %v4058 = vmul.f32 %v1743, %v3901
          %v4059 = vmul.f32 %v1792, %v3901
          %v4060 = vmul.f32 %v1841, %v3901
          %v4061 = vmul.f32 %v1890, %v3901
          %v4062 = vmul.f32 %v1939, %v3901
          %v4063 = vmul.f32 %v1988, %v3901
          %v4064 = vmul.f32 %v2037, %v3901
          %v4065 = vmul.f32 %v2086, %v3901
          %v4066 = vmul.f32 %v2135, %v3901
          %v4067 = vmul.f32 %v2184, %v3901
          %v4068 = vmul.f32 %v2233, %v3901
          %v4069 = vmul.f32 %v2282, %v3901
          %v4070 = vmul.f32 %v2331, %v3901
          %v4071 = vmul.f32 %v1599, %v3906
          %v4072 = vmul.f32 %v1648, %v3906
          %v4073 = vmul.f32 %v1697, %v3906
          %v4074 = vmul.f32 %v1746, %v3906
          %v4075 = vmul.f32 %v1795, %v3906
          %v4076 = vmul.f32 %v1844, %v3906
          %v4077 = vmul.f32 %v1893, %v3906
          %v4078 = vmul.f32 %v1942, %v3906
          %v4079 = vmul.f32 %v1991, %v3906
          %v4080 = vmul.f32 %v2040, %v3906
          %v4081 = vmul.f32 %v2089, %v3906
          %v4082 = vmul.f32 %v2138, %v3906
          %v4083 = vmul.f32 %v2187, %v3906
          %v4084 = vmul.f32 %v2236, %v3906
          %v4085 = vmul.f32 %v2285, %v3906
          %v4086 = vmul.f32 %v2334, %v3906
          %v4087 = vmul.f32 %v1601, %v3911
          %v4088 = vmul.f32 %v1650, %v3911
          %v4089 = vmul.f32 %v1699, %v3911
          %v4090 = vmul.f32 %v1748, %v3911
          %v4091 = vmul.f32 %v1797, %v3911
          %v4092 = vmul.f32 %v1846, %v3911
          %v4093 = vmul.f32 %v1895, %v3911
          %v4094 = vmul.f32 %v1944, %v3911
          %v4095 = vmul.f32 %v1993, %v3911
          %v4096 = vmul.f32 %v2042, %v3911
          %v4097 = vmul.f32 %v2091, %v3911
          %v4098 = vmul.f32 %v2140, %v3911
          %v4099 = vmul.f32 %v2189, %v3911
          %v4100 = vmul.f32 %v2238, %v3911
          %v4101 = vmul.f32 %v2287, %v3911
          %v4102 = vmul.f32 %v2336, %v3911
          %v4103 = vmul.f32 %v1604, %v3916
          %v4104 = vmul.f32 %v1653, %v3916
          %v4105 = vmul.f32 %v1702, %v3916
          %v4106 = vmul.f32 %v1751, %v3916
          %v4107 = vmul.f32 %v1800, %v3916
          %v4108 = vmul.f32 %v1849, %v3916
          %v4109 = vmul.f32 %v1898, %v3916
          %v4110 = vmul.f32 %v1947, %v3916
          %v4111 = vmul.f32 %v1996, %v3916
          %v4112 = vmul.f32 %v2045, %v3916
          %v4113 = vmul.f32 %v2094, %v3916
          %v4114 = vmul.f32 %v2143, %v3916
          %v4115 = vmul.f32 %v2192, %v3916
          %v4116 = vmul.f32 %v2241, %v3916
          %v4117 = vmul.f32 %v2290, %v3916
          %v4118 = vmul.f32 %v2339, %v3916
          %v4119 = vmul.f32 %v1606, %v3921
          %v4120 = vmul.f32 %v1655, %v3921
          %v4121 = vmul.f32 %v1704, %v3921
          %v4122 = vmul.f32 %v1753, %v3921
          %v4123 = vmul.f32 %v1802, %v3921
          %v4124 = vmul.f32 %v1851, %v3921
          %v4125 = vmul.f32 %v1900, %v3921
          %v4126 = vmul.f32 %v1949, %v3921
          %v4127 = vmul.f32 %v1998, %v3921
          %v4128 = vmul.f32 %v2047, %v3921
          %v4129 = vmul.f32 %v2096, %v3921
          %v4130 = vmul.f32 %v2145, %v3921
          %v4131 = vmul.f32 %v2194, %v3921
          %v4132 = vmul.f32 %v2243, %v3921
          %v4133 = vmul.f32 %v2292, %v3921
          %v4134 = vmul.f32 %v2341, %v3921
          %v4135 = vmul.f32 %v1609, %v3926
          %v4136 = vmul.f32 %v1658, %v3926
          %v4137 = vmul.f32 %v1707, %v3926
          %v4138 = vmul.f32 %v1756, %v3926
          %v4139 = vmul.f32 %v1805, %v3926
          %v4140 = vmul.f32 %v1854, %v3926
          %v4141 = vmul.f32 %v1903, %v3926
          %v4142 = vmul.f32 %v1952, %v3926
          %v4143 = vmul.f32 %v2001, %v3926
          %v4144 = vmul.f32 %v2050, %v3926
          %v4145 = vmul.f32 %v2099, %v3926
          %v4146 = vmul.f32 %v2148, %v3926
          %v4147 = vmul.f32 %v2197, %v3926
          %v4148 = vmul.f32 %v2246, %v3926
          %v4149 = vmul.f32 %v2295, %v3926
          %v4150 = vmul.f32 %v2344, %v3926
          %v4151 = vmul.f32 %v1611, %v3931
          %v4152 = vmul.f32 %v1660, %v3931
          %v4153 = vmul.f32 %v1709, %v3931
          %v4154 = vmul.f32 %v1758, %v3931
          %v4155 = vmul.f32 %v1807, %v3931
          %v4156 = vmul.f32 %v1856, %v3931
          %v4157 = vmul.f32 %v1905, %v3931
          %v4158 = vmul.f32 %v1954, %v3931
          %v4159 = vmul.f32 %v2003, %v3931
          %v4160 = vmul.f32 %v2052, %v3931
          %v4161 = vmul.f32 %v2101, %v3931
          %v4162 = vmul.f32 %v2150, %v3931
          %v4163 = vmul.f32 %v2199, %v3931
          %v4164 = vmul.f32 %v2248, %v3931
          %v4165 = vmul.f32 %v2297, %v3931
          %v4166 = vmul.f32 %v2346, %v3931
          %v4167 = vmul.f32 %v1614, %v3936
          %v4168 = vmul.f32 %v1663, %v3936
          %v4169 = vmul.f32 %v1712, %v3936
          %v4170 = vmul.f32 %v1761, %v3936
          %v4171 = vmul.f32 %v1810, %v3936
          %v4172 = vmul.f32 %v1859, %v3936
          %v4173 = vmul.f32 %v1908, %v3936
          %v4174 = vmul.f32 %v1957, %v3936
          %v4175 = vmul.f32 %v2006, %v3936
          %v4176 = vmul.f32 %v2055, %v3936
          %v4177 = vmul.f32 %v2104, %v3936
          %v4178 = vmul.f32 %v2153, %v3936
          %v4179 = vmul.f32 %v2202, %v3936
          %v4180 = vmul.f32 %v2251, %v3936
          %v4181 = vmul.f32 %v2300, %v3936
          %v4182 = vmul.f32 %v2349, %v3936
          %v4183 = vmul.f32 %v1616, %v3941
          %v4184 = vmul.f32 %v1665, %v3941
          %v4185 = vmul.f32 %v1714, %v3941
          %v4186 = vmul.f32 %v1763, %v3941
          %v4187 = vmul.f32 %v1812, %v3941
          %v4188 = vmul.f32 %v1861, %v3941
          %v4189 = vmul.f32 %v1910, %v3941
          %v4190 = vmul.f32 %v1959, %v3941
          %v4191 = vmul.f32 %v2008, %v3941
          %v4192 = vmul.f32 %v2057, %v3941
          %v4193 = vmul.f32 %v2106, %v3941
          %v4194 = vmul.f32 %v2155, %v3941
          %v4195 = vmul.f32 %v2204, %v3941
          %v4196 = vmul.f32 %v2253, %v3941
          %v4197 = vmul.f32 %v2302, %v3941
          %v4198 = vmul.f32 %v2351, %v3941
          %4199 = vset.pattern.permute.xlu0 1
          %4200 = vperm.xlu0 %4199, %v3847
          %v4201 = vpop.permute.xlu0 %4200
          %4203 = vset.pattern.permute.xlu0 1
          %4204 = vperm.xlu0 %4203, %v3848
          %v4205 = vpop.permute.xlu0 %4204
          %4207 = vset.pattern.permute.xlu0 1
          %4208 = vperm.xlu0 %4207, %v3849
          %v4209 = vpop.permute.xlu0 %4208
          %4211 = vset.pattern.permute.xlu0 1
          %4212 = vperm.xlu0 %4211, %v3850
          %v4213 = vpop.permute.xlu0 %4212
          %4215 = vset.pattern.permute.xlu0 1
          %4216 = vperm.xlu0 %4215, %v3851
          %v4217 = vpop.permute.xlu0 %4216
          %4219 = vset.pattern.permute.xlu0 1
          %4220 = vperm.xlu0 %4219, %v3852
          %v4221 = vpop.permute.xlu0 %4220
          %4223 = vset.pattern.permute.xlu0 1
          %4224 = vperm.xlu0 %4223, %v3853
          %v4225 = vpop.permute.xlu0 %4224
          %4227 = vset.pattern.permute.xlu0 1
          %4228 = vperm.xlu0 %4227, %v3854
          %v4229 = vpop.permute.xlu0 %4228
          %4231 = vset.pattern.permute.xlu0 1
          %4232 = vperm.xlu0 %4231, %v3855
          %v4233 = vpop.permute.xlu0 %4232
          %4235 = vset.pattern.permute.xlu0 1
          %4236 = vperm.xlu0 %4235, %v3856
          %v4237 = vpop.permute.xlu0 %4236
          %4239 = vset.pattern.permute.xlu0 1
          %4240 = vperm.xlu0 %4239, %v3857
          %v4241 = vpop.permute.xlu0 %4240
          %4243 = vset.pattern.permute.xlu0 1
          %4244 = vperm.xlu0 %4243, %v3858
          %v4245 = vpop.permute.xlu0 %4244
          %4247 = vset.pattern.permute.xlu0 1
          %4248 = vperm.xlu0 %4247, %v3859
          %v4249 = vpop.permute.xlu0 %4248
          %4251 = vset.pattern.permute.xlu0 1
          %4252 = vperm.xlu0 %4251, %v3860
          %v4253 = vpop.permute.xlu0 %4252
          %4255 = vset.pattern.permute.xlu0 1
          %4256 = vperm.xlu0 %4255, %v3861
          %v4257 = vpop.permute.xlu0 %4256
          %4259 = vset.pattern.permute.xlu0 1
          %4260 = vperm.xlu0 %4259, %v3862
          %v4261 = vpop.permute.xlu0 %4260
          %v4263 = vadd.f32 %v3943, %v4201
          %v4264 = vadd.f32 %v3944, %v4201
          %v4265 = vadd.f32 %v3945, %v4201
          %v4266 = vadd.f32 %v3946, %v4201
          %v4267 = vadd.f32 %v3947, %v4201
          %v4268 = vadd.f32 %v3948, %v4201
          %v4269 = vadd.f32 %v3949, %v4201
          %v4270 = vadd.f32 %v3950, %v4201
          %v4271 = vadd.f32 %v3951, %v4201
          %v4272 = vadd.f32 %v3952, %v4201
          %v4273 = vadd.f32 %v3953, %v4201
          %v4274 = vadd.f32 %v3954, %v4201
          %v4275 = vadd.f32 %v3955, %v4201
          %v4276 = vadd.f32 %v3956, %v4201
          %v4277 = vadd.f32 %v3957, %v4201
          %v4278 = vadd.f32 %v3958, %v4201
          %v4279 = vadd.f32 %v3959, %v4205
          %v4280 = vadd.f32 %v3960, %v4205
          %v4281 = vadd.f32 %v3961, %v4205
          %v4282 = vadd.f32 %v3962, %v4205
          %v4283 = vadd.f32 %v3963, %v4205
          %v4284 = vadd.f32 %v3964, %v4205
          %v4285 = vadd.f32 %v3965, %v4205
          %v4286 = vadd.f32 %v3966, %v4205
          %v4287 = vadd.f32 %v3967, %v4205
          %v4288 = vadd.f32 %v3968, %v4205
          %v4289 = vadd.f32 %v3969, %v4205
          %v4290 = vadd.f32 %v3970, %v4205
          %v4291 = vadd.f32 %v3971, %v4205
          %v4292 = vadd.f32 %v3972, %v4205
          %v4293 = vadd.f32 %v3973, %v4205
          %v4294 = vadd.f32 %v3974, %v4205
          %v4295 = vadd.f32 %v3975, %v4209
          %v4296 = vadd.f32 %v3976, %v4209
          %v4297 = vadd.f32 %v3977, %v4209
          %v4298 = vadd.f32 %v3978, %v4209
          %v4299 = vadd.f32 %v3979, %v4209
          %v4300 = vadd.f32 %v3980, %v4209
          %v4301 = vadd.f32 %v3981, %v4209
          %v4302 = vadd.f32 %v3982, %v4209
          %v4303 = vadd.f32 %v3983, %v4209
          %v4304 = vadd.f32 %v3984, %v4209
          %v4305 = vadd.f32 %v3985, %v4209
          %v4306 = vadd.f32 %v3986, %v4209
          %v4307 = vadd.f32 %v3987, %v4209
          %v4308 = vadd.f32 %v3988, %v4209
          %v4309 = vadd.f32 %v3989, %v4209
          %v4310 = vadd.f32 %v3990, %v4209
          %v4311 = vadd.f32 %v3991, %v4213
          %v4312 = vadd.f32 %v3992, %v4213
          %v4313 = vadd.f32 %v3993, %v4213
          %v4314 = vadd.f32 %v3994, %v4213
          %v4315 = vadd.f32 %v3995, %v4213
          %v4316 = vadd.f32 %v3996, %v4213
          %v4317 = vadd.f32 %v3997, %v4213
          %v4318 = vadd.f32 %v3998, %v4213
          %v4319 = vadd.f32 %v3999, %v4213
          %v4320 = vadd.f32 %v4000, %v4213
          %v4321 = vadd.f32 %v4001, %v4213
          %v4322 = vadd.f32 %v4002, %v4213
          %v4323 = vadd.f32 %v4003, %v4213
          %v4324 = vadd.f32 %v4004, %v4213
          %v4325 = vadd.f32 %v4005, %v4213
          %v4326 = vadd.f32 %v4006, %v4213
          %v4327 = vadd.f32 %v4007, %v4217
          %v4328 = vadd.f32 %v4008, %v4217
          %v4329 = vadd.f32 %v4009, %v4217
          %v4330 = vadd.f32 %v4010, %v4217
          %v4331 = vadd.f32 %v4011, %v4217
          %v4332 = vadd.f32 %v4012, %v4217
          %v4333 = vadd.f32 %v4013, %v4217
          %v4334 = vadd.f32 %v4014, %v4217
          %v4335 = vadd.f32 %v4015, %v4217
          %v4336 = vadd.f32 %v4016, %v4217
          %v4337 = vadd.f32 %v4017, %v4217
          %v4338 = vadd.f32 %v4018, %v4217
          %v4339 = vadd.f32 %v4019, %v4217
          %v4340 = vadd.f32 %v4020, %v4217
          %v4341 = vadd.f32 %v4021, %v4217
          %v4342 = vadd.f32 %v4022, %v4217
          %v4343 = vadd.f32 %v4023, %v4221
          %v4344 = vadd.f32 %v4024, %v4221
          %v4345 = vadd.f32 %v4025, %v4221
          %v4346 = vadd.f32 %v4026, %v4221
          %v4347 = vadd.f32 %v4027, %v4221
          %v4348 = vadd.f32 %v4028, %v4221
          %v4349 = vadd.f32 %v4029, %v4221
          %v4350 = vadd.f32 %v4030, %v4221
          %v4351 = vadd.f32 %v4031, %v4221
          %v4352 = vadd.f32 %v4032, %v4221
          %v4353 = vadd.f32 %v4033, %v4221
          %v4354 = vadd.f32 %v4034, %v4221
          %v4355 = vadd.f32 %v4035, %v4221
          %v4356 = vadd.f32 %v4036, %v4221
          %v4357 = vadd.f32 %v4037, %v4221
          %v4358 = vadd.f32 %v4038, %v4221
          %v4359 = vadd.f32 %v4039, %v4225
          %v4360 = vadd.f32 %v4040, %v4225
          %v4361 = vadd.f32 %v4041, %v4225
          %v4362 = vadd.f32 %v4042, %v4225
          %v4363 = vadd.f32 %v4043, %v4225
          %v4364 = vadd.f32 %v4044, %v4225
          %v4365 = vadd.f32 %v4045, %v4225
          %v4366 = vadd.f32 %v4046, %v4225
          %v4367 = vadd.f32 %v4047, %v4225
          %v4368 = vadd.f32 %v4048, %v4225
          %v4369 = vadd.f32 %v4049, %v4225
          %v4370 = vadd.f32 %v4050, %v4225
          %v4371 = vadd.f32 %v4051, %v4225
          %v4372 = vadd.f32 %v4052, %v4225
          %v4373 = vadd.f32 %v4053, %v4225
          %v4374 = vadd.f32 %v4054, %v4225
          %v4375 = vadd.f32 %v4055, %v4229
          %v4376 = vadd.f32 %v4056, %v4229
          %v4377 = vadd.f32 %v4057, %v4229
          %v4378 = vadd.f32 %v4058, %v4229
          %v4379 = vadd.f32 %v4059, %v4229
          %v4380 = vadd.f32 %v4060, %v4229
          %v4381 = vadd.f32 %v4061, %v4229
          %v4382 = vadd.f32 %v4062, %v4229
          %v4383 = vadd.f32 %v4063, %v4229
          %v4384 = vadd.f32 %v4064, %v4229
          %v4385 = vadd.f32 %v4065, %v4229
          %v4386 = vadd.f32 %v4066, %v4229
          %v4387 = vadd.f32 %v4067, %v4229
          %v4388 = vadd.f32 %v4068, %v4229
          %v4389 = vadd.f32 %v4069, %v4229
          %v4390 = vadd.f32 %v4070, %v4229
          %v4391 = vadd.f32 %v4071, %v4233
          %v4392 = vadd.f32 %v4072, %v4233
          %v4393 = vadd.f32 %v4073, %v4233
          %v4394 = vadd.f32 %v4074, %v4233
          %v4395 = vadd.f32 %v4075, %v4233
          %v4396 = vadd.f32 %v4076, %v4233
          %v4397 = vadd.f32 %v4077, %v4233
          %v4398 = vadd.f32 %v4078, %v4233
          %v4399 = vadd.f32 %v4079, %v4233
          %v4400 = vadd.f32 %v4080, %v4233
          %v4401 = vadd.f32 %v4081, %v4233
          %v4402 = vadd.f32 %v4082, %v4233
          %v4403 = vadd.f32 %v4083, %v4233
          %v4404 = vadd.f32 %v4084, %v4233
          %v4405 = vadd.f32 %v4085, %v4233
          %v4406 = vadd.f32 %v4086, %v4233
          %v4407 = vadd.f32 %v4087, %v4237
          %v4408 = vadd.f32 %v4088, %v4237
          %v4409 = vadd.f32 %v4089, %v4237
          %v4410 = vadd.f32 %v4090, %v4237
          %v4411 = vadd.f32 %v4091, %v4237
          %v4412 = vadd.f32 %v4092, %v4237
          %v4413 = vadd.f32 %v4093, %v4237
          %v4414 = vadd.f32 %v4094, %v4237
          %v4415 = vadd.f32 %v4095, %v4237
          %v4416 = vadd.f32 %v4096, %v4237
          %v4417 = vadd.f32 %v4097, %v4237
          %v4418 = vadd.f32 %v4098, %v4237
          %v4419 = vadd.f32 %v4099, %v4237
          %v4420 = vadd.f32 %v4100, %v4237
          %v4421 = vadd.f32 %v4101, %v4237
          %v4422 = vadd.f32 %v4102, %v4237
          %v4423 = vadd.f32 %v4103, %v4241
          %v4424 = vadd.f32 %v4104, %v4241
          %v4425 = vadd.f32 %v4105, %v4241
          %v4426 = vadd.f32 %v4106, %v4241
          %v4427 = vadd.f32 %v4107, %v4241
          %v4428 = vadd.f32 %v4108, %v4241
          %v4429 = vadd.f32 %v4109, %v4241
          %v4430 = vadd.f32 %v4110, %v4241
          %v4431 = vadd.f32 %v4111, %v4241
          %v4432 = vadd.f32 %v4112, %v4241
          %v4433 = vadd.f32 %v4113, %v4241
          %v4434 = vadd.f32 %v4114, %v4241
          %v4435 = vadd.f32 %v4115, %v4241
          %v4436 = vadd.f32 %v4116, %v4241
          %v4437 = vadd.f32 %v4117, %v4241
          %v4438 = vadd.f32 %v4118, %v4241
          %v4439 = vadd.f32 %v4119, %v4245
          %v4440 = vadd.f32 %v4120, %v4245
          %v4441 = vadd.f32 %v4121, %v4245
          %v4442 = vadd.f32 %v4122, %v4245
          %v4443 = vadd.f32 %v4123, %v4245
          %v4444 = vadd.f32 %v4124, %v4245
          %v4445 = vadd.f32 %v4125, %v4245
          %v4446 = vadd.f32 %v4126, %v4245
          %v4447 = vadd.f32 %v4127, %v4245
          %v4448 = vadd.f32 %v4128, %v4245
          %v4449 = vadd.f32 %v4129, %v4245
          %v4450 = vadd.f32 %v4130, %v4245
          %v4451 = vadd.f32 %v4131, %v4245
          %v4452 = vadd.f32 %v4132, %v4245
          %v4453 = vadd.f32 %v4133, %v4245
          %v4454 = vadd.f32 %v4134, %v4245
          %v4455 = vadd.f32 %v4135, %v4249
          %v4456 = vadd.f32 %v4136, %v4249
          %v4457 = vadd.f32 %v4137, %v4249
          %v4458 = vadd.f32 %v4138, %v4249
          %v4459 = vadd.f32 %v4139, %v4249
          %v4460 = vadd.f32 %v4140, %v4249
          %v4461 = vadd.f32 %v4141, %v4249
          %v4462 = vadd.f32 %v4142, %v4249
          %v4463 = vadd.f32 %v4143, %v4249
          %v4464 = vadd.f32 %v4144, %v4249
          %v4465 = vadd.f32 %v4145, %v4249
          %v4466 = vadd.f32 %v4146, %v4249
          %v4467 = vadd.f32 %v4147, %v4249
          %v4468 = vadd.f32 %v4148, %v4249
          %v4469 = vadd.f32 %v4149, %v4249
          %v4470 = vadd.f32 %v4150, %v4249
          %v4471 = vadd.f32 %v4151, %v4253
          %v4472 = vadd.f32 %v4152, %v4253
          %v4473 = vadd.f32 %v4153, %v4253
          %v4474 = vadd.f32 %v4154, %v4253
          %v4475 = vadd.f32 %v4155, %v4253
          %v4476 = vadd.f32 %v4156, %v4253
          %v4477 = vadd.f32 %v4157, %v4253
          %v4478 = vadd.f32 %v4158, %v4253
          %v4479 = vadd.f32 %v4159, %v4253
          %v4480 = vadd.f32 %v4160, %v4253
          %v4481 = vadd.f32 %v4161, %v4253
          %v4482 = vadd.f32 %v4162, %v4253
          %v4483 = vadd.f32 %v4163, %v4253
          %v4484 = vadd.f32 %v4164, %v4253
          %v4485 = vadd.f32 %v4165, %v4253
          %v4486 = vadd.f32 %v4166, %v4253
          %v4487 = vadd.f32 %v4167, %v4257
          %v4488 = vadd.f32 %v4168, %v4257
          %v4489 = vadd.f32 %v4169, %v4257
          %v4490 = vadd.f32 %v4170, %v4257
          %v4491 = vadd.f32 %v4171, %v4257
          %v4492 = vadd.f32 %v4172, %v4257
          %v4493 = vadd.f32 %v4173, %v4257
          %v4494 = vadd.f32 %v4174, %v4257
          %v4495 = vadd.f32 %v4175, %v4257
          %v4496 = vadd.f32 %v4176, %v4257
          %v4497 = vadd.f32 %v4177, %v4257
          %v4498 = vadd.f32 %v4178, %v4257
          %v4499 = vadd.f32 %v4179, %v4257
          %v4500 = vadd.f32 %v4180, %v4257
          %v4501 = vadd.f32 %v4181, %v4257
          %v4502 = vadd.f32 %v4182, %v4257
          %v4503 = vadd.f32 %v4183, %v4261
          %v4504 = vadd.f32 %v4184, %v4261
          %v4505 = vadd.f32 %v4185, %v4261
          %v4506 = vadd.f32 %v4186, %v4261
          %v4507 = vadd.f32 %v4187, %v4261
          %v4508 = vadd.f32 %v4188, %v4261
          %v4509 = vadd.f32 %v4189, %v4261
          %v4510 = vadd.f32 %v4190, %v4261
          %v4511 = vadd.f32 %v4191, %v4261
          %v4512 = vadd.f32 %v4192, %v4261
          %v4513 = vadd.f32 %v4193, %v4261
          %v4514 = vadd.f32 %v4194, %v4261
          %v4515 = vadd.f32 %v4195, %v4261
          %v4516 = vadd.f32 %v4196, %v4261
          %v4517 = vadd.f32 %v4197, %v4261
          %v4518 = vadd.f32 %v4198, %v4261
          %vm4519 = vcmp.ge.f32.partialorder %v4263, 0.0
          %vm4520 = vcmp.ge.f32.partialorder %v4264, 0.0
          %vm4521 = vcmp.ge.f32.partialorder %v4265, 0.0
          %vm4522 = vcmp.ge.f32.partialorder %v4266, 0.0
          %vm4523 = vcmp.ge.f32.partialorder %v4267, 0.0
          %vm4524 = vcmp.ge.f32.partialorder %v4268, 0.0
          %vm4525 = vcmp.ge.f32.partialorder %v4269, 0.0
          %vm4526 = vcmp.ge.f32.partialorder %v4270, 0.0
          %vm4527 = vcmp.ge.f32.partialorder %v4271, 0.0
          %vm4528 = vcmp.ge.f32.partialorder %v4272, 0.0
          %vm4529 = vcmp.ge.f32.partialorder %v4273, 0.0
          %vm4530 = vcmp.ge.f32.partialorder %v4274, 0.0
          %vm4531 = vcmp.ge.f32.partialorder %v4275, 0.0
          %vm4532 = vcmp.ge.f32.partialorder %v4276, 0.0
          %vm4533 = vcmp.ge.f32.partialorder %v4277, 0.0
          %vm4534 = vcmp.ge.f32.partialorder %v4278, 0.0
          %vm4535 = vcmp.ge.f32.partialorder %v4279, 0.0
          %vm4536 = vcmp.ge.f32.partialorder %v4280, 0.0
          %vm4537 = vcmp.ge.f32.partialorder %v4281, 0.0
          %vm4538 = vcmp.ge.f32.partialorder %v4282, 0.0
          %vm4539 = vcmp.ge.f32.partialorder %v4283, 0.0
          %vm4540 = vcmp.ge.f32.partialorder %v4284, 0.0
          %vm4541 = vcmp.ge.f32.partialorder %v4285, 0.0
          %vm4542 = vcmp.ge.f32.partialorder %v4286, 0.0
          %vm4543 = vcmp.ge.f32.partialorder %v4287, 0.0
          %vm4544 = vcmp.ge.f32.partialorder %v4288, 0.0
          %vm4545 = vcmp.ge.f32.partialorder %v4289, 0.0
          %vm4546 = vcmp.ge.f32.partialorder %v4290, 0.0
          %vm4547 = vcmp.ge.f32.partialorder %v4291, 0.0
          %vm4548 = vcmp.ge.f32.partialorder %v4292, 0.0
          %vm4549 = vcmp.ge.f32.partialorder %v4293, 0.0
          %vm4550 = vcmp.ge.f32.partialorder %v4294, 0.0
          %vm4551 = vcmp.ge.f32.partialorder %v4295, 0.0
          %vm4552 = vcmp.ge.f32.partialorder %v4296, 0.0
          %vm4553 = vcmp.ge.f32.partialorder %v4297, 0.0
          %vm4554 = vcmp.ge.f32.partialorder %v4298, 0.0
          %vm4555 = vcmp.ge.f32.partialorder %v4299, 0.0
          %vm4556 = vcmp.ge.f32.partialorder %v4300, 0.0
          %vm4557 = vcmp.ge.f32.partialorder %v4301, 0.0
          %vm4558 = vcmp.ge.f32.partialorder %v4302, 0.0
          %vm4559 = vcmp.ge.f32.partialorder %v4303, 0.0
          %vm4560 = vcmp.ge.f32.partialorder %v4304, 0.0
          %vm4561 = vcmp.ge.f32.partialorder %v4305, 0.0
          %vm4562 = vcmp.ge.f32.partialorder %v4306, 0.0
          %vm4563 = vcmp.ge.f32.partialorder %v4307, 0.0
          %vm4564 = vcmp.ge.f32.partialorder %v4308, 0.0
          %vm4565 = vcmp.ge.f32.partialorder %v4309, 0.0
          %vm4566 = vcmp.ge.f32.partialorder %v4310, 0.0
          %vm4567 = vcmp.ge.f32.partialorder %v4311, 0.0
          %vm4568 = vcmp.ge.f32.partialorder %v4312, 0.0
          %vm4569 = vcmp.ge.f32.partialorder %v4313, 0.0
          %vm4570 = vcmp.ge.f32.partialorder %v4314, 0.0
          %vm4571 = vcmp.ge.f32.partialorder %v4315, 0.0
          %vm4572 = vcmp.ge.f32.partialorder %v4316, 0.0
          %vm4573 = vcmp.ge.f32.partialorder %v4317, 0.0
          %vm4574 = vcmp.ge.f32.partialorder %v4318, 0.0
          %vm4575 = vcmp.ge.f32.partialorder %v4319, 0.0
          %vm4576 = vcmp.ge.f32.partialorder %v4320, 0.0
          %vm4577 = vcmp.ge.f32.partialorder %v4321, 0.0
          %vm4578 = vcmp.ge.f32.partialorder %v4322, 0.0
          %vm4579 = vcmp.ge.f32.partialorder %v4323, 0.0
          %vm4580 = vcmp.ge.f32.partialorder %v4324, 0.0
          %vm4581 = vcmp.ge.f32.partialorder %v4325, 0.0
          %vm4582 = vcmp.ge.f32.partialorder %v4326, 0.0
          %vm4583 = vcmp.ge.f32.partialorder %v4327, 0.0
          %vm4584 = vcmp.ge.f32.partialorder %v4328, 0.0
          %vm4585 = vcmp.ge.f32.partialorder %v4329, 0.0
          %vm4586 = vcmp.ge.f32.partialorder %v4330, 0.0
          %vm4587 = vcmp.ge.f32.partialorder %v4331, 0.0
          %vm4588 = vcmp.ge.f32.partialorder %v4332, 0.0
          %vm4589 = vcmp.ge.f32.partialorder %v4333, 0.0
          %vm4590 = vcmp.ge.f32.partialorder %v4334, 0.0
          %vm4591 = vcmp.ge.f32.partialorder %v4335, 0.0
          %vm4592 = vcmp.ge.f32.partialorder %v4336, 0.0
          %vm4593 = vcmp.ge.f32.partialorder %v4337, 0.0
          %vm4594 = vcmp.ge.f32.partialorder %v4338, 0.0
          %vm4595 = vcmp.ge.f32.partialorder %v4339, 0.0
          %vm4596 = vcmp.ge.f32.partialorder %v4340, 0.0
          %vm4597 = vcmp.ge.f32.partialorder %v4341, 0.0
          %vm4598 = vcmp.ge.f32.partialorder %v4342, 0.0
          %vm4599 = vcmp.ge.f32.partialorder %v4343, 0.0
          %vm4600 = vcmp.ge.f32.partialorder %v4344, 0.0
          %vm4601 = vcmp.ge.f32.partialorder %v4345, 0.0
          %vm4602 = vcmp.ge.f32.partialorder %v4346, 0.0
          %vm4603 = vcmp.ge.f32.partialorder %v4347, 0.0
          %vm4604 = vcmp.ge.f32.partialorder %v4348, 0.0
          %vm4605 = vcmp.ge.f32.partialorder %v4349, 0.0
          %vm4606 = vcmp.ge.f32.partialorder %v4350, 0.0
          %vm4607 = vcmp.ge.f32.partialorder %v4351, 0.0
          %vm4608 = vcmp.ge.f32.partialorder %v4352, 0.0
          %vm4609 = vcmp.ge.f32.partialorder %v4353, 0.0
          %vm4610 = vcmp.ge.f32.partialorder %v4354, 0.0
          %vm4611 = vcmp.ge.f32.partialorder %v4355, 0.0
          %vm4612 = vcmp.ge.f32.partialorder %v4356, 0.0
          %vm4613 = vcmp.ge.f32.partialorder %v4357, 0.0
          %vm4614 = vcmp.ge.f32.partialorder %v4358, 0.0
          %vm4615 = vcmp.ge.f32.partialorder %v4359, 0.0
          %vm4616 = vcmp.ge.f32.partialorder %v4360, 0.0
          %vm4617 = vcmp.ge.f32.partialorder %v4361, 0.0
          %vm4618 = vcmp.ge.f32.partialorder %v4362, 0.0
          %vm4619 = vcmp.ge.f32.partialorder %v4363, 0.0
          %vm4620 = vcmp.ge.f32.partialorder %v4364, 0.0
          %vm4621 = vcmp.ge.f32.partialorder %v4365, 0.0
          %vm4622 = vcmp.ge.f32.partialorder %v4366, 0.0
          %vm4623 = vcmp.ge.f32.partialorder %v4367, 0.0
          %vm4624 = vcmp.ge.f32.partialorder %v4368, 0.0
          %vm4625 = vcmp.ge.f32.partialorder %v4369, 0.0
          %vm4626 = vcmp.ge.f32.partialorder %v4370, 0.0
          %vm4627 = vcmp.ge.f32.partialorder %v4371, 0.0
          %vm4628 = vcmp.ge.f32.partialorder %v4372, 0.0
          %vm4629 = vcmp.ge.f32.partialorder %v4373, 0.0
          %vm4630 = vcmp.ge.f32.partialorder %v4374, 0.0
          %vm4631 = vcmp.ge.f32.partialorder %v4375, 0.0
          %vm4632 = vcmp.ge.f32.partialorder %v4376, 0.0
          %vm4633 = vcmp.ge.f32.partialorder %v4377, 0.0
          %vm4634 = vcmp.ge.f32.partialorder %v4378, 0.0
          %vm4635 = vcmp.ge.f32.partialorder %v4379, 0.0
          %vm4636 = vcmp.ge.f32.partialorder %v4380, 0.0
          %vm4637 = vcmp.ge.f32.partialorder %v4381, 0.0
          %vm4638 = vcmp.ge.f32.partialorder %v4382, 0.0
          %vm4639 = vcmp.ge.f32.partialorder %v4383, 0.0
          %vm4640 = vcmp.ge.f32.partialorder %v4384, 0.0
          %vm4641 = vcmp.ge.f32.partialorder %v4385, 0.0
          %vm4642 = vcmp.ge.f32.partialorder %v4386, 0.0
          %vm4643 = vcmp.ge.f32.partialorder %v4387, 0.0
          %vm4644 = vcmp.ge.f32.partialorder %v4388, 0.0
          %vm4645 = vcmp.ge.f32.partialorder %v4389, 0.0
          %vm4646 = vcmp.ge.f32.partialorder %v4390, 0.0
          %vm4647 = vcmp.ge.f32.partialorder %v4391, 0.0
          %vm4648 = vcmp.ge.f32.partialorder %v4392, 0.0
          %vm4649 = vcmp.ge.f32.partialorder %v4393, 0.0
          %vm4650 = vcmp.ge.f32.partialorder %v4394, 0.0
          %vm4651 = vcmp.ge.f32.partialorder %v4395, 0.0
          %vm4652 = vcmp.ge.f32.partialorder %v4396, 0.0
          %vm4653 = vcmp.ge.f32.partialorder %v4397, 0.0
          %vm4654 = vcmp.ge.f32.partialorder %v4398, 0.0
          %vm4655 = vcmp.ge.f32.partialorder %v4399, 0.0
          %vm4656 = vcmp.ge.f32.partialorder %v4400, 0.0
          %vm4657 = vcmp.ge.f32.partialorder %v4401, 0.0
          %vm4658 = vcmp.ge.f32.partialorder %v4402, 0.0
          %vm4659 = vcmp.ge.f32.partialorder %v4403, 0.0
          %vm4660 = vcmp.ge.f32.partialorder %v4404, 0.0
          %vm4661 = vcmp.ge.f32.partialorder %v4405, 0.0
          %vm4662 = vcmp.ge.f32.partialorder %v4406, 0.0
          %vm4663 = vcmp.ge.f32.partialorder %v4407, 0.0
          %vm4664 = vcmp.ge.f32.partialorder %v4408, 0.0
          %vm4665 = vcmp.ge.f32.partialorder %v4409, 0.0
          %vm4666 = vcmp.ge.f32.partialorder %v4410, 0.0
          %vm4667 = vcmp.ge.f32.partialorder %v4411, 0.0
          %vm4668 = vcmp.ge.f32.partialorder %v4412, 0.0
          %vm4669 = vcmp.ge.f32.partialorder %v4413, 0.0
          %vm4670 = vcmp.ge.f32.partialorder %v4414, 0.0
          %vm4671 = vcmp.ge.f32.partialorder %v4415, 0.0
          %vm4672 = vcmp.ge.f32.partialorder %v4416, 0.0
          %vm4673 = vcmp.ge.f32.partialorder %v4417, 0.0
          %vm4674 = vcmp.ge.f32.partialorder %v4418, 0.0
          %vm4675 = vcmp.ge.f32.partialorder %v4419, 0.0
          %vm4676 = vcmp.ge.f32.partialorder %v4420, 0.0
          %vm4677 = vcmp.ge.f32.partialorder %v4421, 0.0
          %vm4678 = vcmp.ge.f32.partialorder %v4422, 0.0
          %vm4679 = vcmp.ge.f32.partialorder %v4423, 0.0
          %vm4680 = vcmp.ge.f32.partialorder %v4424, 0.0
          %vm4681 = vcmp.ge.f32.partialorder %v4425, 0.0
          %vm4682 = vcmp.ge.f32.partialorder %v4426, 0.0
          %vm4683 = vcmp.ge.f32.partialorder %v4427, 0.0
          %vm4684 = vcmp.ge.f32.partialorder %v4428, 0.0
          %vm4685 = vcmp.ge.f32.partialorder %v4429, 0.0
          %vm4686 = vcmp.ge.f32.partialorder %v4430, 0.0
          %vm4687 = vcmp.ge.f32.partialorder %v4431, 0.0
          %vm4688 = vcmp.ge.f32.partialorder %v4432, 0.0
          %vm4689 = vcmp.ge.f32.partialorder %v4433, 0.0
          %vm4690 = vcmp.ge.f32.partialorder %v4434, 0.0
          %vm4691 = vcmp.ge.f32.partialorder %v4435, 0.0
          %vm4692 = vcmp.ge.f32.partialorder %v4436, 0.0
          %vm4693 = vcmp.ge.f32.partialorder %v4437, 0.0
          %vm4694 = vcmp.ge.f32.partialorder %v4438, 0.0
          %vm4695 = vcmp.ge.f32.partialorder %v4439, 0.0
          %vm4696 = vcmp.ge.f32.partialorder %v4440, 0.0
          %vm4697 = vcmp.ge.f32.partialorder %v4441, 0.0
          %vm4698 = vcmp.ge.f32.partialorder %v4442, 0.0
          %vm4699 = vcmp.ge.f32.partialorder %v4443, 0.0
          %vm4700 = vcmp.ge.f32.partialorder %v4444, 0.0
          %vm4701 = vcmp.ge.f32.partialorder %v4445, 0.0
          %vm4702 = vcmp.ge.f32.partialorder %v4446, 0.0
          %vm4703 = vcmp.ge.f32.partialorder %v4447, 0.0
          %vm4704 = vcmp.ge.f32.partialorder %v4448, 0.0
          %vm4705 = vcmp.ge.f32.partialorder %v4449, 0.0
          %vm4706 = vcmp.ge.f32.partialorder %v4450, 0.0
          %vm4707 = vcmp.ge.f32.partialorder %v4451, 0.0
          %vm4708 = vcmp.ge.f32.partialorder %v4452, 0.0
          %vm4709 = vcmp.ge.f32.partialorder %v4453, 0.0
          %vm4710 = vcmp.ge.f32.partialorder %v4454, 0.0
          %vm4711 = vcmp.ge.f32.partialorder %v4455, 0.0
          %vm4712 = vcmp.ge.f32.partialorder %v4456, 0.0
          %vm4713 = vcmp.ge.f32.partialorder %v4457, 0.0
          %vm4714 = vcmp.ge.f32.partialorder %v4458, 0.0
          %vm4715 = vcmp.ge.f32.partialorder %v4459, 0.0
          %vm4716 = vcmp.ge.f32.partialorder %v4460, 0.0
          %vm4717 = vcmp.ge.f32.partialorder %v4461, 0.0
          %vm4718 = vcmp.ge.f32.partialorder %v4462, 0.0
          %vm4719 = vcmp.ge.f32.partialorder %v4463, 0.0
          %vm4720 = vcmp.ge.f32.partialorder %v4464, 0.0
          %vm4721 = vcmp.ge.f32.partialorder %v4465, 0.0
          %vm4722 = vcmp.ge.f32.partialorder %v4466, 0.0
          %vm4723 = vcmp.ge.f32.partialorder %v4467, 0.0
          %vm4724 = vcmp.ge.f32.partialorder %v4468, 0.0
          %vm4725 = vcmp.ge.f32.partialorder %v4469, 0.0
          %vm4726 = vcmp.ge.f32.partialorder %v4470, 0.0
          %vm4727 = vcmp.ge.f32.partialorder %v4471, 0.0
          %vm4728 = vcmp.ge.f32.partialorder %v4472, 0.0
          %vm4729 = vcmp.ge.f32.partialorder %v4473, 0.0
          %vm4730 = vcmp.ge.f32.partialorder %v4474, 0.0
          %vm4731 = vcmp.ge.f32.partialorder %v4475, 0.0
          %vm4732 = vcmp.ge.f32.partialorder %v4476, 0.0
          %vm4733 = vcmp.ge.f32.partialorder %v4477, 0.0
          %vm4734 = vcmp.ge.f32.partialorder %v4478, 0.0
          %vm4735 = vcmp.ge.f32.partialorder %v4479, 0.0
          %vm4736 = vcmp.ge.f32.partialorder %v4480, 0.0
          %vm4737 = vcmp.ge.f32.partialorder %v4481, 0.0
          %vm4738 = vcmp.ge.f32.partialorder %v4482, 0.0
          %vm4739 = vcmp.ge.f32.partialorder %v4483, 0.0
          %vm4740 = vcmp.ge.f32.partialorder %v4484, 0.0
          %vm4741 = vcmp.ge.f32.partialorder %v4485, 0.0
          %vm4742 = vcmp.ge.f32.partialorder %v4486, 0.0
          %vm4743 = vcmp.ge.f32.partialorder %v4487, 0.0
          %vm4744 = vcmp.ge.f32.partialorder %v4488, 0.0
          %vm4745 = vcmp.ge.f32.partialorder %v4489, 0.0
          %vm4746 = vcmp.ge.f32.partialorder %v4490, 0.0
          %vm4747 = vcmp.ge.f32.partialorder %v4491, 0.0
          %vm4748 = vcmp.ge.f32.partialorder %v4492, 0.0
          %vm4749 = vcmp.ge.f32.partialorder %v4493, 0.0
          %vm4750 = vcmp.ge.f32.partialorder %v4494, 0.0
          %vm4751 = vcmp.ge.f32.partialorder %v4495, 0.0
          %vm4752 = vcmp.ge.f32.partialorder %v4496, 0.0
          %vm4753 = vcmp.ge.f32.partialorder %v4497, 0.0
          %vm4754 = vcmp.ge.f32.partialorder %v4498, 0.0
          %vm4755 = vcmp.ge.f32.partialorder %v4499, 0.0
          %vm4756 = vcmp.ge.f32.partialorder %v4500, 0.0
          %vm4757 = vcmp.ge.f32.partialorder %v4501, 0.0
          %vm4758 = vcmp.ge.f32.partialorder %v4502, 0.0
          %vm4759 = vcmp.ge.f32.partialorder %v4503, 0.0
          %vm4760 = vcmp.ge.f32.partialorder %v4504, 0.0
          %vm4761 = vcmp.ge.f32.partialorder %v4505, 0.0
          %vm4762 = vcmp.ge.f32.partialorder %v4506, 0.0
          %vm4763 = vcmp.ge.f32.partialorder %v4507, 0.0
          %vm4764 = vcmp.ge.f32.partialorder %v4508, 0.0
          %vm4765 = vcmp.ge.f32.partialorder %v4509, 0.0
          %vm4766 = vcmp.ge.f32.partialorder %v4510, 0.0
          %vm4767 = vcmp.ge.f32.partialorder %v4511, 0.0
          %vm4768 = vcmp.ge.f32.partialorder %v4512, 0.0
          %vm4769 = vcmp.ge.f32.partialorder %v4513, 0.0
          %vm4770 = vcmp.ge.f32.partialorder %v4514, 0.0
          %vm4771 = vcmp.ge.f32.partialorder %v4515, 0.0
          %vm4772 = vcmp.ge.f32.partialorder %v4516, 0.0
          %vm4773 = vcmp.ge.f32.partialorder %v4517, 0.0
          %vm4774 = vcmp.ge.f32.partialorder %v4518, 0.0
          %v4775 = vmul.f32 %v4263, 0.2
          %v4776 = vmul.f32 %v4264, 0.2
          %v4777 = vmul.f32 %v4265, 0.2
          %v4778 = vmul.f32 %v4266, 0.2
          %v4779 = vmul.f32 %v4267, 0.2
          %v4780 = vmul.f32 %v4268, 0.2
          %v4781 = vmul.f32 %v4269, 0.2
          %v4782 = vmul.f32 %v4270, 0.2
          %v4783 = vmul.f32 %v4271, 0.2
          %v4784 = vmul.f32 %v4272, 0.2
          %v4785 = vmul.f32 %v4273, 0.2
          %v4786 = vmul.f32 %v4274, 0.2
          %v4787 = vmul.f32 %v4275, 0.2
          %v4788 = vmul.f32 %v4276, 0.2
          %v4789 = vmul.f32 %v4277, 0.2
          %v4790 = vmul.f32 %v4278, 0.2
          %v4791 = vmul.f32 %v4279, 0.2
          %v4792 = vmul.f32 %v4280, 0.2
          %v4793 = vmul.f32 %v4281, 0.2
          %v4794 = vmul.f32 %v4282, 0.2
          %v4795 = vmul.f32 %v4283, 0.2
          %v4796 = vmul.f32 %v4284, 0.2
          %v4797 = vmul.f32 %v4285, 0.2
          %v4798 = vmul.f32 %v4286, 0.2
          %v4799 = vmul.f32 %v4287, 0.2
          %v4800 = vmul.f32 %v4288, 0.2
          %v4801 = vmul.f32 %v4289, 0.2
          %v4802 = vmul.f32 %v4290, 0.2
          %v4803 = vmul.f32 %v4291, 0.2
          %v4804 = vmul.f32 %v4292, 0.2
          %v4805 = vmul.f32 %v4293, 0.2
          %v4806 = vmul.f32 %v4294, 0.2
          %v4807 = vmul.f32 %v4295, 0.2
          %v4808 = vmul.f32 %v4296, 0.2
          %v4809 = vmul.f32 %v4297, 0.2
          %v4810 = vmul.f32 %v4298, 0.2
          %v4811 = vmul.f32 %v4299, 0.2
          %v4812 = vmul.f32 %v4300, 0.2
          %v4813 = vmul.f32 %v4301, 0.2
          %v4814 = vmul.f32 %v4302, 0.2
          %v4815 = vmul.f32 %v4303, 0.2
          %v4816 = vmul.f32 %v4304, 0.2
          %v4817 = vmul.f32 %v4305, 0.2
          %v4818 = vmul.f32 %v4306, 0.2
          %v4819 = vmul.f32 %v4307, 0.2
          %v4820 = vmul.f32 %v4308, 0.2
          %v4821 = vmul.f32 %v4309, 0.2
          %v4822 = vmul.f32 %v4310, 0.2
          %v4823 = vmul.f32 %v4311, 0.2
          %v4824 = vmul.f32 %v4312, 0.2
          %v4825 = vmul.f32 %v4313, 0.2
          %v4826 = vmul.f32 %v4314, 0.2
          %v4827 = vmul.f32 %v4315, 0.2
          %v4828 = vmul.f32 %v4316, 0.2
          %v4829 = vmul.f32 %v4317, 0.2
          %v4830 = vmul.f32 %v4318, 0.2
          %v4831 = vmul.f32 %v4319, 0.2
          %v4832 = vmul.f32 %v4320, 0.2
          %v4833 = vmul.f32 %v4321, 0.2
          %v4834 = vmul.f32 %v4322, 0.2
          %v4835 = vmul.f32 %v4323, 0.2
          %v4836 = vmul.f32 %v4324, 0.2
          %v4837 = vmul.f32 %v4325, 0.2
          %v4838 = vmul.f32 %v4326, 0.2
          %v4839 = vmul.f32 %v4327, 0.2
          %v4840 = vmul.f32 %v4328, 0.2
          %v4841 = vmul.f32 %v4329, 0.2
          %v4842 = vmul.f32 %v4330, 0.2
          %v4843 = vmul.f32 %v4331, 0.2
          %v4844 = vmul.f32 %v4332, 0.2
          %v4845 = vmul.f32 %v4333, 0.2
          %v4846 = vmul.f32 %v4334, 0.2
          %v4847 = vmul.f32 %v4335, 0.2
          %v4848 = vmul.f32 %v4336, 0.2
          %v4849 = vmul.f32 %v4337, 0.2
          %v4850 = vmul.f32 %v4338, 0.2
          %v4851 = vmul.f32 %v4339, 0.2
          %v4852 = vmul.f32 %v4340, 0.2
          %v4853 = vmul.f32 %v4341, 0.2
          %v4854 = vmul.f32 %v4342, 0.2
          %v4855 = vmul.f32 %v4343, 0.2
          %v4856 = vmul.f32 %v4344, 0.2
          %v4857 = vmul.f32 %v4345, 0.2
          %v4858 = vmul.f32 %v4346, 0.2
          %v4859 = vmul.f32 %v4347, 0.2
          %v4860 = vmul.f32 %v4348, 0.2
          %v4861 = vmul.f32 %v4349, 0.2
          %v4862 = vmul.f32 %v4350, 0.2
          %v4863 = vmul.f32 %v4351, 0.2
          %v4864 = vmul.f32 %v4352, 0.2
          %v4865 = vmul.f32 %v4353, 0.2
          %v4866 = vmul.f32 %v4354, 0.2
          %v4867 = vmul.f32 %v4355, 0.2
          %v4868 = vmul.f32 %v4356, 0.2
          %v4869 = vmul.f32 %v4357, 0.2
          %v4870 = vmul.f32 %v4358, 0.2
          %v4871 = vmul.f32 %v4359, 0.2
          %v4872 = vmul.f32 %v4360, 0.2
          %v4873 = vmul.f32 %v4361, 0.2
          %v4874 = vmul.f32 %v4362, 0.2
          %v4875 = vmul.f32 %v4363, 0.2
          %v4876 = vmul.f32 %v4364, 0.2
          %v4877 = vmul.f32 %v4365, 0.2
          %v4878 = vmul.f32 %v4366, 0.2
          %v4879 = vmul.f32 %v4367, 0.2
          %v4880 = vmul.f32 %v4368, 0.2
          %v4881 = vmul.f32 %v4369, 0.2
          %v4882 = vmul.f32 %v4370, 0.2
          %v4883 = vmul.f32 %v4371, 0.2
          %v4884 = vmul.f32 %v4372, 0.2
          %v4885 = vmul.f32 %v4373, 0.2
          %v4886 = vmul.f32 %v4374, 0.2
          %v4887 = vmul.f32 %v4375, 0.2
          %v4888 = vmul.f32 %v4376, 0.2
          %v4889 = vmul.f32 %v4377, 0.2
          %v4890 = vmul.f32 %v4378, 0.2
          %v4891 = vmul.f32 %v4379, 0.2
          %v4892 = vmul.f32 %v4380, 0.2
          %v4893 = vmul.f32 %v4381, 0.2
          %v4894 = vmul.f32 %v4382, 0.2
          %v4895 = vmul.f32 %v4383, 0.2
          %v4896 = vmul.f32 %v4384, 0.2
          %v4897 = vmul.f32 %v4385, 0.2
          %v4898 = vmul.f32 %v4386, 0.2
          %v4899 = vmul.f32 %v4387, 0.2
          %v4900 = vmul.f32 %v4388, 0.2
          %v4901 = vmul.f32 %v4389, 0.2
          %v4902 = vmul.f32 %v4390, 0.2
          %v4903 = vmul.f32 %v4391, 0.2
          %v4904 = vmul.f32 %v4392, 0.2
          %v4905 = vmul.f32 %v4393, 0.2
          %v4906 = vmul.f32 %v4394, 0.2
          %v4907 = vmul.f32 %v4395, 0.2
          %v4908 = vmul.f32 %v4396, 0.2
          %v4909 = vmul.f32 %v4397, 0.2
          %v4910 = vmul.f32 %v4398, 0.2
          %v4911 = vmul.f32 %v4399, 0.2
          %v4912 = vmul.f32 %v4400, 0.2
          %v4913 = vmul.f32 %v4401, 0.2
          %v4914 = vmul.f32 %v4402, 0.2
          %v4915 = vmul.f32 %v4403, 0.2
          %v4916 = vmul.f32 %v4404, 0.2
          %v4917 = vmul.f32 %v4405, 0.2
          %v4918 = vmul.f32 %v4406, 0.2
          %v4919 = vmul.f32 %v4407, 0.2
          %v4920 = vmul.f32 %v4408, 0.2
          %v4921 = vmul.f32 %v4409, 0.2
          %v4922 = vmul.f32 %v4410, 0.2
          %v4923 = vmul.f32 %v4411, 0.2
          %v4924 = vmul.f32 %v4412, 0.2
          %v4925 = vmul.f32 %v4413, 0.2
          %v4926 = vmul.f32 %v4414, 0.2
          %v4927 = vmul.f32 %v4415, 0.2
          %v4928 = vmul.f32 %v4416, 0.2
          %v4929 = vmul.f32 %v4417, 0.2
          %v4930 = vmul.f32 %v4418, 0.2
          %v4931 = vmul.f32 %v4419, 0.2
          %v4932 = vmul.f32 %v4420, 0.2
          %v4933 = vmul.f32 %v4421, 0.2
          %v4934 = vmul.f32 %v4422, 0.2
          %v4935 = vmul.f32 %v4423, 0.2
          %v4936 = vmul.f32 %v4424, 0.2
          %v4937 = vmul.f32 %v4425, 0.2
          %v4938 = vmul.f32 %v4426, 0.2
          %v4939 = vmul.f32 %v4427, 0.2
          %v4940 = vmul.f32 %v4428, 0.2
          %v4941 = vmul.f32 %v4429, 0.2
          %v4942 = vmul.f32 %v4430, 0.2
          %v4943 = vmul.f32 %v4431, 0.2
          %v4944 = vmul.f32 %v4432, 0.2
          %v4945 = vmul.f32 %v4433, 0.2
          %v4946 = vmul.f32 %v4434, 0.2
          %v4947 = vmul.f32 %v4435, 0.2
          %v4948 = vmul.f32 %v4436, 0.2
          %v4949 = vmul.f32 %v4437, 0.2
          %v4950 = vmul.f32 %v4438, 0.2
          %v4951 = vmul.f32 %v4439, 0.2
          %v4952 = vmul.f32 %v4440, 0.2
          %v4953 = vmul.f32 %v4441, 0.2
          %v4954 = vmul.f32 %v4442, 0.2
          %v4955 = vmul.f32 %v4443, 0.2
          %v4956 = vmul.f32 %v4444, 0.2
          %v4957 = vmul.f32 %v4445, 0.2
          %v4958 = vmul.f32 %v4446, 0.2
          %v4959 = vmul.f32 %v4447, 0.2
          %v4960 = vmul.f32 %v4448, 0.2
          %v4961 = vmul.f32 %v4449, 0.2
          %v4962 = vmul.f32 %v4450, 0.2
          %v4963 = vmul.f32 %v4451, 0.2
          %v4964 = vmul.f32 %v4452, 0.2
          %v4965 = vmul.f32 %v4453, 0.2
          %v4966 = vmul.f32 %v4454, 0.2
          %v4967 = vmul.f32 %v4455, 0.2
          %v4968 = vmul.f32 %v4456, 0.2
          %v4969 = vmul.f32 %v4457, 0.2
          %v4970 = vmul.f32 %v4458, 0.2
          %v4971 = vmul.f32 %v4459, 0.2
          %v4972 = vmul.f32 %v4460, 0.2
          %v4973 = vmul.f32 %v4461, 0.2
          %v4974 = vmul.f32 %v4462, 0.2
          %v4975 = vmul.f32 %v4463, 0.2
          %v4976 = vmul.f32 %v4464, 0.2
          %v4977 = vmul.f32 %v4465, 0.2
          %v4978 = vmul.f32 %v4466, 0.2
          %v4979 = vmul.f32 %v4467, 0.2
          %v4980 = vmul.f32 %v4468, 0.2
          %v4981 = vmul.f32 %v4469, 0.2
          %v4982 = vmul.f32 %v4470, 0.2
          %v4983 = vmul.f32 %v4471, 0.2
          %v4984 = vmul.f32 %v4472, 0.2
          %v4985 = vmul.f32 %v4473, 0.2
          %v4986 = vmul.f32 %v4474, 0.2
          %v4987 = vmul.f32 %v4475, 0.2
          %v4988 = vmul.f32 %v4476, 0.2
          %v4989 = vmul.f32 %v4477, 0.2
          %v4990 = vmul.f32 %v4478, 0.2
          %v4991 = vmul.f32 %v4479, 0.2
          %v4992 = vmul.f32 %v4480, 0.2
          %v4993 = vmul.f32 %v4481, 0.2
          %v4994 = vmul.f32 %v4482, 0.2
          %v4995 = vmul.f32 %v4483, 0.2
          %v4996 = vmul.f32 %v4484, 0.2
          %v4997 = vmul.f32 %v4485, 0.2
          %v4998 = vmul.f32 %v4486, 0.2
          %v4999 = vmul.f32 %v4487, 0.2
          %v5000 = vmul.f32 %v4488, 0.2
          %v5001 = vmul.f32 %v4489, 0.2
          %v5002 = vmul.f32 %v4490, 0.2
          %v5003 = vmul.f32 %v4491, 0.2
          %v5004 = vmul.f32 %v4492, 0.2
          %v5005 = vmul.f32 %v4493, 0.2
          %v5006 = vmul.f32 %v4494, 0.2
          %v5007 = vmul.f32 %v4495, 0.2
          %v5008 = vmul.f32 %v4496, 0.2
          %v5009 = vmul.f32 %v4497, 0.2
          %v5010 = vmul.f32 %v4498, 0.2
          %v5011 = vmul.f32 %v4499, 0.2
          %v5012 = vmul.f32 %v4500, 0.2
          %v5013 = vmul.f32 %v4501, 0.2
          %v5014 = vmul.f32 %v4502, 0.2
          %v5015 = vmul.f32 %v4503, 0.2
          %v5016 = vmul.f32 %v4504, 0.2
          %v5017 = vmul.f32 %v4505, 0.2
          %v5018 = vmul.f32 %v4506, 0.2
          %v5019 = vmul.f32 %v4507, 0.2
          %v5020 = vmul.f32 %v4508, 0.2
          %v5021 = vmul.f32 %v4509, 0.2
          %v5022 = vmul.f32 %v4510, 0.2
          %v5023 = vmul.f32 %v4511, 0.2
          %v5024 = vmul.f32 %v4512, 0.2
          %v5025 = vmul.f32 %v4513, 0.2
          %v5026 = vmul.f32 %v4514, 0.2
          %v5027 = vmul.f32 %v4515, 0.2
          %v5028 = vmul.f32 %v4516, 0.2
          %v5029 = vmul.f32 %v4517, 0.2
          %v5030 = vmul.f32 %v4518, 0.2
          %v5031 = vsel %vm4519, %v4263, %v4775
          %v5032 = vsel %vm4520, %v4264, %v4776
          %v5033 = vsel %vm4521, %v4265, %v4777
          %v5034 = vsel %vm4522, %v4266, %v4778
          %v5035 = vsel %vm4523, %v4267, %v4779
          %v5036 = vsel %vm4524, %v4268, %v4780
          %v5037 = vsel %vm4525, %v4269, %v4781
          %v5038 = vsel %vm4526, %v4270, %v4782
          %v5039 = vsel %vm4527, %v4271, %v4783
          %v5040 = vsel %vm4528, %v4272, %v4784
          %v5041 = vsel %vm4529, %v4273, %v4785
          %v5042 = vsel %vm4530, %v4274, %v4786
          %v5043 = vsel %vm4531, %v4275, %v4787
          %v5044 = vsel %vm4532, %v4276, %v4788
          %v5045 = vsel %vm4533, %v4277, %v4789
          %v5046 = vsel %vm4534, %v4278, %v4790
          %v5047 = vsel %vm4535, %v4279, %v4791
          %v5048 = vsel %vm4536, %v4280, %v4792
          %v5049 = vsel %vm4537, %v4281, %v4793
          %v5050 = vsel %vm4538, %v4282, %v4794
          %v5051 = vsel %vm4539, %v4283, %v4795
          %v5052 = vsel %vm4540, %v4284, %v4796
          %v5053 = vsel %vm4541, %v4285, %v4797
          %v5054 = vsel %vm4542, %v4286, %v4798
          %v5055 = vsel %vm4543, %v4287, %v4799
          %v5056 = vsel %vm4544, %v4288, %v4800
          %v5057 = vsel %vm4545, %v4289, %v4801
          %v5058 = vsel %vm4546, %v4290, %v4802
          %v5059 = vsel %vm4547, %v4291, %v4803
          %v5060 = vsel %vm4548, %v4292, %v4804
          %v5061 = vsel %vm4549, %v4293, %v4805
          %v5062 = vsel %vm4550, %v4294, %v4806
          %v5063 = vsel %vm4551, %v4295, %v4807
          %v5064 = vsel %vm4552, %v4296, %v4808
          %v5065 = vsel %vm4553, %v4297, %v4809
          %v5066 = vsel %vm4554, %v4298, %v4810
          %v5067 = vsel %vm4555, %v4299, %v4811
          %v5068 = vsel %vm4556, %v4300, %v4812
          %v5069 = vsel %vm4557, %v4301, %v4813
          %v5070 = vsel %vm4558, %v4302, %v4814
          %v5071 = vsel %vm4559, %v4303, %v4815
          %v5072 = vsel %vm4560, %v4304, %v4816
          %v5073 = vsel %vm4561, %v4305, %v4817
          %v5074 = vsel %vm4562, %v4306, %v4818
          %v5075 = vsel %vm4563, %v4307, %v4819
          %v5076 = vsel %vm4564, %v4308, %v4820
          %v5077 = vsel %vm4565, %v4309, %v4821
          %v5078 = vsel %vm4566, %v4310, %v4822
          %v5079 = vsel %vm4567, %v4311, %v4823
          %v5080 = vsel %vm4568, %v4312, %v4824
          %v5081 = vsel %vm4569, %v4313, %v4825
          %v5082 = vsel %vm4570, %v4314, %v4826
          %v5083 = vsel %vm4571, %v4315, %v4827
          %v5084 = vsel %vm4572, %v4316, %v4828
          %v5085 = vsel %vm4573, %v4317, %v4829
          %v5086 = vsel %vm4574, %v4318, %v4830
          %v5087 = vsel %vm4575, %v4319, %v4831
          %v5088 = vsel %vm4576, %v4320, %v4832
          %v5089 = vsel %vm4577, %v4321, %v4833
          %v5090 = vsel %vm4578, %v4322, %v4834
          %v5091 = vsel %vm4579, %v4323, %v4835
          %v5092 = vsel %vm4580, %v4324, %v4836
          %v5093 = vsel %vm4581, %v4325, %v4837
          %v5094 = vsel %vm4582, %v4326, %v4838
          %v5095 = vsel %vm4583, %v4327, %v4839
          %v5096 = vsel %vm4584, %v4328, %v4840
          %v5097 = vsel %vm4585, %v4329, %v4841
          %v5098 = vsel %vm4586, %v4330, %v4842
          %v5099 = vsel %vm4587, %v4331, %v4843
          %v5100 = vsel %vm4588, %v4332, %v4844
          %v5101 = vsel %vm4589, %v4333, %v4845
          %v5102 = vsel %vm4590, %v4334, %v4846
          %v5103 = vsel %vm4591, %v4335, %v4847
          %v5104 = vsel %vm4592, %v4336, %v4848
          %v5105 = vsel %vm4593, %v4337, %v4849
          %v5106 = vsel %vm4594, %v4338, %v4850
          %v5107 = vsel %vm4595, %v4339, %v4851
          %v5108 = vsel %vm4596, %v4340, %v4852
          %v5109 = vsel %vm4597, %v4341, %v4853
          %v5110 = vsel %vm4598, %v4342, %v4854
          %v5111 = vsel %vm4599, %v4343, %v4855
          %v5112 = vsel %vm4600, %v4344, %v4856
          %v5113 = vsel %vm4601, %v4345, %v4857
          %v5114 = vsel %vm4602, %v4346, %v4858
          %v5115 = vsel %vm4603, %v4347, %v4859
          %v5116 = vsel %vm4604, %v4348, %v4860
          %v5117 = vsel %vm4605, %v4349, %v4861
          %v5118 = vsel %vm4606, %v4350, %v4862
          %v5119 = vsel %vm4607, %v4351, %v4863
          %v5120 = vsel %vm4608, %v4352, %v4864
          %v5121 = vsel %vm4609, %v4353, %v4865
          %v5122 = vsel %vm4610, %v4354, %v4866
          %v5123 = vsel %vm4611, %v4355, %v4867
          %v5124 = vsel %vm4612, %v4356, %v4868
          %v5125 = vsel %vm4613, %v4357, %v4869
          %v5126 = vsel %vm4614, %v4358, %v4870
          %v5127 = vsel %vm4615, %v4359, %v4871
          %v5128 = vsel %vm4616, %v4360, %v4872
          %v5129 = vsel %vm4617, %v4361, %v4873
          %v5130 = vsel %vm4618, %v4362, %v4874
          %v5131 = vsel %vm4619, %v4363, %v4875
          %v5132 = vsel %vm4620, %v4364, %v4876
          %v5133 = vsel %vm4621, %v4365, %v4877
          %v5134 = vsel %vm4622, %v4366, %v4878
          %v5135 = vsel %vm4623, %v4367, %v4879
          %v5136 = vsel %vm4624, %v4368, %v4880
          %v5137 = vsel %vm4625, %v4369, %v4881
          %v5138 = vsel %vm4626, %v4370, %v4882
          %v5139 = vsel %vm4627, %v4371, %v4883
          %v5140 = vsel %vm4628, %v4372, %v4884
          %v5141 = vsel %vm4629, %v4373, %v4885
          %v5142 = vsel %vm4630, %v4374, %v4886
          %v5143 = vsel %vm4631, %v4375, %v4887
          %v5144 = vsel %vm4632, %v4376, %v4888
          %v5145 = vsel %vm4633, %v4377, %v4889
          %v5146 = vsel %vm4634, %v4378, %v4890
          %v5147 = vsel %vm4635, %v4379, %v4891
          %v5148 = vsel %vm4636, %v4380, %v4892
          %v5149 = vsel %vm4637, %v4381, %v4893
          %v5150 = vsel %vm4638, %v4382, %v4894
          %v5151 = vsel %vm4639, %v4383, %v4895
          %v5152 = vsel %vm4640, %v4384, %v4896
          %v5153 = vsel %vm4641, %v4385, %v4897
          %v5154 = vsel %vm4642, %v4386, %v4898
          %v5155 = vsel %vm4643, %v4387, %v4899
          %v5156 = vsel %vm4644, %v4388, %v4900
          %v5157 = vsel %vm4645, %v4389, %v4901
          %v5158 = vsel %vm4646, %v4390, %v4902
          %v5159 = vsel %vm4647, %v4391, %v4903
          %v5160 = vsel %vm4648, %v4392, %v4904
          %v5161 = vsel %vm4649, %v4393, %v4905
          %v5162 = vsel %vm4650, %v4394, %v4906
          %v5163 = vsel %vm4651, %v4395, %v4907
          %v5164 = vsel %vm4652, %v4396, %v4908
          %v5165 = vsel %vm4653, %v4397, %v4909
          %v5166 = vsel %vm4654, %v4398, %v4910
          %v5167 = vsel %vm4655, %v4399, %v4911
          %v5168 = vsel %vm4656, %v4400, %v4912
          %v5169 = vsel %vm4657, %v4401, %v4913
          %v5170 = vsel %vm4658, %v4402, %v4914
          %v5171 = vsel %vm4659, %v4403, %v4915
          %v5172 = vsel %vm4660, %v4404, %v4916
          %v5173 = vsel %vm4661, %v4405, %v4917
          %v5174 = vsel %vm4662, %v4406, %v4918
          %v5175 = vsel %vm4663, %v4407, %v4919
          %v5176 = vsel %vm4664, %v4408, %v4920
          %v5177 = vsel %vm4665, %v4409, %v4921
          %v5178 = vsel %vm4666, %v4410, %v4922
          %v5179 = vsel %vm4667, %v4411, %v4923
          %v5180 = vsel %vm4668, %v4412, %v4924
          %v5181 = vsel %vm4669, %v4413, %v4925
          %v5182 = vsel %vm4670, %v4414, %v4926
          %v5183 = vsel %vm4671, %v4415, %v4927
          %v5184 = vsel %vm4672, %v4416, %v4928
          %v5185 = vsel %vm4673, %v4417, %v4929
          %v5186 = vsel %vm4674, %v4418, %v4930
          %v5187 = vsel %vm4675, %v4419, %v4931
          %v5188 = vsel %vm4676, %v4420, %v4932
          %v5189 = vsel %vm4677, %v4421, %v4933
          %v5190 = vsel %vm4678, %v4422, %v4934
          %v5191 = vsel %vm4679, %v4423, %v4935
          %v5192 = vsel %vm4680, %v4424, %v4936
          %v5193 = vsel %vm4681, %v4425, %v4937
          %v5194 = vsel %vm4682, %v4426, %v4938
          %v5195 = vsel %vm4683, %v4427, %v4939
          %v5196 = vsel %vm4684, %v4428, %v4940
          %v5197 = vsel %vm4685, %v4429, %v4941
          %v5198 = vsel %vm4686, %v4430, %v4942
          %v5199 = vsel %vm4687, %v4431, %v4943
          %v5200 = vsel %vm4688, %v4432, %v4944
          %v5201 = vsel %vm4689, %v4433, %v4945
          %v5202 = vsel %vm4690, %v4434, %v4946
          %v5203 = vsel %vm4691, %v4435, %v4947
          %v5204 = vsel %vm4692, %v4436, %v4948
          %v5205 = vsel %vm4693, %v4437, %v4949
          %v5206 = vsel %vm4694, %v4438, %v4950
          %v5207 = vsel %vm4695, %v4439, %v4951
          %v5208 = vsel %vm4696, %v4440, %v4952
          %v5209 = vsel %vm4697, %v4441, %v4953
          %v5210 = vsel %vm4698, %v4442, %v4954
          %v5211 = vsel %vm4699, %v4443, %v4955
          %v5212 = vsel %vm4700, %v4444, %v4956
          %v5213 = vsel %vm4701, %v4445, %v4957
          %v5214 = vsel %vm4702, %v4446, %v4958
          %v5215 = vsel %vm4703, %v4447, %v4959
          %v5216 = vsel %vm4704, %v4448, %v4960
          %v5217 = vsel %vm4705, %v4449, %v4961
          %v5218 = vsel %vm4706, %v4450, %v4962
          %v5219 = vsel %vm4707, %v4451, %v4963
          %v5220 = vsel %vm4708, %v4452, %v4964
          %v5221 = vsel %vm4709, %v4453, %v4965
          %v5222 = vsel %vm4710, %v4454, %v4966
          %v5223 = vsel %vm4711, %v4455, %v4967
          %v5224 = vsel %vm4712, %v4456, %v4968
          %v5225 = vsel %vm4713, %v4457, %v4969
          %v5226 = vsel %vm4714, %v4458, %v4970
          %v5227 = vsel %vm4715, %v4459, %v4971
          %v5228 = vsel %vm4716, %v4460, %v4972
          %v5229 = vsel %vm4717, %v4461, %v4973
          %v5230 = vsel %vm4718, %v4462, %v4974
          %v5231 = vsel %vm4719, %v4463, %v4975
          %v5232 = vsel %vm4720, %v4464, %v4976
          %v5233 = vsel %vm4721, %v4465, %v4977
          %v5234 = vsel %vm4722, %v4466, %v4978
          %v5235 = vsel %vm4723, %v4467, %v4979
          %v5236 = vsel %vm4724, %v4468, %v4980
          %v5237 = vsel %vm4725, %v4469, %v4981
          %v5238 = vsel %vm4726, %v4470, %v4982
          %v5239 = vsel %vm4727, %v4471, %v4983
          %v5240 = vsel %vm4728, %v4472, %v4984
          %v5241 = vsel %vm4729, %v4473, %v4985
          %v5242 = vsel %vm4730, %v4474, %v4986
          %v5243 = vsel %vm4731, %v4475, %v4987
          %v5244 = vsel %vm4732, %v4476, %v4988
          %v5245 = vsel %vm4733, %v4477, %v4989
          %v5246 = vsel %vm4734, %v4478, %v4990
          %v5247 = vsel %vm4735, %v4479, %v4991
          %v5248 = vsel %vm4736, %v4480, %v4992
          %v5249 = vsel %vm4737, %v4481, %v4993
          %v5250 = vsel %vm4738, %v4482, %v4994
          %v5251 = vsel %vm4739, %v4483, %v4995
          %v5252 = vsel %vm4740, %v4484, %v4996
          %v5253 = vsel %vm4741, %v4485, %v4997
          %v5254 = vsel %vm4742, %v4486, %v4998
          %v5255 = vsel %vm4743, %v4487, %v4999
          %v5256 = vsel %vm4744, %v4488, %v5000
          %v5257 = vsel %vm4745, %v4489, %v5001
          %v5258 = vsel %vm4746, %v4490, %v5002
          %v5259 = vsel %vm4747, %v4491, %v5003
          %v5260 = vsel %vm4748, %v4492, %v5004
          %v5261 = vsel %vm4749, %v4493, %v5005
          %v5262 = vsel %vm4750, %v4494, %v5006
          %v5263 = vsel %vm4751, %v4495, %v5007
          %v5264 = vsel %vm4752, %v4496, %v5008
          %v5265 = vsel %vm4753, %v4497, %v5009
          %v5266 = vsel %vm4754, %v4498, %v5010
          %v5267 = vsel %vm4755, %v4499, %v5011
          %v5268 = vsel %vm4756, %v4500, %v5012
          %v5269 = vsel %vm4757, %v4501, %v5013
          %v5270 = vsel %vm4758, %v4502, %v5014
          %v5271 = vsel %vm4759, %v4503, %v5015
          %v5272 = vsel %vm4760, %v4504, %v5016
          %v5273 = vsel %vm4761, %v4505, %v5017
          %v5274 = vsel %vm4762, %v4506, %v5018
          %v5275 = vsel %vm4763, %v4507, %v5019
          %v5276 = vsel %vm4764, %v4508, %v5020
          %v5277 = vsel %vm4765, %v4509, %v5021
          %v5278 = vsel %vm4766, %v4510, %v5022
          %v5279 = vsel %vm4767, %v4511, %v5023
          %v5280 = vsel %vm4768, %v4512, %v5024
          %v5281 = vsel %vm4769, %v4513, %v5025
          %v5282 = vsel %vm4770, %v4514, %v5026
          %v5283 = vsel %vm4771, %v4515, %v5027
          %v5284 = vsel %vm4772, %v4516, %v5028
          %v5285 = vsel %vm4773, %v4517, %v5029
          %v5286 = vsel %vm4774, %v4518, %v5030
          %v5287 = vld [vmem:[%s6] sm:$0x1]
          %v5288 = vpack.c.bf16 %v5047, %v5031
          %v5289 = vpack.c.bf16 %v5048, %v5032
          %v5290 = vpack.c.bf16 %v5049, %v5033
          %v5291 = vpack.c.bf16 %v5050, %v5034
          %v5292 = vpack.c.bf16 %v5051, %v5035
          %v5293 = vpack.c.bf16 %v5052, %v5036
          %v5294 = vpack.c.bf16 %v5053, %v5037
          %v5295 = vpack.c.bf16 %v5054, %v5038
          %v5296 = vpack.c.bf16 %v5055, %v5039
          %v5297 = vpack.c.bf16 %v5056, %v5040
          %v5298 = vpack.c.bf16 %v5057, %v5041
          %v5299 = vpack.c.bf16 %v5058, %v5042
          %v5300 = vpack.c.bf16 %v5059, %v5043
          %v5301 = vpack.c.bf16 %v5060, %v5044
          %v5302 = vpack.c.bf16 %v5061, %v5045
          %v5303 = vpack.c.bf16 %v5062, %v5046
          %v5304 = vpack.c.bf16 %v5079, %v5063
          %v5305 = vpack.c.bf16 %v5080, %v5064
          %v5306 = vpack.c.bf16 %v5081, %v5065
          %v5307 = vpack.c.bf16 %v5082, %v5066
          %v5308 = vpack.c.bf16 %v5083, %v5067
          %v5309 = vpack.c.bf16 %v5084, %v5068
          %v5310 = vpack.c.bf16 %v5085, %v5069
          %v5311 = vpack.c.bf16 %v5086, %v5070
          %v5312 = vpack.c.bf16 %v5087, %v5071
          %v5313 = vpack.c.bf16 %v5088, %v5072
          %v5314 = vpack.c.bf16 %v5089, %v5073
          %v5315 = vpack.c.bf16 %v5090, %v5074
          %v5316 = vpack.c.bf16 %v5091, %v5075
          %v5317 = vpack.c.bf16 %v5092, %v5076
          %v5318 = vpack.c.bf16 %v5093, %v5077
          %v5319 = vpack.c.bf16 %v5094, %v5078
          %v5320 = vpack.c.bf16 %v5111, %v5095
          %v5321 = vpack.c.bf16 %v5112, %v5096
          %v5322 = vpack.c.bf16 %v5113, %v5097
          %v5323 = vpack.c.bf16 %v5114, %v5098
          %v5324 = vpack.c.bf16 %v5115, %v5099
          %v5325 = vpack.c.bf16 %v5116, %v5100
          %v5326 = vpack.c.bf16 %v5117, %v5101
          %v5327 = vpack.c.bf16 %v5118, %v5102
          %v5328 = vpack.c.bf16 %v5119, %v5103
          %v5329 = vpack.c.bf16 %v5120, %v5104
          %v5330 = vpack.c.bf16 %v5121, %v5105
          %v5331 = vpack.c.bf16 %v5122, %v5106
          %v5332 = vpack.c.bf16 %v5123, %v5107
          %v5333 = vpack.c.bf16 %v5124, %v5108
          %v5334 = vpack.c.bf16 %v5125, %v5109
          %v5335 = vpack.c.bf16 %v5126, %v5110
          %v5336 = vpack.c.bf16 %v5143, %v5127
          %v5337 = vpack.c.bf16 %v5144, %v5128
          %v5338 = vpack.c.bf16 %v5145, %v5129
          %v5339 = vpack.c.bf16 %v5146, %v5130
          %v5340 = vpack.c.bf16 %v5147, %v5131
          %v5341 = vpack.c.bf16 %v5148, %v5132
          %v5342 = vpack.c.bf16 %v5149, %v5133
          %v5343 = vpack.c.bf16 %v5150, %v5134
          %v5344 = vpack.c.bf16 %v5151, %v5135
          %v5345 = vpack.c.bf16 %v5152, %v5136
          %v5346 = vpack.c.bf16 %v5153, %v5137
          %v5347 = vpack.c.bf16 %v5154, %v5138
          %v5348 = vpack.c.bf16 %v5155, %v5139
          %v5349 = vpack.c.bf16 %v5156, %v5140
          %v5350 = vpack.c.bf16 %v5157, %v5141
          %v5351 = vpack.c.bf16 %v5158, %v5142
          %v5352 = vpack.c.bf16 %v5175, %v5159
          %v5353 = vpack.c.bf16 %v5176, %v5160
          %v5354 = vpack.c.bf16 %v5177, %v5161
          %v5355 = vpack.c.bf16 %v5178, %v5162
          %v5356 = vpack.c.bf16 %v5179, %v5163
          %v5357 = vpack.c.bf16 %v5180, %v5164
          %v5358 = vpack.c.bf16 %v5181, %v5165
          %v5359 = vpack.c.bf16 %v5182, %v5166
          %v5360 = vpack.c.bf16 %v5183, %v5167
          %v5361 = vpack.c.bf16 %v5184, %v5168
          %v5362 = vpack.c.bf16 %v5185, %v5169
          %v5363 = vpack.c.bf16 %v5186, %v5170
          %v5364 = vpack.c.bf16 %v5187, %v5171
          %v5365 = vpack.c.bf16 %v5188, %v5172
          %v5366 = vpack.c.bf16 %v5189, %v5173
          %v5367 = vpack.c.bf16 %v5190, %v5174
          %v5368 = vpack.c.bf16 %v5207, %v5191
          %v5369 = vpack.c.bf16 %v5208, %v5192
          %v5370 = vpack.c.bf16 %v5209, %v5193
          %v5371 = vpack.c.bf16 %v5210, %v5194
          %v5372 = vpack.c.bf16 %v5211, %v5195
          %v5373 = vpack.c.bf16 %v5212, %v5196
          %v5374 = vpack.c.bf16 %v5213, %v5197
          %v5375 = vpack.c.bf16 %v5214, %v5198
          %v5376 = vpack.c.bf16 %v5215, %v5199
          %v5377 = vpack.c.bf16 %v5216, %v5200
          %v5378 = vpack.c.bf16 %v5217, %v5201
          %v5379 = vpack.c.bf16 %v5218, %v5202
          %v5380 = vpack.c.bf16 %v5219, %v5203
          %v5381 = vpack.c.bf16 %v5220, %v5204
          %v5382 = vpack.c.bf16 %v5221, %v5205
          %v5383 = vpack.c.bf16 %v5222, %v5206
          %v5384 = vpack.c.bf16 %v5239, %v5223
          %v5385 = vpack.c.bf16 %v5240, %v5224
          %v5386 = vpack.c.bf16 %v5241, %v5225
          %v5387 = vpack.c.bf16 %v5242, %v5226
          %v5388 = vpack.c.bf16 %v5243, %v5227
          %v5389 = vpack.c.bf16 %v5244, %v5228
          %v5390 = vpack.c.bf16 %v5245, %v5229
          %v5391 = vpack.c.bf16 %v5246, %v5230
          %v5392 = vpack.c.bf16 %v5247, %v5231
          %v5393 = vpack.c.bf16 %v5248, %v5232
          %v5394 = vpack.c.bf16 %v5249, %v5233
          %v5395 = vpack.c.bf16 %v5250, %v5234
          %v5396 = vpack.c.bf16 %v5251, %v5235
          %v5397 = vpack.c.bf16 %v5252, %v5236
          %v5398 = vpack.c.bf16 %v5253, %v5237
          %v5399 = vpack.c.bf16 %v5254, %v5238
          %v5400 = vpack.c.bf16 %v5271, %v5255
          %v5401 = vpack.c.bf16 %v5272, %v5256
          %v5402 = vpack.c.bf16 %v5273, %v5257
          %v5403 = vpack.c.bf16 %v5274, %v5258
          %v5404 = vpack.c.bf16 %v5275, %v5259
          %v5405 = vpack.c.bf16 %v5276, %v5260
          %v5406 = vpack.c.bf16 %v5277, %v5261
          %v5407 = vpack.c.bf16 %v5278, %v5262
          %v5408 = vpack.c.bf16 %v5279, %v5263
          %v5409 = vpack.c.bf16 %v5280, %v5264
          %v5410 = vpack.c.bf16 %v5281, %v5265
          %v5411 = vpack.c.bf16 %v5282, %v5266
          %v5412 = vpack.c.bf16 %v5283, %v5267
          %v5413 = vpack.c.bf16 %v5284, %v5268
          %v5414 = vpack.c.bf16 %v5285, %v5269
          %v5415 = vpack.c.bf16 %v5286, %v5270
          %5416 = vmatpush.bf16.msra.mxu0 %v5400
          %5417 = vmatpush.bf16.msra.mxu0 %v5384
          %5418 = vmatpush.bf16.msra.mxu0 %v5368
          %5419 = vmatpush.bf16.msra.mxu0 %v5352
          %5420 = vmatpush.bf16.msra.mxu0 %v5336
          %5421 = vmatpush.bf16.msra.mxu0 %v5320
          %5422 = vmatpush.bf16.msra.mxu0 %v5304
          %5423 = vmatpush.bf16.msra.mxu0 %v5288
          %5424 = vmatmul.bf16.gmra.mxu0 %v5287
          %v5425 = vpop.f32.mrf.mxu0
          %v5426 = vadd.f32 0.0, %v5425
          %v5427 = vpop.f32.mrf.mxu0
          %5428 = vdwg.mxu0
          %5429 = vmatpush.bf16.msra.mxu0 %v5401
          %5430 = vmatpush.bf16.msra.mxu0 %v5385
          %5431 = vmatpush.bf16.msra.mxu0 %v5369
          %5432 = vmatpush.bf16.msra.mxu0 %v5353
          %5433 = vmatpush.bf16.msra.mxu0 %v5337
          %5434 = vmatpush.bf16.msra.mxu0 %v5321
          %5435 = vmatpush.bf16.msra.mxu0 %v5305
          %5436 = vmatpush.bf16.msra.mxu0 %v5289
          %5437 = vmatmul.bf16.gmra.mxu0 %v5287
          %v5438 = vpop.f32.mrf.mxu0
          %v5439 = vadd.f32 0.0, %v5438
          %v5440 = vpop.f32.mrf.mxu0
          %5441 = vdwg.mxu0
          %5442 = vmatpush.bf16.msra.mxu0 %v5402
          %5443 = vmatpush.bf16.msra.mxu0 %v5386
          %5444 = vmatpush.bf16.msra.mxu0 %v5370
          %5445 = vmatpush.bf16.msra.mxu0 %v5354
          %5446 = vmatpush.bf16.msra.mxu0 %v5338
          %5447 = vmatpush.bf16.msra.mxu0 %v5322
          %5448 = vmatpush.bf16.msra.mxu0 %v5306
          %5449 = vmatpush.bf16.msra.mxu0 %v5290
          %5450 = vmatmul.bf16.gmra.mxu0 %v5287
          %v5451 = vpop.f32.mrf.mxu0
          %v5452 = vadd.f32 0.0, %v5451
          %v5453 = vpop.f32.mrf.mxu0
          %5454 = vdwg.mxu0
          %5455 = vmatpush.bf16.msra.mxu0 %v5403
          %5456 = vmatpush.bf16.msra.mxu0 %v5387
          %5457 = vmatpush.bf16.msra.mxu0 %v5371
          %5458 = vmatpush.bf16.msra.mxu0 %v5355
          %5459 = vmatpush.bf16.msra.mxu0 %v5339
          %5460 = vmatpush.bf16.msra.mxu0 %v5323
          %5461 = vmatpush.bf16.msra.mxu0 %v5307
          %5462 = vmatpush.bf16.msra.mxu0 %v5291
          %5463 = vmatmul.bf16.gmra.mxu0 %v5287
          %v5464 = vpop.f32.mrf.mxu0
          %v5465 = vadd.f32 0.0, %v5464
          %v5466 = vpop.f32.mrf.mxu0
          %5467 = vdwg.mxu0
          %5468 = vmatpush.bf16.msra.mxu0 %v5404
          %5469 = vmatpush.bf16.msra.mxu0 %v5388
          %5470 = vmatpush.bf16.msra.mxu0 %v5372
          %5471 = vmatpush.bf16.msra.mxu0 %v5356
          %5472 = vmatpush.bf16.msra.mxu0 %v5340
          %5473 = vmatpush.bf16.msra.mxu0 %v5324
          %5474 = vmatpush.bf16.msra.mxu0 %v5308
          %5475 = vmatpush.bf16.msra.mxu0 %v5292
          %5476 = vmatmul.bf16.gmra.mxu0 %v5287
          %v5477 = vpop.f32.mrf.mxu0
          %v5478 = vadd.f32 0.0, %v5477
          %v5479 = vpop.f32.mrf.mxu0
          %5480 = vdwg.mxu0
          %5481 = vmatpush.bf16.msra.mxu0 %v5405
          %5482 = vmatpush.bf16.msra.mxu0 %v5389
          %5483 = vmatpush.bf16.msra.mxu0 %v5373
          %5484 = vmatpush.bf16.msra.mxu0 %v5357
          %5485 = vmatpush.bf16.msra.mxu0 %v5341
          %5486 = vmatpush.bf16.msra.mxu0 %v5325
          %5487 = vmatpush.bf16.msra.mxu0 %v5309
          %5488 = vmatpush.bf16.msra.mxu0 %v5293
          %5489 = vmatmul.bf16.gmra.mxu0 %v5287
          %v5490 = vpop.f32.mrf.mxu0
          %v5491 = vadd.f32 0.0, %v5490
          %v5492 = vpop.f32.mrf.mxu0
          %5493 = vdwg.mxu0
          %5494 = vmatpush.bf16.msra.mxu0 %v5406
          %5495 = vmatpush.bf16.msra.mxu0 %v5390
          %5496 = vmatpush.bf16.msra.mxu0 %v5374
          %5497 = vmatpush.bf16.msra.mxu0 %v5358
          %5498 = vmatpush.bf16.msra.mxu0 %v5342
          %5499 = vmatpush.bf16.msra.mxu0 %v5326
          %5500 = vmatpush.bf16.msra.mxu0 %v5310
          %5501 = vmatpush.bf16.msra.mxu0 %v5294
          %5502 = vmatmul.bf16.gmra.mxu0 %v5287
          %v5503 = vpop.f32.mrf.mxu0
          %v5504 = vadd.f32 0.0, %v5503
          %v5505 = vpop.f32.mrf.mxu0
          %5506 = vdwg.mxu0
          %5507 = vmatpush.bf16.msra.mxu0 %v5407
          %5508 = vmatpush.bf16.msra.mxu0 %v5391
          %5509 = vmatpush.bf16.msra.mxu0 %v5375
          %5510 = vmatpush.bf16.msra.mxu0 %v5359
          %5511 = vmatpush.bf16.msra.mxu0 %v5343
          %5512 = vmatpush.bf16.msra.mxu0 %v5327
          %5513 = vmatpush.bf16.msra.mxu0 %v5311
          %5514 = vmatpush.bf16.msra.mxu0 %v5295
          %5515 = vmatmul.bf16.gmra.mxu0 %v5287
          %v5516 = vpop.f32.mrf.mxu0
          %v5517 = vadd.f32 0.0, %v5516
          %v5518 = vpop.f32.mrf.mxu0
          %5519 = vdwg.mxu0
          %5520 = vmatpush.bf16.msra.mxu0 %v5408
          %5521 = vmatpush.bf16.msra.mxu0 %v5392
          %5522 = vmatpush.bf16.msra.mxu0 %v5376
          %5523 = vmatpush.bf16.msra.mxu0 %v5360
          %5524 = vmatpush.bf16.msra.mxu0 %v5344
          %5525 = vmatpush.bf16.msra.mxu0 %v5328
          %5526 = vmatpush.bf16.msra.mxu0 %v5312
          %5527 = vmatpush.bf16.msra.mxu0 %v5296
          %5528 = vmatmul.bf16.gmra.mxu0 %v5287
          %v5529 = vpop.f32.mrf.mxu0
          %v5530 = vadd.f32 0.0, %v5529
          %v5531 = vpop.f32.mrf.mxu0
          %5532 = vdwg.mxu0
          %5533 = vmatpush.bf16.msra.mxu0 %v5409
          %5534 = vmatpush.bf16.msra.mxu0 %v5393
          %5535 = vmatpush.bf16.msra.mxu0 %v5377
          %5536 = vmatpush.bf16.msra.mxu0 %v5361
          %5537 = vmatpush.bf16.msra.mxu0 %v5345
          %5538 = vmatpush.bf16.msra.mxu0 %v5329
          %5539 = vmatpush.bf16.msra.mxu0 %v5313
          %5540 = vmatpush.bf16.msra.mxu0 %v5297
          %5541 = vmatmul.bf16.gmra.mxu0 %v5287
          %v5542 = vpop.f32.mrf.mxu0
          %v5543 = vadd.f32 0.0, %v5542
          %v5544 = vpop.f32.mrf.mxu0
          %5545 = vdwg.mxu0
          %5546 = vmatpush.bf16.msra.mxu0 %v5410
          %5547 = vmatpush.bf16.msra.mxu0 %v5394
          %5548 = vmatpush.bf16.msra.mxu0 %v5378
          %5549 = vmatpush.bf16.msra.mxu0 %v5362
          %5550 = vmatpush.bf16.msra.mxu0 %v5346
          %5551 = vmatpush.bf16.msra.mxu0 %v5330
          %5552 = vmatpush.bf16.msra.mxu0 %v5314
          %5553 = vmatpush.bf16.msra.mxu0 %v5298
          %5554 = vmatmul.bf16.gmra.mxu0 %v5287
          %v5555 = vpop.f32.mrf.mxu0
          %v5556 = vadd.f32 0.0, %v5555
          %v5557 = vpop.f32.mrf.mxu0
          %5558 = vdwg.mxu0
          %5559 = vmatpush.bf16.msra.mxu0 %v5411
          %5560 = vmatpush.bf16.msra.mxu0 %v5395
          %5561 = vmatpush.bf16.msra.mxu0 %v5379
          %5562 = vmatpush.bf16.msra.mxu0 %v5363
          %5563 = vmatpush.bf16.msra.mxu0 %v5347
          %5564 = vmatpush.bf16.msra.mxu0 %v5331
          %5565 = vmatpush.bf16.msra.mxu0 %v5315
          %5566 = vmatpush.bf16.msra.mxu0 %v5299
          %5567 = vmatmul.bf16.gmra.mxu0 %v5287
          %v5568 = vpop.f32.mrf.mxu0
          %v5569 = vadd.f32 0.0, %v5568
          %v5570 = vpop.f32.mrf.mxu0
          %5571 = vdwg.mxu0
          %5572 = vmatpush.bf16.msra.mxu0 %v5412
          %5573 = vmatpush.bf16.msra.mxu0 %v5396
          %5574 = vmatpush.bf16.msra.mxu0 %v5380
          %5575 = vmatpush.bf16.msra.mxu0 %v5364
          %5576 = vmatpush.bf16.msra.mxu0 %v5348
          %5577 = vmatpush.bf16.msra.mxu0 %v5332
          %5578 = vmatpush.bf16.msra.mxu0 %v5316
          %5579 = vmatpush.bf16.msra.mxu0 %v5300
          %5580 = vmatmul.bf16.gmra.mxu0 %v5287
          %v5581 = vpop.f32.mrf.mxu0
          %v5582 = vadd.f32 0.0, %v5581
          %v5583 = vpop.f32.mrf.mxu0
          %5584 = vdwg.mxu0
          %5585 = vmatpush.bf16.msra.mxu0 %v5413
          %5586 = vmatpush.bf16.msra.mxu0 %v5397
          %5587 = vmatpush.bf16.msra.mxu0 %v5381
          %5588 = vmatpush.bf16.msra.mxu0 %v5365
          %5589 = vmatpush.bf16.msra.mxu0 %v5349
          %5590 = vmatpush.bf16.msra.mxu0 %v5333
          %5591 = vmatpush.bf16.msra.mxu0 %v5317
          %5592 = vmatpush.bf16.msra.mxu0 %v5301
          %5593 = vmatmul.bf16.gmra.mxu0 %v5287
          %v5594 = vpop.f32.mrf.mxu0
          %v5595 = vadd.f32 0.0, %v5594
          %v5596 = vpop.f32.mrf.mxu0
          %5597 = vdwg.mxu0
          %5598 = vmatpush.bf16.msra.mxu0 %v5414
          %5599 = vmatpush.bf16.msra.mxu0 %v5398
          %5600 = vmatpush.bf16.msra.mxu0 %v5382
          %5601 = vmatpush.bf16.msra.mxu0 %v5366
          %5602 = vmatpush.bf16.msra.mxu0 %v5350
          %5603 = vmatpush.bf16.msra.mxu0 %v5334
          %5604 = vmatpush.bf16.msra.mxu0 %v5318
          %5605 = vmatpush.bf16.msra.mxu0 %v5302
          %5606 = vmatmul.bf16.gmra.mxu0 %v5287
          %v5607 = vpop.f32.mrf.mxu0
          %v5608 = vadd.f32 0.0, %v5607
          %v5609 = vpop.f32.mrf.mxu0
          %5610 = vdwg.mxu0
          %5611 = vmatpush.bf16.msra.mxu0 %v5415
          %5612 = vmatpush.bf16.msra.mxu0 %v5399
          %5613 = vmatpush.bf16.msra.mxu0 %v5383
          %5614 = vmatpush.bf16.msra.mxu0 %v5367
          %5615 = vmatpush.bf16.msra.mxu0 %v5351
          %5616 = vmatpush.bf16.msra.mxu0 %v5335
          %5617 = vmatpush.bf16.msra.mxu0 %v5319
          %5618 = vmatpush.bf16.msra.mxu0 %v5303
          %5619 = vmatmul.bf16.gmra.mxu0 %v5287
          %v5620 = vpop.f32.mrf.mxu0
          %v5621 = vadd.f32 0.0, %v5620
          %v5622 = vpop.f32.mrf.mxu0
          %5623 = vdwg.mxu0
          %v5640 = vrot.slane %v5439, 7
          %v5641 = vrot.slane %v5452, 6
          %v5642 = vrot.slane %v5465, 5
          %v5643 = vrot.slane %v5478, 4
          %v5644 = vrot.slane %v5491, 3
          %v5645 = vrot.slane %v5504, 2
          %v5646 = vrot.slane %v5517, 1
          %v5647 = vrot.slane %v5543, 7
          %v5648 = vrot.slane %v5556, 6
          %v5649 = vrot.slane %v5569, 5
          %v5650 = vrot.slane %v5582, 4
          %v5651 = vrot.slane %v5595, 3
          %v5652 = vrot.slane %v5608, 2
          %v5653 = vrot.slane %v5621, 1
          %vm5654 = vcmask 1040384
          %v5655 = vsel %vm5654, %v5426, %v5640
          %vm5656 = vcmask 1042434
          %v5657 = vsel %vm5656, %v5641, %v5642
          %vm5658 = vcmask 1041408
          %v5659 = vsel %vm5658, %v5655, %v5657
          %vm5660 = vcmask 1044484
          %v5661 = vsel %vm5660, %v5643, %v5644
          %vm5662 = vcmask 1046534
          %v5663 = vsel %vm5662, %v5645, %v5646
          %vm5664 = vcmask 1045508
          %v5665 = vsel %vm5664, %v5661, %v5663
          %vm5666 = vcmask 1043456
          %v5667 = vsel %vm5666, %v5659, %v5665
          %v5668 = vsel %vm5654, %v5530, %v5647
          %v5669 = vsel %vm5656, %v5648, %v5649
          %v5670 = vsel %vm5658, %v5668, %v5669
          %v5671 = vsel %vm5660, %v5650, %v5651
          %v5672 = vsel %vm5662, %v5652, %v5653
          %v5673 = vsel %vm5664, %v5671, %v5672
          %v5674 = vsel %vm5666, %v5670, %v5673
          %5677 = vst [vmem:[%s286] sm:$0xff] %v5667
          %5678 = vst [vmem:[%s286 + $0x8] sm:$0xff] %v5674
        $region64: #{tpu_custom_call.1} parent=47 // pred_fallthru
          _
        %s5679 = sand.u32 %s195, 1
        %s5680 = scalar_lea.sflag [#allocation5], %s5679
        %s5681 = sand.u32 %s195, 1
        %s5682 = smul.addr %s5681, 16
        %s5683 = scalar_lea.vmem [#allocation4], %s5682
        // Predicated region
        $region65: #{tpu_custom_call.1} parent=47 // pred_check
          %p5684 = pneg %p205
        $region66: #{tpu_custom_call.1} parent=47 // pred_check_branch
          %5686 = sbr.rel (%p5684) target = $region68
        $region67: #{tpu_custom_call.1} parent=47 // pred_region
          %s5687 = smul.u32 %s26, %s25
          %s5688 = smul.u32 16, %s5687
          %5690 = vsyncadd %s5680, 0
          %s5691 = scalar_lea.hbm %s7, %s5688
          %s5693 = sshll.u32 %s5683, 4
          %s5694 = int_to_ptr.vmem [resolvable:$true] %s5693
          %s5695 = sshll.u32 %s5691, 4
          %s5696 = int_to_ptr.hbm [resolvable:$true] %s5695
          %5698 = dma.vmem_to_hbm [thread:$0]  %s5694, 256, %s5696, %s5680
        $region68: #{tpu_custom_call.1} parent=47 // pred_fallthru
          _
      $region48: #{tpu_custom_call.1} parent=5 // pred_fallthru
        _
      %p5699 = scmp.le.s32.totalorder 2, %s16
      // Predicated region
      $region69: #{tpu_custom_call.1} parent=5 // pred_check
        %p5700 = pneg %p5699
      $region70: #{tpu_custom_call.1} parent=5 // pred_check_branch
        %5702 = sbr.rel (%p5700) target = $region72
      $region71: #{tpu_custom_call.1} parent=5 // pred_region
        %s5703 = ssub.s32 %s16, 2
        // Predicated region
        $region73: #{tpu_custom_call.1} parent=71 // pred_check
          %p5704 = pneg %p211
        $region74: #{tpu_custom_call.1} parent=71 // pred_check_branch
          %5706 = sbr.rel (%p5704) target = $region76
        $region75: #{tpu_custom_call.1} parent=71 // pred_region
          %s5707 = sand.u32 %s196, 1
          %s5708 = scalar_lea.sflag [#allocation5], %s5707
          %s5709 = sand.u32 %s196, 1
          %s5710 = smul.addr %s5709, 16
          %s5711 = scalar_lea.vmem [#allocation4], %s5710
          %5713 = dma.done %s5708, 256
        $region76: #{tpu_custom_call.1} parent=71 // pred_fallthru
          _
      $region72: #{tpu_custom_call.1} parent=5 // pred_fallthru
        _
    $region6: #{tpu_custom_call.1} parent=1 // loop_footer
      %s20 = sadd.s32 1, %s16
    $region7: #{tpu_custom_call.1} parent=1 // loop_footer_branch
      %15 = sbr.rel target = $region3
    $region8: #{tpu_custom_call.1} parent=1 // loop_exit
      _
    %5714 = vsyncpa [#allocation5], 1
    %s5715 = scalar_lea.sflag [#allocation5], 1
    %5716 = vsyncpa %s5715, 1

</llo_original>
